<compile_context>
chip_gen: v6e
topology: v6e:2x2x1
jax: 0.10.0
libtpu: 0.0.40
codegen_flags: <defaults>
</compile_context>

<pallas_src>
import functools

import jax
import jax.numpy as jnp
from jax.experimental import pallas as pl
from jax.experimental.pallas import tpu as pltpu

# ---------------- configuration (small synthetic shapes) ----------------
BATCH = 2
DIM = 32
HEADS = 2
DIM_HEAD = 16
DEPTH = 2
FF_MULT = 4                       # dalle_pytorch FeedForward default mult
INNER = HEADS * DIM_HEAD          # 32
FF_HALF = FF_MULT * DIM           # 128 (GEGLU half width -> 128-lane slice)

NUM_TEXT_TOKENS = 24
TEXT_SEQ_LEN = 8

IMAGE_SIZE = 16                   # vae.image_size
VAE_NUM_LAYERS = 2                # vae.num_layers
NUM_IMAGE_TOKENS = 16             # vae.num_tokens
CODEBOOK_DIM = DIM                # codebook dim must equal transformer dim
IMAGE_SEQ_LEN = (IMAGE_SIZE // (2 ** VAE_NUM_LAYERS)) ** 2   # 16
SEQ_LEN = TEXT_SEQ_LEN + IMAGE_SEQ_LEN                       # 24
TOTAL_TOKENS = NUM_TEXT_TOKENS + NUM_IMAGE_TOKENS + 1        # 41
LOGITS_PAD = 128                  # lane-dense padded logits width

LN_EPS = 1e-5
NEG_MAX = float(-jnp.finfo(jnp.float32).max)   # torch masked_fill value
ATTN_MASK_ADD = -1e30                          # finite additive attention mask


# ---------------- in-kernel helpers ----------------
def _layernorm(x, g, b):
    mu = jnp.mean(x, axis=-1, keepdims=True)
    var = jnp.mean((x - mu) ** 2, axis=-1, keepdims=True)
    return (x - mu) * jax.lax.rsqrt(var + LN_EPS) * g + b


def _gelu_exact(x):
    # matches PyTorch F.gelu default (erf-based, not tanh approximation)
    return 0.5 * x * (1.0 + jax.lax.erf(x * jnp.float32(0.7071067811865476)))


# ---------------- fused transformer + logits kernel ----------------
def _fused_kernel(x_ref,
                  ln1g, ln1b, wqkv, wout, bout,
                  ln2g, ln2b, w1, b1, w2, b2,
                  wlog, blog,
                  o_ref, *, depth, heads, batch):
    x3 = x_ref[...]                               # (B, N, D) float32
    n = x3.shape[1]
    d = x3.shape[2]
    x = x3.reshape(batch * n, d)                  # fold batch into matmul M dim

    # causal additive mask: built ONCE, reused by every layer / batch / head
    row = jax.lax.broadcasted_iota(jnp.int32, (n, n), 0)
    col = jax.lax.broadcasted_iota(jnp.int32, (n, n), 1)
    mask_add = jnp.where(col > row, jnp.float32(ATTN_MASK_ADD), jnp.float32(0.0))

    for l in range(depth):                        # statically-unrolled layer loop
        # ---- causal multi-head self-attention (PreNorm + residual) ----
        y = _layernorm(x, ln1g[l], ln1b[l])                        # (B*N, D)
        # one fused QKV matmul (scale already folded into the Q block)
        qkv = jnp.dot(y, wqkv[l], preferred_element_type=jnp.float32)  # (B*N, 3*INNER)

        batch_heads = []
        for b in range(batch):                    # B*H = 4 tiny score matmuls / layer
            qkv_b = qkv[b * n:(b + 1) * n]        # (N, 3*INNER) static sublane slice
            per_head = []
            for h in range(heads):
                qh = qkv_b[:, h * DIM_HEAD:(h + 1) * DIM_HEAD]
                kh = qkv_b[:, INNER + h * DIM_HEAD:INNER + (h + 1) * DIM_HEAD]
                vh = qkv_b[:, 2 * INNER + h * DIM_HEAD:2 * INNER + (h + 1) * DIM_HEAD]
                dots = jax.lax.dot_general(
                    qh, kh, (((1,), (1,)), ((), ())),
                    preferred_element_type=jnp.float32)            # (N, N)
                dots = dots + mask_add                              # additive, finite
                m = jnp.max(dots, axis=-1, keepdims=True)
                p = jnp.exp(dots - m)
                inv = pl.reciprocal(jnp.sum(p, axis=-1, keepdims=True), approx=True)
                attn = p * inv
                per_head.append(jnp.dot(attn, vh,
                                        preferred_element_type=jnp.float32))  # (N, dh)
            batch_heads.append(jnp.concatenate(per_head, axis=-1))  # (N, INNER)
        ho = jnp.concatenate(batch_heads, axis=0)                   # (B*N, INNER)
        # single fused output projection (no per-head matmuls, no head-axis sum)
        x = x + jnp.dot(ho, wout[l], preferred_element_type=jnp.float32) + bout[l]

        # ---- GEGLU feed-forward (PreNorm + residual), fused first matmul ----
        y2 = _layernorm(x, ln2g[l], ln2b[l])
        hfull = jnp.dot(y2, w1[l], preferred_element_type=jnp.float32) + b1[l]  # (B*N, 256)
        a = hfull[:, :FF_HALF]
        g = hfull[:, FF_HALF:]
        hidden = a * _gelu_exact(g)
        x = x + jnp.dot(hidden, w2[l], preferred_element_type=jnp.float32) + b2[l]

    # ---- final LayerNorm (affine folded into wlog/blog) + logits + mask ----
    mu = jnp.mean(x, axis=-1, keepdims=True)
    var = jnp.mean((x - mu) ** 2, axis=-1, keepdims=True)
    ynorm = (x - mu) * jax.lax.rsqrt(var + LN_EPS)
    logits = jnp.dot(ynorm, wlog[...], preferred_element_type=jnp.float32) + blog[...]

    seq = jax.lax.broadcasted_iota(jnp.int32, (n, LOGITS_PAD), 0)
    tok = jax.lax.broadcasted_iota(jnp.int32, (n, LOGITS_PAD), 1)
    lmask = (((seq >= TEXT_SEQ_LEN - 1) & (tok < NUM_TEXT_TOKENS))
             | ((seq < TEXT_SEQ_LEN - 1) & (tok >= NUM_TEXT_TOKENS))
             | ((seq != SEQ_LEN - 1) & (tok >= TOTAL_TOKENS - 1))
             | (tok >= TOTAL_TOKENS))             # also mask the 41..127 pad columns
    lmask = jnp.concatenate([lmask] * batch, axis=0)               # (B*N, 128)
    logits = jnp.where(lmask, NEG_MAX, logits)
    o_ref[...] = logits.reshape(batch, n, LOGITS_PAD)              # lane-dense store


def fused_transformer_logits(x, prepped):
    B, N, D = x.shape

    order = ('ln1g', 'ln1b', 'wqkv', 'wout', 'bout',
             'ln2g', 'ln2b', 'w1', 'b1', 'w2', 'b2',
             'wlog', 'blog')
    weights = [prepped[k] for k in order]

    rows = B * N
    flops = int(DEPTH * (
        2 * rows * D * (3 * INNER)                    # fused QKV projection
        + 2 * 2 * B * HEADS * N * N * DIM_HEAD        # scores + attn*v
        + 2 * rows * INNER * D                        # fused output projection
        + 2 * rows * D * (2 * FF_HALF)                # GEGLU first matmul
        + 2 * rows * FF_HALF * D)                     # FF second matmul
        + 2 * rows * D * LOGITS_PAD)                  # logits projection
    transcendentals = int(DEPTH * (B * HEADS * N * N + rows * FF_HALF))
    bytes_accessed = int(x.size * 4 + sum(w.size * 4 for w in weights)
                         + B * N * LOGITS_PAD * 4)

    kernel = functools.partial(_fused_kernel, depth=DEPTH, heads=HEADS, batch=B)
    vmem_spec = pl.BlockSpec(memory_space=pltpu.MemorySpace.VMEM)
    out = pl.pallas_call(
        kernel,
        out_shape=jax.ShapeDtypeStruct((B, N, LOGITS_PAD), jnp.float32),
        in_specs=[vmem_spec] * (1 + len(weights)),
        out_specs=vmem_spec,
        cost_estimate=pl.CostEstimate(flops=flops,
                                      transcendentals=transcendentals,
                                      bytes_accessed=bytes_accessed),
    )(x, *weights)
    return out[:, :, :TOTAL_TOKENS]


# ---------------- parameters (deterministic synthetic init) ----------------
def init_params(key):
    keys = iter(jax.random.split(key, 64))

    def nrm(shape, scale=0.02):
        return jax.random.normal(next(keys), shape, dtype=jnp.float32) * scale

    params = dict(
        text_emb=nrm((NUM_TEXT_TOKENS, DIM)),
        text_pos_emb=nrm((TEXT_SEQ_LEN, DIM)),
        codebook=nrm((NUM_IMAGE_TOKENS, CODEBOOK_DIM)),       # vae.codebook == image_emb
        img_pos_h=nrm((IMAGE_SIZE, DIM)),                      # AxialPositionalEmbedding axis 0
        img_pos_w=nrm((IMAGE_SIZE, DIM)),                      # AxialPositionalEmbedding axis 1
        ln_g=jnp.ones((1, DIM), jnp.float32),
        ln_b=jnp.zeros((1, DIM), jnp.float32),
        w_logits=nrm((DIM, TOTAL_TOKENS)),
        b_logits=jnp.zeros((1, TOTAL_TOKENS), jnp.float32),
    )
    layers = []
    for _ in range(DEPTH):
        layers.append(dict(
            ln1_g=jnp.ones((1, DIM), jnp.float32),
            ln1_b=jnp.zeros((1, DIM), jnp.float32),
            wqkv=nrm((DIM, 3 * INNER)),
            wout=nrm((INNER, DIM)),
            bout=jnp.zeros((1, DIM), jnp.float32),
            ln2_g=jnp.ones((1, DIM), jnp.float32),
            ln2_b=jnp.zeros((1, DIM), jnp.float32),
            w1=nrm((DIM, 2 * FF_HALF)),
            b1=jnp.zeros((1, 2 * FF_HALF), jnp.float32),
            w2=nrm((FF_HALF, DIM)),
            b2=jnp.zeros((1, DIM), jnp.float32),
        ))
    params["layers"] = layers
    return params


def prepare_params(params):
    """One-time re-layout:
       * stack layers along a leading DEPTH axis,
       * keep the fused QKV / GEGLU weights lane-dense (96- / 256-wide),
       * fold the 1/sqrt(dim_head) attention scale into the Q block of Wqkv,
       * fold the final LayerNorm affine into the logits projection,
       * zero-pad the logits projection to 128 lanes."""
    scale = DIM_HEAD ** -0.5
    st = {k: [] for k in ('ln1g', 'ln1b', 'wqkv', 'wout', 'bout',
                          'ln2g', 'ln2b', 'w1', 'b1', 'w2', 'b2')}
    for lp in params["layers"]:
        wqkv = lp["wqkv"].at[:, :INNER].multiply(scale)      # fold scale into Wq
        st['ln1g'].append(lp["ln1_g"]); st['ln1b'].append(lp["ln1_b"])
        st['wqkv'].append(wqkv)
        st['wout'].append(lp["wout"]); st['bout'].append(lp["bout"])
        st['ln2g'].append(lp["ln2_g"]); st['ln2b'].append(lp["ln2_b"])
        st['w1'].append(lp["w1"]); st['b1'].append(lp["b1"])
        st['w2'].append(lp["w2"]); st['b2'].append(lp["b2"])
    prepped = {k: jnp.stack(v) for k, v in st.items()}

    # fold final LN affine: logits = ((x-mu)*rsqrt) @ (diag(g) W) + (b @ W + bias)
    wlog = params["w_logits"] * params["ln_g"][0][:, None]            # (D, T)
    blog = params["b_logits"] + params["ln_b"] @ params["w_logits"]   # (1, T)
    wlog_p = jnp.zeros((DIM, LOGITS_PAD), jnp.float32).at[:, :TOTAL_TOKENS].set(wlog)
    blog_p = jnp.zeros((1, LOGITS_PAD), jnp.float32).at[:, :TOTAL_TOKENS].set(blog)
    prepped.update(wlog=wlog_p, blog=blog_p)
    return prepped


# ---------------- DALLE.forward (text + image token indices -> logits) ----------------
def _dalle_forward(params, prepped, text, image):
    B, tt = text.shape
    # text embedding + text positional embedding
    tokens_text = params["text_emb"][text] + params["text_pos_emb"][jnp.arange(tt)][None]
    # image (codebook) embedding + summed axial positional embedding
    img_emb = params["codebook"][image]
    n_img = image.shape[1]
    idx = jnp.arange(n_img)
    img_pos = params["img_pos_h"][idx // IMAGE_SIZE] + params["img_pos_w"][idx % IMAGE_SIZE]
    img_emb = img_emb + img_pos[None]

    x = jnp.concatenate([tokens_text, img_emb], axis=1).astype(jnp.float32)  # (B, SEQ_LEN, DIM)

    # fused: all transformer layers + final LN + logits + logits-mask in one kernel
    return fused_transformer_logits(x, prepped)


dalle_forward = jax.jit(_dalle_forward)


if __name__ == "__main__":
    key = jax.random.PRNGKey(0)
    pkey, tkey, ikey = jax.random.split(key, 3)
    params = init_params(pkey)
    prepped = prepare_params(params)
    text = jax.random.randint(tkey, (BATCH, TEXT_SEQ_LEN), 0, NUM_TEXT_TOKENS, dtype=jnp.int32)
    image = jax.random.randint(ikey, (BATCH, IMAGE_SEQ_LEN), 0, NUM_IMAGE_TOKENS, dtype=jnp.int32)

    logits = dalle_forward(params, prepped, text, image)
    jax.block_until_ready(logits)

    assert logits.shape == (BATCH, SEQ_LEN, TOTAL_TOKENS), logits.shape
    assert logits.dtype == jnp.float32
    assert bool(jnp.all(jnp.isfinite(jnp.where(logits <= NEG_MAX / 2, 0.0, logits))))
    print("KERNEL_OK")
</pallas_src>

<mosaic_0001>
module attributes {stable_mosaic.version = 11 : i64} {
  func.func @_fused_kernel(%arg0: memref<2x24x32xf32, #tpu.memory_space<vmem>>, %arg1: memref<2x1x32xf32, #tpu.memory_space<vmem>>, %arg2: memref<2x1x32xf32, #tpu.memory_space<vmem>>, %arg3: memref<2x32x96xf32, #tpu.memory_space<vmem>>, %arg4: memref<2x32x32xf32, #tpu.memory_space<vmem>>, %arg5: memref<2x1x32xf32, #tpu.memory_space<vmem>>, %arg6: memref<2x1x32xf32, #tpu.memory_space<vmem>>, %arg7: memref<2x1x32xf32, #tpu.memory_space<vmem>>, %arg8: memref<2x32x256xf32, #tpu.memory_space<vmem>>, %arg9: memref<2x1x256xf32, #tpu.memory_space<vmem>>, %arg10: memref<2x128x32xf32, #tpu.memory_space<vmem>>, %arg11: memref<2x1x32xf32, #tpu.memory_space<vmem>>, %arg12: memref<32x128xf32, #tpu.memory_space<vmem>>, %arg13: memref<1x128xf32, #tpu.memory_space<vmem>>, %arg14: memref<2x24x128xf32, #tpu.memory_space<vmem>>) attributes {dimension_semantics = [], scalar_prefetch = 0 : i64, scratch_operands = 0 : i64, tpu.core_type = #tpu.core_type<tc>} {
    %c0 = arith.constant 0 : index
    %c0_0 = arith.constant 0 : index
    %c0_1 = arith.constant 0 : index
    %0 = vector.load %arg0[%c0, %c0_0, %c0_1] : memref<2x24x32xf32, #tpu.memory_space<vmem>>, vector<2x24x32xf32>
    %1 = vector.shape_cast %0 : vector<2x24x32xf32> to vector<48x32xf32>
    %2 = tpu.iota {dimensions = array<i32: 0>} : vector<24x24xi32>
    %3 = tpu.iota {dimensions = array<i32: 1>} : vector<24x24xi32>
    %4 = arith.cmpi sgt, %3, %2 : vector<24x24xi32>
    %cst = arith.constant -1.000000e+30 : f32
    %cst_2 = arith.constant 0.000000e+00 : f32
    %5 = vector.broadcast %cst : f32 to vector<24x24xf32>
    %6 = vector.broadcast %cst_2 : f32 to vector<24x24xf32>
    %7 = arith.select %4, %5, %6 : vector<24x24xi1>, vector<24x24xf32>
    %c0_3 = arith.constant 0 : index
    %c0_4 = arith.constant 0 : index
    %c0_5 = arith.constant 0 : index
    %8 = vector.load %arg1[%c0_3, %c0_4, %c0_5] : memref<2x1x32xf32, #tpu.memory_space<vmem>>, vector<1x1x32xf32>
    %9 = vector.shape_cast %8 : vector<1x1x32xf32> to vector<1x32xf32>
    %c0_6 = arith.constant 0 : index
    %c0_7 = arith.constant 0 : index
    %c0_8 = arith.constant 0 : index
    %10 = vector.load %arg2[%c0_6, %c0_7, %c0_8] : memref<2x1x32xf32, #tpu.memory_space<vmem>>, vector<1x1x32xf32>
    %11 = vector.shape_cast %10 : vector<1x1x32xf32> to vector<1x32xf32>
    %cst_9 = arith.constant dense<0.000000e+00> : vector<48xf32>
    %12 = vector.multi_reduction <add>, %1, %cst_9 [1] : vector<48x32xf32> to vector<48xf32>
    %13 = vector.shape_cast %12 : vector<48xf32> to vector<48x1xf32>
    %cst_10 = arith.constant 3.200000e+01 : f32
    %14 = vector.broadcast %cst_10 : f32 to vector<48x1xf32>
    %15 = arith.divf %13, %14 : vector<48x1xf32>
    %16 = vector.broadcast %15 : vector<48x1xf32> to vector<48x32xf32>
    %17 = arith.subf %1, %16 : vector<48x32xf32>
    %18 = arith.mulf %17, %17 : vector<48x32xf32>
    %cst_11 = arith.constant dense<0.000000e+00> : vector<48xf32>
    %19 = vector.multi_reduction <add>, %18, %cst_11 [1] : vector<48x32xf32> to vector<48xf32>
    %20 = vector.shape_cast %19 : vector<48xf32> to vector<48x1xf32>
    %cst_12 = arith.constant 3.200000e+01 : f32
    %21 = vector.broadcast %cst_12 : f32 to vector<48x1xf32>
    %22 = arith.divf %20, %21 : vector<48x1xf32>
    %23 = vector.broadcast %15 : vector<48x1xf32> to vector<48x32xf32>
    %24 = arith.subf %1, %23 : vector<48x32xf32>
    %cst_13 = arith.constant 9.99999974E-6 : f32
    %25 = vector.broadcast %cst_13 : f32 to vector<48x1xf32>
    %26 = arith.addf %22, %25 : vector<48x1xf32>
    %27 = math.rsqrt %26 : vector<48x1xf32>
    %28 = vector.broadcast %27 : vector<48x1xf32> to vector<48x32xf32>
    %29 = arith.mulf %24, %28 : vector<48x32xf32>
    %30 = vector.broadcast %9 : vector<1x32xf32> to vector<48x32xf32>
    %31 = arith.mulf %29, %30 : vector<48x32xf32>
    %32 = vector.broadcast %11 : vector<1x32xf32> to vector<48x32xf32>
    %33 = arith.addf %31, %32 : vector<48x32xf32>
    %c0_14 = arith.constant 0 : index
    %c0_15 = arith.constant 0 : index
    %c0_16 = arith.constant 0 : index
    %34 = vector.load %arg3[%c0_14, %c0_15, %c0_16] : memref<2x32x96xf32, #tpu.memory_space<vmem>>, vector<1x32x96xf32>
    %35 = vector.shape_cast %34 : vector<1x32x96xf32> to vector<32x96xf32>
    %cst_17 = arith.constant dense<0.000000e+00> : vector<48x96xf32>
    %36 = tpu.matmul %33, %35, %cst_17 {dimension_numbers = #tpu.dot_dimension_numbers<[1], [0], [0], [1], [0, 0, 1, 1], [], []>} : vector<48x32xf32>, vector<32x96xf32>, vector<48x96xf32> -> vector<48x96xf32>
    %37 = vector.extract_strided_slice %36 {offsets = [0, 0], sizes = [24, 96], strides = [1, 1]} : vector<48x96xf32> to vector<24x96xf32>
    %38 = vector.extract_strided_slice %37 {offsets = [0, 0], sizes = [24, 16], strides = [1, 1]} : vector<24x96xf32> to vector<24x16xf32>
    %39 = vector.extract_strided_slice %37 {offsets = [0, 32], sizes = [24, 16], strides = [1, 1]} : vector<24x96xf32> to vector<24x16xf32>
    %40 = vector.extract_strided_slice %37 {offsets = [0, 64], sizes = [24, 16], strides = [1, 1]} : vector<24x96xf32> to vector<24x16xf32>
    %cst_18 = arith.constant dense<0.000000e+00> : vector<24x24xf32>
    %41 = tpu.matmul %38, %39, %cst_18 {dimension_numbers = #tpu.dot_dimension_numbers<[1], [1], [0], [0], [0, 0, 1, 0], [], []>} : vector<24x16xf32>, vector<24x16xf32>, vector<24x24xf32> -> vector<24x24xf32>
    %42 = arith.addf %41, %7 : vector<24x24xf32>
    %cst_19 = arith.constant dense<0xFF800000> : vector<24xf32>
    %43 = vector.multi_reduction <maximumf>, %42, %cst_19 [1] : vector<24x24xf32> to vector<24xf32>
    %44 = vector.shape_cast %43 : vector<24xf32> to vector<24x1xf32>
    %45 = vector.broadcast %44 : vector<24x1xf32> to vector<24x24xf32>
    %46 = arith.subf %42, %45 : vector<24x24xf32>
    %47 = math.exp %46 : vector<24x24xf32>
    %cst_20 = arith.constant dense<0.000000e+00> : vector<24xf32>
    %48 = vector.multi_reduction <add>, %47, %cst_20 [1] : vector<24x24xf32> to vector<24xf32>
    %49 = vector.shape_cast %48 : vector<24xf32> to vector<24x1xf32>
    %50 = tpu.reciprocal %49 {approx = true} : vector<24x1xf32> -> vector<24x1xf32>
    %51 = vector.broadcast %50 : vector<24x1xf32> to vector<24x24xf32>
    %52 = arith.mulf %47, %51 : vector<24x24xf32>
    %cst_21 = arith.constant dense<0.000000e+00> : vector<24x16xf32>
    %53 = tpu.matmul %52, %40, %cst_21 {dimension_numbers = #tpu.dot_dimension_numbers<[1], [0], [0], [1], [0, 0, 1, 1], [], []>} : vector<24x24xf32>, vector<24x16xf32>, vector<24x16xf32> -> vector<24x16xf32>
    %54 = vector.extract_strided_slice %37 {offsets = [0, 16], sizes = [24, 16], strides = [1, 1]} : vector<24x96xf32> to vector<24x16xf32>
    %55 = vector.extract_strided_slice %37 {offsets = [0, 48], sizes = [24, 16], strides = [1, 1]} : vector<24x96xf32> to vector<24x16xf32>
    %56 = vector.extract_strided_slice %37 {offsets = [0, 80], sizes = [24, 16], strides = [1, 1]} : vector<24x96xf32> to vector<24x16xf32>
    %cst_22 = arith.constant dense<0.000000e+00> : vector<24x24xf32>
    %57 = tpu.matmul %54, %55, %cst_22 {dimension_numbers = #tpu.dot_dimension_numbers<[1], [1], [0], [0], [0, 0, 1, 0], [], []>} : vector<24x16xf32>, vector<24x16xf32>, vector<24x24xf32> -> vector<24x24xf32>
    %58 = arith.addf %57, %7 : vector<24x24xf32>
    %cst_23 = arith.constant dense<0xFF800000> : vector<24xf32>
    %59 = vector.multi_reduction <maximumf>, %58, %cst_23 [1] : vector<24x24xf32> to vector<24xf32>
    %60 = vector.shape_cast %59 : vector<24xf32> to vector<24x1xf32>
    %61 = vector.broadcast %60 : vector<24x1xf32> to vector<24x24xf32>
    %62 = arith.subf %58, %61 : vector<24x24xf32>
    %63 = math.exp %62 : vector<24x24xf32>
    %cst_24 = arith.constant dense<0.000000e+00> : vector<24xf32>
    %64 = vector.multi_reduction <add>, %63, %cst_24 [1] : vector<24x24xf32> to vector<24xf32>
    %65 = vector.shape_cast %64 : vector<24xf32> to vector<24x1xf32>
    %66 = tpu.reciprocal %65 {approx = true} : vector<24x1xf32> -> vector<24x1xf32>
    %67 = vector.broadcast %66 : vector<24x1xf32> to vector<24x24xf32>
    %68 = arith.mulf %63, %67 : vector<24x24xf32>
    %cst_25 = arith.constant dense<0.000000e+00> : vector<24x16xf32>
    %69 = tpu.matmul %68, %56, %cst_25 {dimension_numbers = #tpu.dot_dimension_numbers<[1], [0], [0], [1], [0, 0, 1, 1], [], []>} : vector<24x24xf32>, vector<24x16xf32>, vector<24x16xf32> -> vector<24x16xf32>
    %70 = tpu.concatenate %53, %69 in 1 : vector<24x16xf32>, vector<24x16xf32> -> vector<24x32xf32>
    %71 = vector.extract_strided_slice %36 {offsets = [24, 0], sizes = [24, 96], strides = [1, 1]} : vector<48x96xf32> to vector<24x96xf32>
    %72 = vector.extract_strided_slice %71 {offsets = [0, 0], sizes = [24, 16], strides = [1, 1]} : vector<24x96xf32> to vector<24x16xf32>
    %73 = vector.extract_strided_slice %71 {offsets = [0, 32], sizes = [24, 16], strides = [1, 1]} : vector<24x96xf32> to vector<24x16xf32>
    %74 = vector.extract_strided_slice %71 {offsets = [0, 64], sizes = [24, 16], strides = [1, 1]} : vector<24x96xf32> to vector<24x16xf32>
    %cst_26 = arith.constant dense<0.000000e+00> : vector<24x24xf32>
    %75 = tpu.matmul %72, %73, %cst_26 {dimension_numbers = #tpu.dot_dimension_numbers<[1], [1], [0], [0], [0, 0, 1, 0], [], []>} : vector<24x16xf32>, vector<24x16xf32>, vector<24x24xf32> -> vector<24x24xf32>
    %76 = arith.addf %75, %7 : vector<24x24xf32>
    %cst_27 = arith.constant dense<0xFF800000> : vector<24xf32>
    %77 = vector.multi_reduction <maximumf>, %76, %cst_27 [1] : vector<24x24xf32> to vector<24xf32>
    %78 = vector.shape_cast %77 : vector<24xf32> to vector<24x1xf32>
    %79 = vector.broadcast %78 : vector<24x1xf32> to vector<24x24xf32>
    %80 = arith.subf %76, %79 : vector<24x24xf32>
    %81 = math.exp %80 : vector<24x24xf32>
    %cst_28 = arith.constant dense<0.000000e+00> : vector<24xf32>
    %82 = vector.multi_reduction <add>, %81, %cst_28 [1] : vector<24x24xf32> to vector<24xf32>
    %83 = vector.shape_cast %82 : vector<24xf32> to vector<24x1xf32>
    %84 = tpu.reciprocal %83 {approx = true} : vector<24x1xf32> -> vector<24x1xf32>
    %85 = vector.broadcast %84 : vector<24x1xf32> to vector<24x24xf32>
    %86 = arith.mulf %81, %85 : vector<24x24xf32>
    %cst_29 = arith.constant dense<0.000000e+00> : vector<24x16xf32>
    %87 = tpu.matmul %86, %74, %cst_29 {dimension_numbers = #tpu.dot_dimension_numbers<[1], [0], [0], [1], [0, 0, 1, 1], [], []>} : vector<24x24xf32>, vector<24x16xf32>, vector<24x16xf32> -> vector<24x16xf32>
    %88 = vector.extract_strided_slice %71 {offsets = [0, 16], sizes = [24, 16], strides = [1, 1]} : vector<24x96xf32> to vector<24x16xf32>
    %89 = vector.extract_strided_slice %71 {offsets = [0, 48], sizes = [24, 16], strides = [1, 1]} : vector<24x96xf32> to vector<24x16xf32>
    %90 = vector.extract_strided_slice %71 {offsets = [0, 80], sizes = [24, 16], strides = [1, 1]} : vector<24x96xf32> to vector<24x16xf32>
    %cst_30 = arith.constant dense<0.000000e+00> : vector<24x24xf32>
    %91 = tpu.matmul %88, %89, %cst_30 {dimension_numbers = #tpu.dot_dimension_numbers<[1], [1], [0], [0], [0, 0, 1, 0], [], []>} : vector<24x16xf32>, vector<24x16xf32>, vector<24x24xf32> -> vector<24x24xf32>
    %92 = arith.addf %91, %7 : vector<24x24xf32>
    %cst_31 = arith.constant dense<0xFF800000> : vector<24xf32>
    %93 = vector.multi_reduction <maximumf>, %92, %cst_31 [1] : vector<24x24xf32> to vector<24xf32>
    %94 = vector.shape_cast %93 : vector<24xf32> to vector<24x1xf32>
    %95 = vector.broadcast %94 : vector<24x1xf32> to vector<24x24xf32>
    %96 = arith.subf %92, %95 : vector<24x24xf32>
    %97 = math.exp %96 : vector<24x24xf32>
    %cst_32 = arith.constant dense<0.000000e+00> : vector<24xf32>
    %98 = vector.multi_reduction <add>, %97, %cst_32 [1] : vector<24x24xf32> to vector<24xf32>
    %99 = vector.shape_cast %98 : vector<24xf32> to vector<24x1xf32>
    %100 = tpu.reciprocal %99 {approx = true} : vector<24x1xf32> -> vector<24x1xf32>
    %101 = vector.broadcast %100 : vector<24x1xf32> to vector<24x24xf32>
    %102 = arith.mulf %97, %101 : vector<24x24xf32>
    %cst_33 = arith.constant dense<0.000000e+00> : vector<24x16xf32>
    %103 = tpu.matmul %102, %90, %cst_33 {dimension_numbers = #tpu.dot_dimension_numbers<[1], [0], [0], [1], [0, 0, 1, 1], [], []>} : vector<24x24xf32>, vector<24x16xf32>, vector<24x16xf32> -> vector<24x16xf32>
    %104 = tpu.concatenate %87, %103 in 1 : vector<24x16xf32>, vector<24x16xf32> -> vector<24x32xf32>
    %105 = tpu.concatenate %70, %104 in 0 : vector<24x32xf32>, vector<24x32xf32> -> vector<48x32xf32>
    %c0_34 = arith.constant 0 : index
    %c0_35 = arith.constant 0 : index
    %c0_36 = arith.constant 0 : index
    %106 = vector.load %arg4[%c0_34, %c0_35, %c0_36] : memref<2x32x32xf32, #tpu.memory_space<vmem>>, vector<1x32x32xf32>
    %107 = vector.shape_cast %106 : vector<1x32x32xf32> to vector<32x32xf32>
    %cst_37 = arith.constant dense<0.000000e+00> : vector<48x32xf32>
    %108 = tpu.matmul %105, %107, %cst_37 {dimension_numbers = #tpu.dot_dimension_numbers<[1], [0], [0], [1], [0, 0, 1, 1], [], []>} : vector<48x32xf32>, vector<32x32xf32>, vector<48x32xf32> -> vector<48x32xf32>
    %109 = arith.addf %1, %108 : vector<48x32xf32>
    %c0_38 = arith.constant 0 : index
    %c0_39 = arith.constant 0 : index
    %c0_40 = arith.constant 0 : index
    %110 = vector.load %arg5[%c0_38, %c0_39, %c0_40] : memref<2x1x32xf32, #tpu.memory_space<vmem>>, vector<1x1x32xf32>
    %111 = vector.shape_cast %110 : vector<1x1x32xf32> to vector<1x32xf32>
    %112 = vector.broadcast %111 : vector<1x32xf32> to vector<48x32xf32>
    %113 = arith.addf %109, %112 : vector<48x32xf32>
    %c0_41 = arith.constant 0 : index
    %c0_42 = arith.constant 0 : index
    %c0_43 = arith.constant 0 : index
    %114 = vector.load %arg6[%c0_41, %c0_42, %c0_43] : memref<2x1x32xf32, #tpu.memory_space<vmem>>, vector<1x1x32xf32>
    %115 = vector.shape_cast %114 : vector<1x1x32xf32> to vector<1x32xf32>
    %c0_44 = arith.constant 0 : index
    %c0_45 = arith.constant 0 : index
    %c0_46 = arith.constant 0 : index
    %116 = vector.load %arg7[%c0_44, %c0_45, %c0_46] : memref<2x1x32xf32, #tpu.memory_space<vmem>>, vector<1x1x32xf32>
    %117 = vector.shape_cast %116 : vector<1x1x32xf32> to vector<1x32xf32>
    %cst_47 = arith.constant dense<0.000000e+00> : vector<48xf32>
    %118 = vector.multi_reduction <add>, %113, %cst_47 [1] : vector<48x32xf32> to vector<48xf32>
    %119 = vector.shape_cast %118 : vector<48xf32> to vector<48x1xf32>
    %cst_48 = arith.constant 3.200000e+01 : f32
    %120 = vector.broadcast %cst_48 : f32 to vector<48x1xf32>
    %121 = arith.divf %119, %120 : vector<48x1xf32>
    %122 = vector.broadcast %121 : vector<48x1xf32> to vector<48x32xf32>
    %123 = arith.subf %113, %122 : vector<48x32xf32>
    %124 = arith.mulf %123, %123 : vector<48x32xf32>
    %cst_49 = arith.constant dense<0.000000e+00> : vector<48xf32>
    %125 = vector.multi_reduction <add>, %124, %cst_49 [1] : vector<48x32xf32> to vector<48xf32>
    %126 = vector.shape_cast %125 : vector<48xf32> to vector<48x1xf32>
    %cst_50 = arith.constant 3.200000e+01 : f32
    %127 = vector.broadcast %cst_50 : f32 to vector<48x1xf32>
    %128 = arith.divf %126, %127 : vector<48x1xf32>
    %129 = vector.broadcast %121 : vector<48x1xf32> to vector<48x32xf32>
    %130 = arith.subf %113, %129 : vector<48x32xf32>
    %cst_51 = arith.constant 9.99999974E-6 : f32
    %131 = vector.broadcast %cst_51 : f32 to vector<48x1xf32>
    %132 = arith.addf %128, %131 : vector<48x1xf32>
    %133 = math.rsqrt %132 : vector<48x1xf32>
    %134 = vector.broadcast %133 : vector<48x1xf32> to vector<48x32xf32>
    %135 = arith.mulf %130, %134 : vector<48x32xf32>
    %136 = vector.broadcast %115 : vector<1x32xf32> to vector<48x32xf32>
    %137 = arith.mulf %135, %136 : vector<48x32xf32>
    %138 = vector.broadcast %117 : vector<1x32xf32> to vector<48x32xf32>
    %139 = arith.addf %137, %138 : vector<48x32xf32>
    %c0_52 = arith.constant 0 : index
    %c0_53 = arith.constant 0 : index
    %c0_54 = arith.constant 0 : index
    %140 = vector.load %arg8[%c0_52, %c0_53, %c0_54] : memref<2x32x256xf32, #tpu.memory_space<vmem>>, vector<1x32x256xf32>
    %141 = vector.shape_cast %140 : vector<1x32x256xf32> to vector<32x256xf32>
    %cst_55 = arith.constant dense<0.000000e+00> : vector<48x256xf32>
    %142 = tpu.matmul %139, %141, %cst_55 {dimension_numbers = #tpu.dot_dimension_numbers<[1], [0], [0], [1], [0, 0, 1, 1], [], []>} : vector<48x32xf32>, vector<32x256xf32>, vector<48x256xf32> -> vector<48x256xf32>
    %c0_56 = arith.constant 0 : index
    %c0_57 = arith.constant 0 : index
    %c0_58 = arith.constant 0 : index
    %143 = vector.load %arg9[%c0_56, %c0_57, %c0_58] : memref<2x1x256xf32, #tpu.memory_space<vmem>>, vector<1x1x256xf32>
    %144 = vector.shape_cast %143 : vector<1x1x256xf32> to vector<1x256xf32>
    %145 = vector.broadcast %144 : vector<1x256xf32> to vector<48x256xf32>
    %146 = arith.addf %142, %145 : vector<48x256xf32>
    %147 = vector.extract_strided_slice %146 {offsets = [0, 0], sizes = [48, 128], strides = [1, 1]} : vector<48x256xf32> to vector<48x128xf32>
    %148 = vector.extract_strided_slice %146 {offsets = [0, 128], sizes = [48, 128], strides = [1, 1]} : vector<48x256xf32> to vector<48x128xf32>
    %cst_59 = arith.constant 5.000000e-01 : f32
    %149 = vector.broadcast %cst_59 : f32 to vector<48x128xf32>
    %150 = arith.mulf %149, %148 : vector<48x128xf32>
    %cst_60 = arith.constant 0.707106769 : f32
    %151 = vector.broadcast %cst_60 : f32 to vector<48x128xf32>
    %152 = arith.mulf %148, %151 : vector<48x128xf32>
    %153 = math.erf %152 : vector<48x128xf32>
    %cst_61 = arith.constant 1.000000e+00 : f32
    %154 = vector.broadcast %cst_61 : f32 to vector<48x128xf32>
    %155 = arith.addf %154, %153 : vector<48x128xf32>
    %156 = arith.mulf %150, %155 : vector<48x128xf32>
    %157 = arith.mulf %147, %156 : vector<48x128xf32>
    %c0_62 = arith.constant 0 : index
    %c0_63 = arith.constant 0 : index
    %c0_64 = arith.constant 0 : index
    %158 = vector.load %arg10[%c0_62, %c0_63, %c0_64] : memref<2x128x32xf32, #tpu.memory_space<vmem>>, vector<1x128x32xf32>
    %159 = vector.shape_cast %158 : vector<1x128x32xf32> to vector<128x32xf32>
    %cst_65 = arith.constant dense<0.000000e+00> : vector<48x32xf32>
    %160 = tpu.matmul %157, %159, %cst_65 {dimension_numbers = #tpu.dot_dimension_numbers<[1], [0], [0], [1], [0, 0, 1, 1], [], []>} : vector<48x128xf32>, vector<128x32xf32>, vector<48x32xf32> -> vector<48x32xf32>
    %161 = arith.addf %113, %160 : vector<48x32xf32>
    %c0_66 = arith.constant 0 : index
    %c0_67 = arith.constant 0 : index
    %c0_68 = arith.constant 0 : index
    %162 = vector.load %arg11[%c0_66, %c0_67, %c0_68] : memref<2x1x32xf32, #tpu.memory_space<vmem>>, vector<1x1x32xf32>
    %163 = vector.shape_cast %162 : vector<1x1x32xf32> to vector<1x32xf32>
    %164 = vector.broadcast %163 : vector<1x32xf32> to vector<48x32xf32>
    %165 = arith.addf %161, %164 : vector<48x32xf32>
    %c1 = arith.constant 1 : index
    %c0_69 = arith.constant 0 : index
    %c0_70 = arith.constant 0 : index
    %166 = vector.load %arg1[%c1, %c0_69, %c0_70] : memref<2x1x32xf32, #tpu.memory_space<vmem>>, vector<1x1x32xf32>
    %167 = vector.shape_cast %166 : vector<1x1x32xf32> to vector<1x32xf32>
    %c1_71 = arith.constant 1 : index
    %c0_72 = arith.constant 0 : index
    %c0_73 = arith.constant 0 : index
    %168 = vector.load %arg2[%c1_71, %c0_72, %c0_73] : memref<2x1x32xf32, #tpu.memory_space<vmem>>, vector<1x1x32xf32>
    %169 = vector.shape_cast %168 : vector<1x1x32xf32> to vector<1x32xf32>
    %cst_74 = arith.constant dense<0.000000e+00> : vector<48xf32>
    %170 = vector.multi_reduction <add>, %165, %cst_74 [1] : vector<48x32xf32> to vector<48xf32>
    %171 = vector.shape_cast %170 : vector<48xf32> to vector<48x1xf32>
    %cst_75 = arith.constant 3.200000e+01 : f32
    %172 = vector.broadcast %cst_75 : f32 to vector<48x1xf32>
    %173 = arith.divf %171, %172 : vector<48x1xf32>
    %174 = vector.broadcast %173 : vector<48x1xf32> to vector<48x32xf32>
    %175 = arith.subf %165, %174 : vector<48x32xf32>
    %176 = arith.mulf %175, %175 : vector<48x32xf32>
    %cst_76 = arith.constant dense<0.000000e+00> : vector<48xf32>
    %177 = vector.multi_reduction <add>, %176, %cst_76 [1] : vector<48x32xf32> to vector<48xf32>
    %178 = vector.shape_cast %177 : vector<48xf32> to vector<48x1xf32>
    %cst_77 = arith.constant 3.200000e+01 : f32
    %179 = vector.broadcast %cst_77 : f32 to vector<48x1xf32>
    %180 = arith.divf %178, %179 : vector<48x1xf32>
    %181 = vector.broadcast %173 : vector<48x1xf32> to vector<48x32xf32>
    %182 = arith.subf %165, %181 : vector<48x32xf32>
    %cst_78 = arith.constant 9.99999974E-6 : f32
    %183 = vector.broadcast %cst_78 : f32 to vector<48x1xf32>
    %184 = arith.addf %180, %183 : vector<48x1xf32>
    %185 = math.rsqrt %184 : vector<48x1xf32>
    %186 = vector.broadcast %185 : vector<48x1xf32> to vector<48x32xf32>
    %187 = arith.mulf %182, %186 : vector<48x32xf32>
    %188 = vector.broadcast %167 : vector<1x32xf32> to vector<48x32xf32>
    %189 = arith.mulf %187, %188 : vector<48x32xf32>
    %190 = vector.broadcast %169 : vector<1x32xf32> to vector<48x32xf32>
    %191 = arith.addf %189, %190 : vector<48x32xf32>
    %c1_79 = arith.constant 1 : index
    %c0_80 = arith.constant 0 : index
    %c0_81 = arith.constant 0 : index
    %192 = vector.load %arg3[%c1_79, %c0_80, %c0_81] : memref<2x32x96xf32, #tpu.memory_space<vmem>>, vector<1x32x96xf32>
    %193 = vector.shape_cast %192 : vector<1x32x96xf32> to vector<32x96xf32>
    %cst_82 = arith.constant dense<0.000000e+00> : vector<48x96xf32>
    %194 = tpu.matmul %191, %193, %cst_82 {dimension_numbers = #tpu.dot_dimension_numbers<[1], [0], [0], [1], [0, 0, 1, 1], [], []>} : vector<48x32xf32>, vector<32x96xf32>, vector<48x96xf32> -> vector<48x96xf32>
    %195 = vector.extract_strided_slice %194 {offsets = [0, 0], sizes = [24, 96], strides = [1, 1]} : vector<48x96xf32> to vector<24x96xf32>
    %196 = vector.extract_strided_slice %195 {offsets = [0, 0], sizes = [24, 16], strides = [1, 1]} : vector<24x96xf32> to vector<24x16xf32>
    %197 = vector.extract_strided_slice %195 {offsets = [0, 32], sizes = [24, 16], strides = [1, 1]} : vector<24x96xf32> to vector<24x16xf32>
    %198 = vector.extract_strided_slice %195 {offsets = [0, 64], sizes = [24, 16], strides = [1, 1]} : vector<24x96xf32> to vector<24x16xf32>
    %cst_83 = arith.constant dense<0.000000e+00> : vector<24x24xf32>
    %199 = tpu.matmul %196, %197, %cst_83 {dimension_numbers = #tpu.dot_dimension_numbers<[1], [1], [0], [0], [0, 0, 1, 0], [], []>} : vector<24x16xf32>, vector<24x16xf32>, vector<24x24xf32> -> vector<24x24xf32>
    %200 = arith.addf %199, %7 : vector<24x24xf32>
    %cst_84 = arith.constant dense<0xFF800000> : vector<24xf32>
    %201 = vector.multi_reduction <maximumf>, %200, %cst_84 [1] : vector<24x24xf32> to vector<24xf32>
    %202 = vector.shape_cast %201 : vector<24xf32> to vector<24x1xf32>
    %203 = vector.broadcast %202 : vector<24x1xf32> to vector<24x24xf32>
    %204 = arith.subf %200, %203 : vector<24x24xf32>
    %205 = math.exp %204 : vector<24x24xf32>
    %cst_85 = arith.constant dense<0.000000e+00> : vector<24xf32>
    %206 = vector.multi_reduction <add>, %205, %cst_85 [1] : vector<24x24xf32> to vector<24xf32>
    %207 = vector.shape_cast %206 : vector<24xf32> to vector<24x1xf32>
    %208 = tpu.reciprocal %207 {approx = true} : vector<24x1xf32> -> vector<24x1xf32>
    %209 = vector.broadcast %208 : vector<24x1xf32> to vector<24x24xf32>
    %210 = arith.mulf %205, %209 : vector<24x24xf32>
    %cst_86 = arith.constant dense<0.000000e+00> : vector<24x16xf32>
    %211 = tpu.matmul %210, %198, %cst_86 {dimension_numbers = #tpu.dot_dimension_numbers<[1], [0], [0], [1], [0, 0, 1, 1], [], []>} : vector<24x24xf32>, vector<24x16xf32>, vector<24x16xf32> -> vector<24x16xf32>
    %212 = vector.extract_strided_slice %195 {offsets = [0, 16], sizes = [24, 16], strides = [1, 1]} : vector<24x96xf32> to vector<24x16xf32>
    %213 = vector.extract_strided_slice %195 {offsets = [0, 48], sizes = [24, 16], strides = [1, 1]} : vector<24x96xf32> to vector<24x16xf32>
    %214 = vector.extract_strided_slice %195 {offsets = [0, 80], sizes = [24, 16], strides = [1, 1]} : vector<24x96xf32> to vector<24x16xf32>
    %cst_87 = arith.constant dense<0.000000e+00> : vector<24x24xf32>
    %215 = tpu.matmul %212, %213, %cst_87 {dimension_numbers = #tpu.dot_dimension_numbers<[1], [1], [0], [0], [0, 0, 1, 0], [], []>} : vector<24x16xf32>, vector<24x16xf32>, vector<24x24xf32> -> vector<24x24xf32>
    %216 = arith.addf %215, %7 : vector<24x24xf32>
    %cst_88 = arith.constant dense<0xFF800000> : vector<24xf32>
    %217 = vector.multi_reduction <maximumf>, %216, %cst_88 [1] : vector<24x24xf32> to vector<24xf32>
    %218 = vector.shape_cast %217 : vector<24xf32> to vector<24x1xf32>
    %219 = vector.broadcast %218 : vector<24x1xf32> to vector<24x24xf32>
    %220 = arith.subf %216, %219 : vector<24x24xf32>
    %221 = math.exp %220 : vector<24x24xf32>
    %cst_89 = arith.constant dense<0.000000e+00> : vector<24xf32>
    %222 = vector.multi_reduction <add>, %221, %cst_89 [1] : vector<24x24xf32> to vector<24xf32>
    %223 = vector.shape_cast %222 : vector<24xf32> to vector<24x1xf32>
    %224 = tpu.reciprocal %223 {approx = true} : vector<24x1xf32> -> vector<24x1xf32>
    %225 = vector.broadcast %224 : vector<24x1xf32> to vector<24x24xf32>
    %226 = arith.mulf %221, %225 : vector<24x24xf32>
    %cst_90 = arith.constant dense<0.000000e+00> : vector<24x16xf32>
    %227 = tpu.matmul %226, %214, %cst_90 {dimension_numbers = #tpu.dot_dimension_numbers<[1], [0], [0], [1], [0, 0, 1, 1], [], []>} : vector<24x24xf32>, vector<24x16xf32>, vector<24x16xf32> -> vector<24x16xf32>
    %228 = tpu.concatenate %211, %227 in 1 : vector<24x16xf32>, vector<24x16xf32> -> vector<24x32xf32>
    %229 = vector.extract_strided_slice %194 {offsets = [24, 0], sizes = [24, 96], strides = [1, 1]} : vector<48x96xf32> to vector<24x96xf32>
    %230 = vector.extract_strided_slice %229 {offsets = [0, 0], sizes = [24, 16], strides = [1, 1]} : vector<24x96xf32> to vector<24x16xf32>
    %231 = vector.extract_strided_slice %229 {offsets = [0, 32], sizes = [24, 16], strides = [1, 1]} : vector<24x96xf32> to vector<24x16xf32>
    %232 = vector.extract_strided_slice %229 {offsets = [0, 64], sizes = [24, 16], strides = [1, 1]} : vector<24x96xf32> to vector<24x16xf32>
    %cst_91 = arith.constant dense<0.000000e+00> : vector<24x24xf32>
    %233 = tpu.matmul %230, %231, %cst_91 {dimension_numbers = #tpu.dot_dimension_numbers<[1], [1], [0], [0], [0, 0, 1, 0], [], []>} : vector<24x16xf32>, vector<24x16xf32>, vector<24x24xf32> -> vector<24x24xf32>
    %234 = arith.addf %233, %7 : vector<24x24xf32>
    %cst_92 = arith.constant dense<0xFF800000> : vector<24xf32>
    %235 = vector.multi_reduction <maximumf>, %234, %cst_92 [1] : vector<24x24xf32> to vector<24xf32>
    %236 = vector.shape_cast %235 : vector<24xf32> to vector<24x1xf32>
    %237 = vector.broadcast %236 : vector<24x1xf32> to vector<24x24xf32>
    %238 = arith.subf %234, %237 : vector<24x24xf32>
    %239 = math.exp %238 : vector<24x24xf32>
    %cst_93 = arith.constant dense<0.000000e+00> : vector<24xf32>
    %240 = vector.multi_reduction <add>, %239, %cst_93 [1] : vector<24x24xf32> to vector<24xf32>
    %241 = vector.shape_cast %240 : vector<24xf32> to vector<24x1xf32>
    %242 = tpu.reciprocal %241 {approx = true} : vector<24x1xf32> -> vector<24x1xf32>
    %243 = vector.broadcast %242 : vector<24x1xf32> to vector<24x24xf32>
    %244 = arith.mulf %239, %243 : vector<24x24xf32>
    %cst_94 = arith.constant dense<0.000000e+00> : vector<24x16xf32>
    %245 = tpu.matmul %244, %232, %cst_94 {dimension_numbers = #tpu.dot_dimension_numbers<[1], [0], [0], [1], [0, 0, 1, 1], [], []>} : vector<24x24xf32>, vector<24x16xf32>, vector<24x16xf32> -> vector<24x16xf32>
    %246 = vector.extract_strided_slice %229 {offsets = [0, 16], sizes = [24, 16], strides = [1, 1]} : vector<24x96xf32> to vector<24x16xf32>
    %247 = vector.extract_strided_slice %229 {offsets = [0, 48], sizes = [24, 16], strides = [1, 1]} : vector<24x96xf32> to vector<24x16xf32>
    %248 = vector.extract_strided_slice %229 {offsets = [0, 80], sizes = [24, 16], strides = [1, 1]} : vector<24x96xf32> to vector<24x16xf32>
    %cst_95 = arith.constant dense<0.000000e+00> : vector<24x24xf32>
    %249 = tpu.matmul %246, %247, %cst_95 {dimension_numbers = #tpu.dot_dimension_numbers<[1], [1], [0], [0], [0, 0, 1, 0], [], []>} : vector<24x16xf32>, vector<24x16xf32>, vector<24x24xf32> -> vector<24x24xf32>
    %250 = arith.addf %249, %7 : vector<24x24xf32>
    %cst_96 = arith.constant dense<0xFF800000> : vector<24xf32>
    %251 = vector.multi_reduction <maximumf>, %250, %cst_96 [1] : vector<24x24xf32> to vector<24xf32>
    %252 = vector.shape_cast %251 : vector<24xf32> to vector<24x1xf32>
    %253 = vector.broadcast %252 : vector<24x1xf32> to vector<24x24xf32>
    %254 = arith.subf %250, %253 : vector<24x24xf32>
    %255 = math.exp %254 : vector<24x24xf32>
    %cst_97 = arith.constant dense<0.000000e+00> : vector<24xf32>
    %256 = vector.multi_reduction <add>, %255, %cst_97 [1] : vector<24x24xf32> to vector<24xf32>
    %257 = vector.shape_cast %256 : vector<24xf32> to vector<24x1xf32>
    %258 = tpu.reciprocal %257 {approx = true} : vector<24x1xf32> -> vector<24x1xf32>
    %259 = vector.broadcast %258 : vector<24x1xf32> to vector<24x24xf32>
    %260 = arith.mulf %255, %259 : vector<24x24xf32>
    %cst_98 = arith.constant dense<0.000000e+00> : vector<24x16xf32>
    %261 = tpu.matmul %260, %248, %cst_98 {dimension_numbers = #tpu.dot_dimension_numbers<[1], [0], [0], [1], [0, 0, 1, 1], [], []>} : vector<24x24xf32>, vector<24x16xf32>, vector<24x16xf32> -> vector<24x16xf32>
    %262 = tpu.concatenate %245, %261 in 1 : vector<24x16xf32>, vector<24x16xf32> -> vector<24x32xf32>
    %263 = tpu.concatenate %228, %262 in 0 : vector<24x32xf32>, vector<24x32xf32> -> vector<48x32xf32>
    %c1_99 = arith.constant 1 : index
    %c0_100 = arith.constant 0 : index
    %c0_101 = arith.constant 0 : index
    %264 = vector.load %arg4[%c1_99, %c0_100, %c0_101] : memref<2x32x32xf32, #tpu.memory_space<vmem>>, vector<1x32x32xf32>
    %265 = vector.shape_cast %264 : vector<1x32x32xf32> to vector<32x32xf32>
    %cst_102 = arith.constant dense<0.000000e+00> : vector<48x32xf32>
    %266 = tpu.matmul %263, %265, %cst_102 {dimension_numbers = #tpu.dot_dimension_numbers<[1], [0], [0], [1], [0, 0, 1, 1], [], []>} : vector<48x32xf32>, vector<32x32xf32>, vector<48x32xf32> -> vector<48x32xf32>
    %267 = arith.addf %165, %266 : vector<48x32xf32>
    %c1_103 = arith.constant 1 : index
    %c0_104 = arith.constant 0 : index
    %c0_105 = arith.constant 0 : index
    %268 = vector.load %arg5[%c1_103, %c0_104, %c0_105] : memref<2x1x32xf32, #tpu.memory_space<vmem>>, vector<1x1x32xf32>
    %269 = vector.shape_cast %268 : vector<1x1x32xf32> to vector<1x32xf32>
    %270 = vector.broadcast %269 : vector<1x32xf32> to vector<48x32xf32>
    %271 = arith.addf %267, %270 : vector<48x32xf32>
    %c1_106 = arith.constant 1 : index
    %c0_107 = arith.constant 0 : index
    %c0_108 = arith.constant 0 : index
    %272 = vector.load %arg6[%c1_106, %c0_107, %c0_108] : memref<2x1x32xf32, #tpu.memory_space<vmem>>, vector<1x1x32xf32>
    %273 = vector.shape_cast %272 : vector<1x1x32xf32> to vector<1x32xf32>
    %c1_109 = arith.constant 1 : index
    %c0_110 = arith.constant 0 : index
    %c0_111 = arith.constant 0 : index
    %274 = vector.load %arg7[%c1_109, %c0_110, %c0_111] : memref<2x1x32xf32, #tpu.memory_space<vmem>>, vector<1x1x32xf32>
    %275 = vector.shape_cast %274 : vector<1x1x32xf32> to vector<1x32xf32>
    %cst_112 = arith.constant dense<0.000000e+00> : vector<48xf32>
    %276 = vector.multi_reduction <add>, %271, %cst_112 [1] : vector<48x32xf32> to vector<48xf32>
    %277 = vector.shape_cast %276 : vector<48xf32> to vector<48x1xf32>
    %cst_113 = arith.constant 3.200000e+01 : f32
    %278 = vector.broadcast %cst_113 : f32 to vector<48x1xf32>
    %279 = arith.divf %277, %278 : vector<48x1xf32>
    %280 = vector.broadcast %279 : vector<48x1xf32> to vector<48x32xf32>
    %281 = arith.subf %271, %280 : vector<48x32xf32>
    %282 = arith.mulf %281, %281 : vector<48x32xf32>
    %cst_114 = arith.constant dense<0.000000e+00> : vector<48xf32>
    %283 = vector.multi_reduction <add>, %282, %cst_114 [1] : vector<48x32xf32> to vector<48xf32>
    %284 = vector.shape_cast %283 : vector<48xf32> to vector<48x1xf32>
    %cst_115 = arith.constant 3.200000e+01 : f32
    %285 = vector.broadcast %cst_115 : f32 to vector<48x1xf32>
    %286 = arith.divf %284, %285 : vector<48x1xf32>
    %287 = vector.broadcast %279 : vector<48x1xf32> to vector<48x32xf32>
    %288 = arith.subf %271, %287 : vector<48x32xf32>
    %cst_116 = arith.constant 9.99999974E-6 : f32
    %289 = vector.broadcast %cst_116 : f32 to vector<48x1xf32>
    %290 = arith.addf %286, %289 : vector<48x1xf32>
    %291 = math.rsqrt %290 : vector<48x1xf32>
    %292 = vector.broadcast %291 : vector<48x1xf32> to vector<48x32xf32>
    %293 = arith.mulf %288, %292 : vector<48x32xf32>
    %294 = vector.broadcast %273 : vector<1x32xf32> to vector<48x32xf32>
    %295 = arith.mulf %293, %294 : vector<48x32xf32>
    %296 = vector.broadcast %275 : vector<1x32xf32> to vector<48x32xf32>
    %297 = arith.addf %295, %296 : vector<48x32xf32>
    %c1_117 = arith.constant 1 : index
    %c0_118 = arith.constant 0 : index
    %c0_119 = arith.constant 0 : index
    %298 = vector.load %arg8[%c1_117, %c0_118, %c0_119] : memref<2x32x256xf32, #tpu.memory_space<vmem>>, vector<1x32x256xf32>
    %299 = vector.shape_cast %298 : vector<1x32x256xf32> to vector<32x256xf32>
    %cst_120 = arith.constant dense<0.000000e+00> : vector<48x256xf32>
    %300 = tpu.matmul %297, %299, %cst_120 {dimension_numbers = #tpu.dot_dimension_numbers<[1], [0], [0], [1], [0, 0, 1, 1], [], []>} : vector<48x32xf32>, vector<32x256xf32>, vector<48x256xf32> -> vector<48x256xf32>
    %c1_121 = arith.constant 1 : index
    %c0_122 = arith.constant 0 : index
    %c0_123 = arith.constant 0 : index
    %301 = vector.load %arg9[%c1_121, %c0_122, %c0_123] : memref<2x1x256xf32, #tpu.memory_space<vmem>>, vector<1x1x256xf32>
    %302 = vector.shape_cast %301 : vector<1x1x256xf32> to vector<1x256xf32>
    %303 = vector.broadcast %302 : vector<1x256xf32> to vector<48x256xf32>
    %304 = arith.addf %300, %303 : vector<48x256xf32>
    %305 = vector.extract_strided_slice %304 {offsets = [0, 0], sizes = [48, 128], strides = [1, 1]} : vector<48x256xf32> to vector<48x128xf32>
    %306 = vector.extract_strided_slice %304 {offsets = [0, 128], sizes = [48, 128], strides = [1, 1]} : vector<48x256xf32> to vector<48x128xf32>
    %cst_124 = arith.constant 5.000000e-01 : f32
    %307 = vector.broadcast %cst_124 : f32 to vector<48x128xf32>
    %308 = arith.mulf %307, %306 : vector<48x128xf32>
    %cst_125 = arith.constant 0.707106769 : f32
    %309 = vector.broadcast %cst_125 : f32 to vector<48x128xf32>
    %310 = arith.mulf %306, %309 : vector<48x128xf32>
    %311 = math.erf %310 : vector<48x128xf32>
    %cst_126 = arith.constant 1.000000e+00 : f32
    %312 = vector.broadcast %cst_126 : f32 to vector<48x128xf32>
    %313 = arith.addf %312, %311 : vector<48x128xf32>
    %314 = arith.mulf %308, %313 : vector<48x128xf32>
    %315 = arith.mulf %305, %314 : vector<48x128xf32>
    %c1_127 = arith.constant 1 : index
    %c0_128 = arith.constant 0 : index
    %c0_129 = arith.constant 0 : index
    %316 = vector.load %arg10[%c1_127, %c0_128, %c0_129] : memref<2x128x32xf32, #tpu.memory_space<vmem>>, vector<1x128x32xf32>
    %317 = vector.shape_cast %316 : vector<1x128x32xf32> to vector<128x32xf32>
    %cst_130 = arith.constant dense<0.000000e+00> : vector<48x32xf32>
    %318 = tpu.matmul %315, %317, %cst_130 {dimension_numbers = #tpu.dot_dimension_numbers<[1], [0], [0], [1], [0, 0, 1, 1], [], []>} : vector<48x128xf32>, vector<128x32xf32>, vector<48x32xf32> -> vector<48x32xf32>
    %319 = arith.addf %271, %318 : vector<48x32xf32>
    %c1_131 = arith.constant 1 : index
    %c0_132 = arith.constant 0 : index
    %c0_133 = arith.constant 0 : index
    %320 = vector.load %arg11[%c1_131, %c0_132, %c0_133] : memref<2x1x32xf32, #tpu.memory_space<vmem>>, vector<1x1x32xf32>
    %321 = vector.shape_cast %320 : vector<1x1x32xf32> to vector<1x32xf32>
    %322 = vector.broadcast %321 : vector<1x32xf32> to vector<48x32xf32>
    %323 = arith.addf %319, %322 : vector<48x32xf32>
    %cst_134 = arith.constant dense<0.000000e+00> : vector<48xf32>
    %324 = vector.multi_reduction <add>, %323, %cst_134 [1] : vector<48x32xf32> to vector<48xf32>
    %325 = vector.shape_cast %324 : vector<48xf32> to vector<48x1xf32>
    %cst_135 = arith.constant 3.200000e+01 : f32
    %326 = vector.broadcast %cst_135 : f32 to vector<48x1xf32>
    %327 = arith.divf %325, %326 : vector<48x1xf32>
    %328 = vector.broadcast %327 : vector<48x1xf32> to vector<48x32xf32>
    %329 = arith.subf %323, %328 : vector<48x32xf32>
    %330 = arith.mulf %329, %329 : vector<48x32xf32>
    %cst_136 = arith.constant dense<0.000000e+00> : vector<48xf32>
    %331 = vector.multi_reduction <add>, %330, %cst_136 [1] : vector<48x32xf32> to vector<48xf32>
    %332 = vector.shape_cast %331 : vector<48xf32> to vector<48x1xf32>
    %cst_137 = arith.constant 3.200000e+01 : f32
    %333 = vector.broadcast %cst_137 : f32 to vector<48x1xf32>
    %334 = arith.divf %332, %333 : vector<48x1xf32>
    %335 = vector.broadcast %327 : vector<48x1xf32> to vector<48x32xf32>
    %336 = arith.subf %323, %335 : vector<48x32xf32>
    %cst_138 = arith.constant 9.99999974E-6 : f32
    %337 = vector.broadcast %cst_138 : f32 to vector<48x1xf32>
    %338 = arith.addf %334, %337 : vector<48x1xf32>
    %339 = math.rsqrt %338 : vector<48x1xf32>
    %340 = vector.broadcast %339 : vector<48x1xf32> to vector<48x32xf32>
    %341 = arith.mulf %336, %340 : vector<48x32xf32>
    %c0_139 = arith.constant 0 : index
    %c0_140 = arith.constant 0 : index
    %342 = vector.load %arg12[%c0_139, %c0_140] : memref<32x128xf32, #tpu.memory_space<vmem>>, vector<32x128xf32>
    %cst_141 = arith.constant dense<0.000000e+00> : vector<48x128xf32>
    %343 = tpu.matmul %341, %342, %cst_141 {dimension_numbers = #tpu.dot_dimension_numbers<[1], [0], [0], [1], [0, 0, 1, 1], [], []>} : vector<48x32xf32>, vector<32x128xf32>, vector<48x128xf32> -> vector<48x128xf32>
    %c0_142 = arith.constant 0 : index
    %c0_143 = arith.constant 0 : index
    %344 = vector.load %arg13[%c0_142, %c0_143] : memref<1x128xf32, #tpu.memory_space<vmem>>, vector<1x128xf32>
    %345 = vector.broadcast %344 : vector<1x128xf32> to vector<48x128xf32>
    %346 = arith.addf %343, %345 : vector<48x128xf32>
    %347 = tpu.iota {dimensions = array<i32: 0>} : vector<24x128xi32>
    %348 = tpu.iota {dimensions = array<i32: 1>} : vector<24x128xi32>
    %c7_i32 = arith.constant 7 : i32
    %349 = vector.broadcast %c7_i32 : i32 to vector<24x128xi32>
    %350 = arith.cmpi sge, %347, %349 : vector<24x128xi32>
    %c24_i32 = arith.constant 24 : i32
    %351 = vector.broadcast %c24_i32 : i32 to vector<24x128xi32>
    %352 = arith.cmpi slt, %348, %351 : vector<24x128xi32>
    %353 = arith.andi %350, %352 : vector<24x128xi1>
    %c7_i32_144 = arith.constant 7 : i32
    %354 = vector.broadcast %c7_i32_144 : i32 to vector<24x128xi32>
    %355 = arith.cmpi slt, %347, %354 : vector<24x128xi32>
    %c24_i32_145 = arith.constant 24 : i32
    %356 = vector.broadcast %c24_i32_145 : i32 to vector<24x128xi32>
    %357 = arith.cmpi sge, %348, %356 : vector<24x128xi32>
    %358 = arith.andi %355, %357 : vector<24x128xi1>
    %359 = arith.ori %353, %358 : vector<24x128xi1>
    %c23_i32 = arith.constant 23 : i32
    %360 = vector.broadcast %c23_i32 : i32 to vector<24x128xi32>
    %361 = arith.cmpi ne, %347, %360 : vector<24x128xi32>
    %c40_i32 = arith.constant 40 : i32
    %362 = vector.broadcast %c40_i32 : i32 to vector<24x128xi32>
    %363 = arith.cmpi sge, %348, %362 : vector<24x128xi32>
    %364 = arith.andi %361, %363 : vector<24x128xi1>
    %365 = arith.ori %359, %364 : vector<24x128xi1>
    %c41_i32 = arith.constant 41 : i32
    %366 = vector.broadcast %c41_i32 : i32 to vector<24x128xi32>
    %367 = arith.cmpi sge, %348, %366 : vector<24x128xi32>
    %368 = arith.ori %365, %367 : vector<24x128xi1>
    %369 = tpu.concatenate %368, %368 in 0 : vector<24x128xi1>, vector<24x128xi1> -> vector<48x128xi1>
    %cst_146 = arith.constant -3.40282347E+38 : f32
    %370 = vector.broadcast %cst_146 : f32 to vector<48x128xf32>
    %371 = arith.select %369, %370, %346 : vector<48x128xi1>, vector<48x128xf32>
    %372 = vector.shape_cast %371 : vector<48x128xf32> to vector<2x24x128xf32>
    %c0_147 = arith.constant 0 : index
    %c0_148 = arith.constant 0 : index
    %c0_149 = arith.constant 0 : index
    %373 = vector.load %arg14[%c0_147, %c0_148, %c0_149] : memref<2x24x128xf32, #tpu.memory_space<vmem>>, vector<2x24x128xf32>
    tpu.vector_store %arg14[%c0_147, %c0_148, %c0_149], %372 {strides = array<i32>} : memref<2x24x128xf32, #tpu.memory_space<vmem>>, vector<2x24x128xf32>,
    return
  }
}

</mosaic_0001>

<llo_original>
// kernel: _dalle_forward.1
$region0: #{_dalle_forward.1}
  #allocation0 [shape = 'u32[]', space=smem, size = 0x4, offset = 0x4, fixed_abs, tag = 'smem constant byte address 0x4 - core index']
  #allocation1 [shape = 'u32[144,128]{1,0:T(1,128)}', space=vmem, size = 0x12000, scoped, tag = 'internal scratch']
  %s0 = inlined_call_operand.vmem [shape: f32[2,24,32], index: 0, kind: input, shape index: {}]
  %s1 = inlined_call_operand.vmem [shape: f32[2,1,32], index: 1, kind: input, shape index: {}]
  %s2 = inlined_call_operand.vmem [shape: f32[2,1,32], index: 2, kind: input, shape index: {}]
  %s3 = inlined_call_operand.vmem [shape: f32[2,32,96], index: 3, kind: input, shape index: {}]
  %s4 = inlined_call_operand.vmem [shape: f32[2,32,32], index: 4, kind: input, shape index: {}]
  %s5 = inlined_call_operand.vmem [shape: f32[2,1,32], index: 5, kind: input, shape index: {}]
  %s6 = inlined_call_operand.vmem [shape: f32[2,1,32], index: 6, kind: input, shape index: {}]
  %s7 = inlined_call_operand.vmem [shape: f32[2,1,32], index: 7, kind: input, shape index: {}]
  %s8 = inlined_call_operand.vmem [shape: f32[2,32,256], index: 8, kind: input, shape index: {}]
  %s9 = inlined_call_operand.vmem [shape: f32[2,1,256], index: 9, kind: input, shape index: {}]
  %s10 = inlined_call_operand.vmem [shape: f32[2,128,32], index: 10, kind: input, shape index: {}]
  %s11 = inlined_call_operand.vmem [shape: f32[2,1,32], index: 11, kind: input, shape index: {}]
  %s12 = inlined_call_operand.vmem [shape: f32[32,128], index: 12, kind: input, shape index: {}]
  %s13 = inlined_call_operand.vmem [shape: f32[1,128], index: 13, kind: input, shape index: {}]
  %s14 = inlined_call_operand.hbm [shape: f32[2,24,128], index: 14, kind: output, shape index: {}]
  %s15 = sld [smem:[#allocation0]]
  $region66: #{_dalle_forward.1} parent=0
    _
  %s17 = ssub.s32 1, %s15
  %s18 = scalar_select 0, %s17, %s15
  $region1: #{_dalle_forward.1} parent=0
    #allocation2 [shape = 'u8[24576]{0}', space=vmem, size = 0x6000, scoped, tag = 'output window, operand 0, single buffered']
    #allocation3 [shape = 's32[1]{0}', space=sflag, size = 0x4, scoped, tag = 'scoped memory for _dalle_forward.1']
    %19 = vsyncpa [#allocation3], 0
    // Predicated region
    $region2: #{_dalle_forward.1} parent=1 // pred_check
      _
    $region3: #{_dalle_forward.1} parent=1 // pred_check_branch
      %21 = sbr.rel (0) target = $region5
    $region4: #{_dalle_forward.1} parent=1 // pred_region
      _
    $region5: #{_dalle_forward.1} parent=1 // pred_fallthru
      _
    // Predicated region
    $region6: #{_dalle_forward.1} parent=1 // pred_check
      _
    $region7: #{_dalle_forward.1} parent=1 // pred_check_branch
      %23 = sbr.rel (0) target = $region9
    $region8: #{_dalle_forward.1} parent=1 // pred_region
      _
    $region9: #{_dalle_forward.1} parent=1 // pred_fallthru
      _
    // Predicated region
    $region10: #{_dalle_forward.1} parent=1 // pred_check
      _
    $region11: #{_dalle_forward.1} parent=1 // pred_check_branch
      %25 = sbr.rel (0) target = $region13
    $region12: #{_dalle_forward.1} parent=1 // pred_region
      _
    $region13: #{_dalle_forward.1} parent=1 // pred_fallthru
      _
    // Predicated region
    $region14: #{_dalle_forward.1} parent=1 // pred_check
      _
    $region15: #{_dalle_forward.1} parent=1 // pred_check_branch
      %27 = sbr.rel (0) target = $region17
    $region16: #{_dalle_forward.1} parent=1 // pred_region
      _
    $region17: #{_dalle_forward.1} parent=1 // pred_fallthru
      _
    // Predicated region
    $region18: #{_dalle_forward.1} parent=1 // pred_check
      _
    $region19: #{_dalle_forward.1} parent=1 // pred_check_branch
      %29 = sbr.rel (0) target = $region21
    $region20: #{_dalle_forward.1} parent=1 // pred_region
      _
    $region21: #{_dalle_forward.1} parent=1 // pred_fallthru
      _
    // Predicated region
    $region22: #{_dalle_forward.1} parent=1 // pred_check
      _
    $region23: #{_dalle_forward.1} parent=1 // pred_check_branch
      %31 = sbr.rel (0) target = $region25
    $region24: #{_dalle_forward.1} parent=1 // pred_region
      _
    $region25: #{_dalle_forward.1} parent=1 // pred_fallthru
      _
    // Predicated region
    $region26: #{_dalle_forward.1} parent=1 // pred_check
      _
    $region27: #{_dalle_forward.1} parent=1 // pred_check_branch
      %33 = sbr.rel (0) target = $region29
    $region28: #{_dalle_forward.1} parent=1 // pred_region
      _
    $region29: #{_dalle_forward.1} parent=1 // pred_fallthru
      _
    // Predicated region
    $region30: #{_dalle_forward.1} parent=1 // pred_check
      _
    $region31: #{_dalle_forward.1} parent=1 // pred_check_branch
      %35 = sbr.rel (0) target = $region33
    $region32: #{_dalle_forward.1} parent=1 // pred_region
      _
    $region33: #{_dalle_forward.1} parent=1 // pred_fallthru
      _
    // Predicated region
    $region34: #{_dalle_forward.1} parent=1 // pred_check
      _
    $region35: #{_dalle_forward.1} parent=1 // pred_check_branch
      %37 = sbr.rel (0) target = $region37
    $region36: #{_dalle_forward.1} parent=1 // pred_region
      _
    $region37: #{_dalle_forward.1} parent=1 // pred_fallthru
      _
    // Predicated region
    $region38: #{_dalle_forward.1} parent=1 // pred_check
      _
    $region39: #{_dalle_forward.1} parent=1 // pred_check_branch
      %39 = sbr.rel (0) target = $region41
    $region40: #{_dalle_forward.1} parent=1 // pred_region
      _
    $region41: #{_dalle_forward.1} parent=1 // pred_fallthru
      _
    // Predicated region
    $region42: #{_dalle_forward.1} parent=1 // pred_check
      _
    $region43: #{_dalle_forward.1} parent=1 // pred_check_branch
      %41 = sbr.rel (0) target = $region45
    $region44: #{_dalle_forward.1} parent=1 // pred_region
      _
    $region45: #{_dalle_forward.1} parent=1 // pred_fallthru
      _
    // Predicated region
    $region46: #{_dalle_forward.1} parent=1 // pred_check
      _
    $region47: #{_dalle_forward.1} parent=1 // pred_check_branch
      %43 = sbr.rel (0) target = $region49
    $region48: #{_dalle_forward.1} parent=1 // pred_region
      _
    $region49: #{_dalle_forward.1} parent=1 // pred_fallthru
      _
    // Predicated region
    $region50: #{_dalle_forward.1} parent=1 // pred_check
      _
    $region51: #{_dalle_forward.1} parent=1 // pred_check_branch
      %45 = sbr.rel (0) target = $region53
    $region52: #{_dalle_forward.1} parent=1 // pred_region
      _
    $region53: #{_dalle_forward.1} parent=1 // pred_fallthru
      _
    // Predicated region
    $region54: #{_dalle_forward.1} parent=1 // pred_check
      _
    $region55: #{_dalle_forward.1} parent=1 // pred_check_branch
      %47 = sbr.rel (0) target = $region57
    $region56: #{_dalle_forward.1} parent=1 // pred_region
      _
    $region57: #{_dalle_forward.1} parent=1 // pred_fallthru
      _
    %v48 = vld [vmem:[%s0] sm:$0xff]
    %v49 = vld [vmem:[%s0 + $0x8] sm:$0xff]
    %v50 = vld [vmem:[%s0 + $0x10] sm:$0xff]
    %v51 = vld [vmem:[%s0 + $0x18] sm:$0xff]
    %v52 = vld [vmem:[%s0 + $0x20] sm:$0xff]
    %v53 = vld [vmem:[%s0 + $0x28] sm:$0xff]
    %v54 = vlaneseq
    %v55 = vshrl.u32 %v54, 7
    %v56 = vadd.s32 %v55, 8
    %v57 = vadd.s32 %v55, 16
    %v58 = vlaneseq
    %v59 = vand.u32 %v58, 127
    %vm60 = vcmp.gt.s32.totalorder %v59, %v55
    %vm61 = vcmp.gt.s32.totalorder %v59, %v56
    %vm62 = vcmp.gt.s32.totalorder %v59, %v57
    %v63 = vsel %vm60, -1e+30, 0.0
    %v64 = vsel %vm61, -1e+30, 0.0
    %v65 = vsel %vm62, -1e+30, 0.0
    %v66 = vld [vmem:[%s1] sm:$0x1]
    %v67 = vld [vmem:[%s2] sm:$0x1]
    %vm68 = vcmask 261120
    %v69 = vsel %vm68, %v48, 0.0
    %70 = vadd.xlane.f32.xlu0 %v69
    %v71 = vpop.xlane.xlu0 %70
    %v72 = vsel %vm68, %v49, 0.0
    %73 = vadd.xlane.f32.xlu0 %v72
    %v74 = vpop.xlane.xlu0 %73
    %v75 = vsel %vm68, %v50, 0.0
    %76 = vadd.xlane.f32.xlu0 %v75
    %v77 = vpop.xlane.xlu0 %76
    %v78 = vsel %vm68, %v51, 0.0
    %79 = vadd.xlane.f32.xlu0 %v78
    %v80 = vpop.xlane.xlu0 %79
    %v81 = vsel %vm68, %v52, 0.0
    %82 = vadd.xlane.f32.xlu0 %v81
    %v83 = vpop.xlane.xlu0 %82
    %v84 = vsel %vm68, %v53, 0.0
    %85 = vadd.xlane.f32.xlu0 %v84
    %v86 = vpop.xlane.xlu0 %85
    %v87 = vrcp.pop 32.0
    %v88 = vmul.f32 %v71, %v87
    %v89 = vmul.f32 %v74, %v87
    %v90 = vmul.f32 %v77, %v87
    %v91 = vmul.f32 %v80, %v87
    %v92 = vmul.f32 %v83, %v87
    %v93 = vmul.f32 %v86, %v87
    %v94 = vsub.f32 %v48, %v88
    %v95 = vsub.f32 %v49, %v89
    %v96 = vsub.f32 %v50, %v90
    %v97 = vsub.f32 %v51, %v91
    %v98 = vsub.f32 %v52, %v92
    %v99 = vsub.f32 %v53, %v93
    %v100 = vmul.f32 %v94, %v94
    %v101 = vmul.f32 %v95, %v95
    %v102 = vmul.f32 %v96, %v96
    %v103 = vmul.f32 %v97, %v97
    %v104 = vmul.f32 %v98, %v98
    %v105 = vmul.f32 %v99, %v99
    %v106 = vsel %vm68, %v100, 0.0
    %107 = vadd.xlane.f32.xlu0 %v106
    %v108 = vpop.xlane.xlu0 %107
    %v109 = vsel %vm68, %v101, 0.0
    %110 = vadd.xlane.f32.xlu0 %v109
    %v111 = vpop.xlane.xlu0 %110
    %v112 = vsel %vm68, %v102, 0.0
    %113 = vadd.xlane.f32.xlu0 %v112
    %v114 = vpop.xlane.xlu0 %113
    %v115 = vsel %vm68, %v103, 0.0
    %116 = vadd.xlane.f32.xlu0 %v115
    %v117 = vpop.xlane.xlu0 %116
    %v118 = vsel %vm68, %v104, 0.0
    %119 = vadd.xlane.f32.xlu0 %v118
    %v120 = vpop.xlane.xlu0 %119
    %v121 = vsel %vm68, %v105, 0.0
    %122 = vadd.xlane.f32.xlu0 %v121
    %v123 = vpop.xlane.xlu0 %122
    %v124 = vmul.f32 %v108, %v87
    %v125 = vmul.f32 %v111, %v87
    %v126 = vmul.f32 %v114, %v87
    %v127 = vmul.f32 %v117, %v87
    %v128 = vmul.f32 %v120, %v87
    %v129 = vmul.f32 %v123, %v87
    %v130 = vadd.f32 %v124, 1e-05
    %v131 = vadd.f32 %v125, 1e-05
    %v132 = vadd.f32 %v126, 1e-05
    %v133 = vadd.f32 %v127, 1e-05
    %v134 = vadd.f32 %v128, 1e-05
    %v135 = vadd.f32 %v129, 1e-05
    %v136 = vrsqrt.pop %v130
    %v137 = vrsqrt.pop %v131
    %v138 = vrsqrt.pop %v132
    %v139 = vrsqrt.pop %v133
    %v140 = vrsqrt.pop %v134
    %v141 = vrsqrt.pop %v135
    %v142 = vmul.f32 %v94, %v136
    %v143 = vmul.f32 %v95, %v137
    %v144 = vmul.f32 %v96, %v138
    %v145 = vmul.f32 %v97, %v139
    %v146 = vmul.f32 %v98, %v140
    %v147 = vmul.f32 %v99, %v141
    %v149 = vlaneseq
    %v150 = vshrl.u32 %v149, 7
    %v151 = vsub.s32 0, %v150
    %v152 = vrot.slane %v66, %v151
    %v154 = vmul.f32 %v142, %v152
    %v155 = vmul.f32 %v143, %v152
    %v156 = vmul.f32 %v144, %v152
    %v157 = vmul.f32 %v145, %v152
    %v158 = vmul.f32 %v146, %v152
    %v159 = vmul.f32 %v147, %v152
    %v161 = vlaneseq
    %v162 = vshrl.u32 %v161, 7
    %v163 = vsub.s32 0, %v162
    %v164 = vrot.slane %v67, %v163
    %v166 = vadd.f32 %v154, %v164
    %v167 = vadd.f32 %v155, %v164
    %v168 = vadd.f32 %v156, %v164
    %v169 = vadd.f32 %v157, %v164
    %v170 = vadd.f32 %v158, %v164
    %v171 = vadd.f32 %v159, %v164
    %v172 = vld [vmem:[%s3] sm:$0xff]
    %v173 = vld [vmem:[%s3 + $0x8] sm:$0xff]
    %v174 = vld [vmem:[%s3 + $0x10] sm:$0xff]
    %v175 = vld [vmem:[%s3 + $0x18] sm:$0xff]
    %v177 = vsel %vm68, %v166, 0
    %v180 = vsel %vm68, %v167, 0
    %v183 = vsel %vm68, %v168, 0
    %v186 = vsel %vm68, %v169, 0
    %v189 = vsel %vm68, %v170, 0
    %v192 = vsel %vm68, %v171, 0
    %194 = vmatprep.subr.mxu0 0.0
    %195 = vmatpush1.msra.mxu0 0.0
    %196 = vmatprep.subr.mxu0 0.0
    %197 = vmatpush1.msra.mxu0 0.0
    %198 = vmatprep.subr.mxu0 0.0
    %199 = vmatpush1.msra.mxu0 0.0
    %200 = vmatprep.subr.mxu0 0.0
    %201 = vmatpush1.msra.mxu0 0.0
    %202 = vmatprep.subr.mxu0 0.0
    %203 = vmatpush1.msra.mxu0 0.0
    %204 = vmatprep.subr.mxu0 0.0
    %205 = vmatpush1.msra.mxu0 0.0
    %206 = vmatprep.subr.mxu0 0.0
    %207 = vmatpush1.msra.mxu0 0.0
    %208 = vmatprep.subr.mxu0 0.0
    %209 = vmatpush1.msra.mxu0 0.0
    %210 = vmatprep.subr.mxu0 0.0
    %211 = vmatpush1.msra.mxu0 0.0
    %212 = vmatprep.subr.mxu0 0.0
    %213 = vmatpush1.msra.mxu0 0.0
    %214 = vmatprep.subr.mxu0 0.0
    %215 = vmatpush1.msra.mxu0 0.0
    %216 = vmatprep.subr.mxu0 0.0
    %217 = vmatpush1.msra.mxu0 0.0
    %218 = vmatprep.subr.mxu0 0.0
    %219 = vmatpush1.msra.mxu0 %v175
    %220 = vmatprep.subr.mxu0 0.0
    %221 = vmatpush1.msra.mxu0 %v174
    %222 = vmatprep.subr.mxu0 0.0
    %223 = vmatpush1.msra.mxu0 %v173
    %224 = vmatprep.subr.mxu0 0.0
    %225 = vmatpush1.msra.mxu0 %v172
    %226 = vmatprep.subr.mxu0 0.0
    %227 = vmatpush2.msra.mxu0 0.0
    %228 = vmatprep.subr.mxu0 0.0
    %229 = vmatpush2.msra.mxu0 0.0
    %230 = vmatprep.subr.mxu0 0.0
    %231 = vmatpush2.msra.mxu0 0.0
    %232 = vmatprep.subr.mxu0 0.0
    %233 = vmatpush2.msra.mxu0 0.0
    %234 = vmatprep.subr.mxu0 0.0
    %235 = vmatpush2.msra.mxu0 0.0
    %236 = vmatprep.subr.mxu0 0.0
    %237 = vmatpush2.msra.mxu0 0.0
    %238 = vmatprep.subr.mxu0 0.0
    %239 = vmatpush2.msra.mxu0 0.0
    %240 = vmatprep.subr.mxu0 0.0
    %241 = vmatpush2.msra.mxu0 0.0
    %242 = vmatprep.subr.mxu0 0.0
    %243 = vmatpush2.msra.mxu0 0.0
    %244 = vmatprep.subr.mxu0 0.0
    %245 = vmatpush2.msra.mxu0 0.0
    %246 = vmatprep.subr.mxu0 0.0
    %247 = vmatpush2.msra.mxu0 0.0
    %248 = vmatprep.subr.mxu0 0.0
    %249 = vmatpush2.msra.mxu0 0.0
    %250 = vmatprep.subr.mxu0 0.0
    %251 = vmatpush2.msra.mxu0 0.0
    %252 = vmatprep.subr.mxu0 0.0
    %253 = vmatpush2.msra.mxu0 0.0
    %254 = vmatprep.subr.mxu0 0.0
    %255 = vmatpush2.msra.mxu0 0.0
    %256 = vmatprep.subr.mxu0 0.0
    %257 = vmatpush2.msra.mxu0 0.0
    %258 = vmatprep.mubr.f32.mxu0 0.0
    %259 = vmatmul.mubr.f32.gmra.mxu0 %v177
    %v260 = vpop.f32.mrf.mxu0
    %v261 = vadd.f32 0.0, %v260
    %v262 = vpop.f32.mrf.mxu0
    %263 = vmatprep.mubr.f32.mxu0 0.0
    %264 = vmatmul.mubr.f32.gmra.mxu0 %v180
    %v265 = vpop.f32.mrf.mxu0
    %v266 = vadd.f32 0.0, %v265
    %v267 = vpop.f32.mrf.mxu0
    %268 = vmatprep.mubr.f32.mxu0 0.0
    %269 = vmatmul.mubr.f32.gmra.mxu0 %v183
    %v270 = vpop.f32.mrf.mxu0
    %v271 = vadd.f32 0.0, %v270
    %v272 = vpop.f32.mrf.mxu0
    %273 = vmatprep.mubr.f32.mxu0 0.0
    %274 = vmatmul.mubr.f32.gmra.mxu0 %v186
    %v275 = vpop.f32.mrf.mxu0
    %v276 = vadd.f32 0.0, %v275
    %v277 = vpop.f32.mrf.mxu0
    %278 = vmatprep.mubr.f32.mxu0 0.0
    %279 = vmatmul.mubr.f32.gmra.mxu0 %v189
    %v280 = vpop.f32.mrf.mxu0
    %v281 = vadd.f32 0.0, %v280
    %v282 = vpop.f32.mrf.mxu0
    %283 = vmatprep.mubr.f32.mxu0 0.0
    %284 = vmatmul.mubr.f32.gmra.mxu0 %v192
    %v285 = vpop.f32.mrf.mxu0
    %v286 = vadd.f32 0.0, %v285
    %v287 = vpop.f32.mrf.mxu0
    %288 = vdwg.mxu0
    %292 = vrot.lane.b32.xlu0 %v261, 96
    %v293 = vpop.permute.xlu0 %292
    %294 = vrot.lane.b32.xlu0 %v266, 96
    %v295 = vpop.permute.xlu0 %294
    %296 = vrot.lane.b32.xlu0 %v271, 96
    %v297 = vpop.permute.xlu0 %296
    %vm298 = vcmask 130048
    %v299 = vsel %vm298, %v261, 0
    %v301 = vsel %vm298, %v266, 0
    %v303 = vsel %vm298, %v271, 0
    %v305 = vsel %vm298, %v293, 0
    %v307 = vsel %vm298, %v295, 0
    %v309 = vsel %vm298, %v297, 0
    %311 = vmatprep.subr.mxu0 0.0
    %312 = vmatpush1.xpose.msra.mxu0 0.0
    %313 = vmatprep.subr.mxu0 0.0
    %314 = vmatpush1.xpose.msra.mxu0 0.0
    %315 = vmatprep.subr.mxu0 0.0
    %316 = vmatpush1.xpose.msra.mxu0 0.0
    %317 = vmatprep.subr.mxu0 0.0
    %318 = vmatpush1.xpose.msra.mxu0 0.0
    %319 = vmatprep.subr.mxu0 0.0
    %320 = vmatpush1.xpose.msra.mxu0 0.0
    %321 = vmatprep.subr.mxu0 0.0
    %322 = vmatpush1.xpose.msra.mxu0 0.0
    %323 = vmatprep.subr.mxu0 0.0
    %324 = vmatpush1.xpose.msra.mxu0 0.0
    %325 = vmatprep.subr.mxu0 0.0
    %326 = vmatpush1.xpose.msra.mxu0 0.0
    %327 = vmatprep.subr.mxu0 0.0
    %328 = vmatpush1.xpose.msra.mxu0 0.0
    %329 = vmatprep.subr.mxu0 0.0
    %330 = vmatpush1.xpose.msra.mxu0 0.0
    %331 = vmatprep.subr.mxu0 0.0
    %332 = vmatpush1.xpose.msra.mxu0 0.0
    %333 = vmatprep.subr.mxu0 0.0
    %334 = vmatpush1.xpose.msra.mxu0 0.0
    %335 = vmatprep.subr.mxu0 0.0
    %336 = vmatpush1.xpose.msra.mxu0 0.0
    %337 = vmatprep.subr.mxu0 0.0
    %338 = vmatpush1.xpose.msra.mxu0 %v309
    %339 = vmatprep.subr.mxu0 0.0
    %340 = vmatpush1.xpose.msra.mxu0 %v307
    %341 = vmatprep.subr.mxu0 0.0
    %342 = vmatpush1.xpose.msra.mxu0 %v305
    %343 = vmatprep.subr.mxu0 0.0
    %344 = vmatpush2.xpose.msra.mxu0 0.0
    %345 = vmatprep.subr.mxu0 0.0
    %346 = vmatpush2.xpose.msra.mxu0 0.0
    %347 = vmatprep.subr.mxu0 0.0
    %348 = vmatpush2.xpose.msra.mxu0 0.0
    %349 = vmatprep.subr.mxu0 0.0
    %350 = vmatpush2.xpose.msra.mxu0 0.0
    %351 = vmatprep.subr.mxu0 0.0
    %352 = vmatpush2.xpose.msra.mxu0 0.0
    %353 = vmatprep.subr.mxu0 0.0
    %354 = vmatpush2.xpose.msra.mxu0 0.0
    %355 = vmatprep.subr.mxu0 0.0
    %356 = vmatpush2.xpose.msra.mxu0 0.0
    %357 = vmatprep.subr.mxu0 0.0
    %358 = vmatpush2.xpose.msra.mxu0 0.0
    %359 = vmatprep.subr.mxu0 0.0
    %360 = vmatpush2.xpose.msra.mxu0 0.0
    %361 = vmatprep.subr.mxu0 0.0
    %362 = vmatpush2.xpose.msra.mxu0 0.0
    %363 = vmatprep.subr.mxu0 0.0
    %364 = vmatpush2.xpose.msra.mxu0 0.0
    %365 = vmatprep.subr.mxu0 0.0
    %366 = vmatpush2.xpose.msra.mxu0 0.0
    %367 = vmatprep.subr.mxu0 0.0
    %368 = vmatpush2.xpose.msra.mxu0 0.0
    %369 = vmatprep.subr.mxu0 0.0
    %370 = vmatpush2.xpose.msra.mxu0 0.0
    %371 = vmatprep.subr.mxu0 0.0
    %372 = vmatpush2.xpose.msra.mxu0 0.0
    %373 = vmatprep.subr.mxu0 0.0
    %374 = vmatpush2.xpose.msra.mxu0 0.0
    %375 = vmatprep.mubr.f32.mxu0 0.0
    %376 = vmatmul.mubr.f32.gmra.mxu0 %v299
    %v377 = vpop.f32.mrf.mxu0
    %v378 = vadd.f32 %v63, %v377
    %v379 = vpop.f32.mrf.mxu0
    %380 = vmatprep.mubr.f32.mxu0 0.0
    %381 = vmatmul.mubr.f32.gmra.mxu0 %v301
    %v382 = vpop.f32.mrf.mxu0
    %v383 = vadd.f32 %v64, %v382
    %v384 = vpop.f32.mrf.mxu0
    %385 = vmatprep.mubr.f32.mxu0 0.0
    %386 = vmatmul.mubr.f32.gmra.mxu0 %v303
    %v387 = vpop.f32.mrf.mxu0
    %v388 = vadd.f32 %v65, %v387
    %v389 = vpop.f32.mrf.mxu0
    %390 = vdwg.mxu0
    %vm391 = vcmask 195584
    %v392 = vsel %vm391, %v378, -inf
    %393 = vmax.xlane.f32.xlu0 %v392
    %v394 = vpop.xlane.xlu0 %393
    %v395 = vsel %vm391, %v383, -inf
    %396 = vmax.xlane.f32.xlu0 %v395
    %v397 = vpop.xlane.xlu0 %396
    %v398 = vsel %vm391, %v388, -inf
    %399 = vmax.xlane.f32.xlu0 %v398
    %v400 = vpop.xlane.xlu0 %399
    %v401 = vsub.f32 %v378, %v394
    %v402 = vsub.f32 %v383, %v397
    %v403 = vsub.f32 %v388, %v400
    %v404 = vmul.f32 %v401, 1.442695
    %v405 = vpow.pop %v404
    %v406 = vmul.f32 %v402, 1.442695
    %v407 = vpow.pop %v406
    %v408 = vmul.f32 %v403, 1.442695
    %v409 = vpow.pop %v408
    %v410 = vsel %vm391, %v405, 0.0
    %411 = vadd.xlane.f32.xlu0 %v410
    %v412 = vpop.xlane.xlu0 %411
    %v413 = vsel %vm391, %v407, 0.0
    %414 = vadd.xlane.f32.xlu0 %v413
    %v415 = vpop.xlane.xlu0 %414
    %v416 = vsel %vm391, %v409, 0.0
    %417 = vadd.xlane.f32.xlu0 %v416
    %v418 = vpop.xlane.xlu0 %417
    %v419 = vrcp.pop %v412
    %v420 = vrcp.pop %v415
    %v421 = vrcp.pop %v418
    %v422 = vmul.f32 %v405, %v419
    %v423 = vmul.f32 %v407, %v420
    %v424 = vmul.f32 %v409, %v421
    %425 = vrot.lane.b32.xlu0 %v261, 64
    %v426 = vpop.permute.xlu0 %425
    %427 = vrot.lane.b32.xlu0 %v266, 64
    %v428 = vpop.permute.xlu0 %427
    %429 = vrot.lane.b32.xlu0 %v271, 64
    %v430 = vpop.permute.xlu0 %429
    %v435 = vsel %vm391, %v422, 0
    %v438 = vsel %vm391, %v423, 0
    %v441 = vsel %vm391, %v424, 0
    %443 = vmatprep.subr.mxu0 0.0
    %444 = vmatpush1.msra.mxu0 0.0
    %445 = vmatprep.subr.mxu0 0.0
    %446 = vmatpush1.msra.mxu0 0.0
    %447 = vmatprep.subr.mxu0 0.0
    %448 = vmatpush1.msra.mxu0 0.0
    %449 = vmatprep.subr.mxu0 0.0
    %450 = vmatpush1.msra.mxu0 0.0
    %451 = vmatprep.subr.mxu0 0.0
    %452 = vmatpush1.msra.mxu0 0.0
    %453 = vmatprep.subr.mxu0 0.0
    %454 = vmatpush1.msra.mxu0 0.0
    %455 = vmatprep.subr.mxu0 0.0
    %456 = vmatpush1.msra.mxu0 0.0
    %457 = vmatprep.subr.mxu0 0.0
    %458 = vmatpush1.msra.mxu0 0.0
    %459 = vmatprep.subr.mxu0 0.0
    %460 = vmatpush1.msra.mxu0 0.0
    %461 = vmatprep.subr.mxu0 0.0
    %462 = vmatpush1.msra.mxu0 0.0
    %463 = vmatprep.subr.mxu0 0.0
    %464 = vmatpush1.msra.mxu0 0.0
    %465 = vmatprep.subr.mxu0 0.0
    %466 = vmatpush1.msra.mxu0 0.0
    %467 = vmatprep.subr.mxu0 0.0
    %468 = vmatpush1.msra.mxu0 0.0
    %469 = vmatprep.subr.mxu0 0.0
    %470 = vmatpush1.msra.mxu0 %v430
    %471 = vmatprep.subr.mxu0 0.0
    %472 = vmatpush1.msra.mxu0 %v428
    %473 = vmatprep.subr.mxu0 0.0
    %474 = vmatpush1.msra.mxu0 %v426
    %475 = vmatprep.subr.mxu0 0.0
    %476 = vmatpush2.msra.mxu0 0.0
    %477 = vmatprep.subr.mxu0 0.0
    %478 = vmatpush2.msra.mxu0 0.0
    %479 = vmatprep.subr.mxu0 0.0
    %480 = vmatpush2.msra.mxu0 0.0
    %481 = vmatprep.subr.mxu0 0.0
    %482 = vmatpush2.msra.mxu0 0.0
    %483 = vmatprep.subr.mxu0 0.0
    %484 = vmatpush2.msra.mxu0 0.0
    %485 = vmatprep.subr.mxu0 0.0
    %486 = vmatpush2.msra.mxu0 0.0
    %487 = vmatprep.subr.mxu0 0.0
    %488 = vmatpush2.msra.mxu0 0.0
    %489 = vmatprep.subr.mxu0 0.0
    %490 = vmatpush2.msra.mxu0 0.0
    %491 = vmatprep.subr.mxu0 0.0
    %492 = vmatpush2.msra.mxu0 0.0
    %493 = vmatprep.subr.mxu0 0.0
    %494 = vmatpush2.msra.mxu0 0.0
    %495 = vmatprep.subr.mxu0 0.0
    %496 = vmatpush2.msra.mxu0 0.0
    %497 = vmatprep.subr.mxu0 0.0
    %498 = vmatpush2.msra.mxu0 0.0
    %499 = vmatprep.subr.mxu0 0.0
    %500 = vmatpush2.msra.mxu0 0.0
    %501 = vmatprep.subr.mxu0 0.0
    %502 = vmatpush2.msra.mxu0 0.0
    %503 = vmatprep.subr.mxu0 0.0
    %504 = vmatpush2.msra.mxu0 0.0
    %505 = vmatprep.subr.mxu0 0.0
    %506 = vmatpush2.msra.mxu0 0.0
    %507 = vmatprep.mubr.f32.mxu0 0.0
    %508 = vmatmul.mubr.f32.gmra.mxu0 %v435
    %v509 = vpop.f32.mrf.mxu0
    %v510 = vadd.f32 0.0, %v509
    %v511 = vpop.f32.mrf.mxu0
    %512 = vmatprep.mubr.f32.mxu0 0.0
    %513 = vmatmul.mubr.f32.gmra.mxu0 %v438
    %v514 = vpop.f32.mrf.mxu0
    %v515 = vadd.f32 0.0, %v514
    %v516 = vpop.f32.mrf.mxu0
    %517 = vmatprep.mubr.f32.mxu0 0.0
    %518 = vmatmul.mubr.f32.gmra.mxu0 %v441
    %v519 = vpop.f32.mrf.mxu0
    %v520 = vadd.f32 0.0, %v519
    %v521 = vpop.f32.mrf.mxu0
    %522 = vdwg.mxu0
    %523 = vrot.lane.b32.xlu0 %v261, 112
    %v524 = vpop.permute.xlu0 %523
    %525 = vrot.lane.b32.xlu0 %v266, 112
    %v526 = vpop.permute.xlu0 %525
    %527 = vrot.lane.b32.xlu0 %v271, 112
    %v528 = vpop.permute.xlu0 %527
    %529 = vrot.lane.b32.xlu0 %v261, 80
    %v530 = vpop.permute.xlu0 %529
    %531 = vrot.lane.b32.xlu0 %v266, 80
    %v532 = vpop.permute.xlu0 %531
    %533 = vrot.lane.b32.xlu0 %v271, 80
    %v534 = vpop.permute.xlu0 %533
    %v535 = vsel %vm298, %v524, 0
    %v537 = vsel %vm298, %v526, 0
    %v539 = vsel %vm298, %v528, 0
    %v541 = vsel %vm298, %v530, 0
    %v543 = vsel %vm298, %v532, 0
    %v545 = vsel %vm298, %v534, 0
    %547 = vmatprep.subr.mxu0 0.0
    %548 = vmatpush1.xpose.msra.mxu0 0.0
    %549 = vmatprep.subr.mxu0 0.0
    %550 = vmatpush1.xpose.msra.mxu0 0.0
    %551 = vmatprep.subr.mxu0 0.0
    %552 = vmatpush1.xpose.msra.mxu0 0.0
    %553 = vmatprep.subr.mxu0 0.0
    %554 = vmatpush1.xpose.msra.mxu0 0.0
    %555 = vmatprep.subr.mxu0 0.0
    %556 = vmatpush1.xpose.msra.mxu0 0.0
    %557 = vmatprep.subr.mxu0 0.0
    %558 = vmatpush1.xpose.msra.mxu0 0.0
    %559 = vmatprep.subr.mxu0 0.0
    %560 = vmatpush1.xpose.msra.mxu0 0.0
    %561 = vmatprep.subr.mxu0 0.0
    %562 = vmatpush1.xpose.msra.mxu0 0.0
    %563 = vmatprep.subr.mxu0 0.0
    %564 = vmatpush1.xpose.msra.mxu0 0.0
    %565 = vmatprep.subr.mxu0 0.0
    %566 = vmatpush1.xpose.msra.mxu0 0.0
    %567 = vmatprep.subr.mxu0 0.0
    %568 = vmatpush1.xpose.msra.mxu0 0.0
    %569 = vmatprep.subr.mxu0 0.0
    %570 = vmatpush1.xpose.msra.mxu0 0.0
    %571 = vmatprep.subr.mxu0 0.0
    %572 = vmatpush1.xpose.msra.mxu0 0.0
    %573 = vmatprep.subr.mxu0 0.0
    %574 = vmatpush1.xpose.msra.mxu0 %v545
    %575 = vmatprep.subr.mxu0 0.0
    %576 = vmatpush1.xpose.msra.mxu0 %v543
    %577 = vmatprep.subr.mxu0 0.0
    %578 = vmatpush1.xpose.msra.mxu0 %v541
    %579 = vmatprep.subr.mxu0 0.0
    %580 = vmatpush2.xpose.msra.mxu0 0.0
    %581 = vmatprep.subr.mxu0 0.0
    %582 = vmatpush2.xpose.msra.mxu0 0.0
    %583 = vmatprep.subr.mxu0 0.0
    %584 = vmatpush2.xpose.msra.mxu0 0.0
    %585 = vmatprep.subr.mxu0 0.0
    %586 = vmatpush2.xpose.msra.mxu0 0.0
    %587 = vmatprep.subr.mxu0 0.0
    %588 = vmatpush2.xpose.msra.mxu0 0.0
    %589 = vmatprep.subr.mxu0 0.0
    %590 = vmatpush2.xpose.msra.mxu0 0.0
    %591 = vmatprep.subr.mxu0 0.0
    %592 = vmatpush2.xpose.msra.mxu0 0.0
    %593 = vmatprep.subr.mxu0 0.0
    %594 = vmatpush2.xpose.msra.mxu0 0.0
    %595 = vmatprep.subr.mxu0 0.0
    %596 = vmatpush2.xpose.msra.mxu0 0.0
    %597 = vmatprep.subr.mxu0 0.0
    %598 = vmatpush2.xpose.msra.mxu0 0.0
    %599 = vmatprep.subr.mxu0 0.0
    %600 = vmatpush2.xpose.msra.mxu0 0.0
    %601 = vmatprep.subr.mxu0 0.0
    %602 = vmatpush2.xpose.msra.mxu0 0.0
    %603 = vmatprep.subr.mxu0 0.0
    %604 = vmatpush2.xpose.msra.mxu0 0.0
    %605 = vmatprep.subr.mxu0 0.0
    %606 = vmatpush2.xpose.msra.mxu0 0.0
    %607 = vmatprep.subr.mxu0 0.0
    %608 = vmatpush2.xpose.msra.mxu0 0.0
    %609 = vmatprep.subr.mxu0 0.0
    %610 = vmatpush2.xpose.msra.mxu0 0.0
    %611 = vmatprep.mubr.f32.mxu0 0.0
    %612 = vmatmul.mubr.f32.gmra.mxu0 %v535
    %v613 = vpop.f32.mrf.mxu0
    %v614 = vadd.f32 %v63, %v613
    %v615 = vpop.f32.mrf.mxu0
    %616 = vmatprep.mubr.f32.mxu0 0.0
    %617 = vmatmul.mubr.f32.gmra.mxu0 %v537
    %v618 = vpop.f32.mrf.mxu0
    %v619 = vadd.f32 %v64, %v618
    %v620 = vpop.f32.mrf.mxu0
    %621 = vmatprep.mubr.f32.mxu0 0.0
    %622 = vmatmul.mubr.f32.gmra.mxu0 %v539
    %v623 = vpop.f32.mrf.mxu0
    %v624 = vadd.f32 %v65, %v623
    %v625 = vpop.f32.mrf.mxu0
    %626 = vdwg.mxu0
    %v627 = vsel %vm391, %v614, -inf
    %628 = vmax.xlane.f32.xlu0 %v627
    %v629 = vpop.xlane.xlu0 %628
    %v630 = vsel %vm391, %v619, -inf
    %631 = vmax.xlane.f32.xlu0 %v630
    %v632 = vpop.xlane.xlu0 %631
    %v633 = vsel %vm391, %v624, -inf
    %634 = vmax.xlane.f32.xlu0 %v633
    %v635 = vpop.xlane.xlu0 %634
    %v636 = vsub.f32 %v614, %v629
    %v637 = vsub.f32 %v619, %v632
    %v638 = vsub.f32 %v624, %v635
    %v639 = vmul.f32 %v636, 1.442695
    %v640 = vpow.pop %v639
    %v641 = vmul.f32 %v637, 1.442695
    %v642 = vpow.pop %v641
    %v643 = vmul.f32 %v638, 1.442695
    %v644 = vpow.pop %v643
    %v645 = vsel %vm391, %v640, 0.0
    %646 = vadd.xlane.f32.xlu0 %v645
    %v647 = vpop.xlane.xlu0 %646
    %v648 = vsel %vm391, %v642, 0.0
    %649 = vadd.xlane.f32.xlu0 %v648
    %v650 = vpop.xlane.xlu0 %649
    %v651 = vsel %vm391, %v644, 0.0
    %652 = vadd.xlane.f32.xlu0 %v651
    %v653 = vpop.xlane.xlu0 %652
    %v654 = vrcp.pop %v647
    %v655 = vrcp.pop %v650
    %v656 = vrcp.pop %v653
    %v657 = vmul.f32 %v640, %v654
    %v658 = vmul.f32 %v642, %v655
    %v659 = vmul.f32 %v644, %v656
    %660 = vrot.lane.b32.xlu0 %v261, 48
    %v661 = vpop.permute.xlu0 %660
    %662 = vrot.lane.b32.xlu0 %v266, 48
    %v663 = vpop.permute.xlu0 %662
    %664 = vrot.lane.b32.xlu0 %v271, 48
    %v665 = vpop.permute.xlu0 %664
    %v670 = vsel %vm391, %v657, 0
    %v673 = vsel %vm391, %v658, 0
    %v676 = vsel %vm391, %v659, 0
    %678 = vmatprep.subr.mxu0 0.0
    %679 = vmatpush1.msra.mxu0 0.0
    %680 = vmatprep.subr.mxu0 0.0
    %681 = vmatpush1.msra.mxu0 0.0
    %682 = vmatprep.subr.mxu0 0.0
    %683 = vmatpush1.msra.mxu0 0.0
    %684 = vmatprep.subr.mxu0 0.0
    %685 = vmatpush1.msra.mxu0 0.0
    %686 = vmatprep.subr.mxu0 0.0
    %687 = vmatpush1.msra.mxu0 0.0
    %688 = vmatprep.subr.mxu0 0.0
    %689 = vmatpush1.msra.mxu0 0.0
    %690 = vmatprep.subr.mxu0 0.0
    %691 = vmatpush1.msra.mxu0 0.0
    %692 = vmatprep.subr.mxu0 0.0
    %693 = vmatpush1.msra.mxu0 0.0
    %694 = vmatprep.subr.mxu0 0.0
    %695 = vmatpush1.msra.mxu0 0.0
    %696 = vmatprep.subr.mxu0 0.0
    %697 = vmatpush1.msra.mxu0 0.0
    %698 = vmatprep.subr.mxu0 0.0
    %699 = vmatpush1.msra.mxu0 0.0
    %700 = vmatprep.subr.mxu0 0.0
    %701 = vmatpush1.msra.mxu0 0.0
    %702 = vmatprep.subr.mxu0 0.0
    %703 = vmatpush1.msra.mxu0 0.0
    %704 = vmatprep.subr.mxu0 0.0
    %705 = vmatpush1.msra.mxu0 %v665
    %706 = vmatprep.subr.mxu0 0.0
    %707 = vmatpush1.msra.mxu0 %v663
    %708 = vmatprep.subr.mxu0 0.0
    %709 = vmatpush1.msra.mxu0 %v661
    %710 = vmatprep.subr.mxu0 0.0
    %711 = vmatpush2.msra.mxu0 0.0
    %712 = vmatprep.subr.mxu0 0.0
    %713 = vmatpush2.msra.mxu0 0.0
    %714 = vmatprep.subr.mxu0 0.0
    %715 = vmatpush2.msra.mxu0 0.0
    %716 = vmatprep.subr.mxu0 0.0
    %717 = vmatpush2.msra.mxu0 0.0
    %718 = vmatprep.subr.mxu0 0.0
    %719 = vmatpush2.msra.mxu0 0.0
    %720 = vmatprep.subr.mxu0 0.0
    %721 = vmatpush2.msra.mxu0 0.0
    %722 = vmatprep.subr.mxu0 0.0
    %723 = vmatpush2.msra.mxu0 0.0
    %724 = vmatprep.subr.mxu0 0.0
    %725 = vmatpush2.msra.mxu0 0.0
    %726 = vmatprep.subr.mxu0 0.0
    %727 = vmatpush2.msra.mxu0 0.0
    %728 = vmatprep.subr.mxu0 0.0
    %729 = vmatpush2.msra.mxu0 0.0
    %730 = vmatprep.subr.mxu0 0.0
    %731 = vmatpush2.msra.mxu0 0.0
    %732 = vmatprep.subr.mxu0 0.0
    %733 = vmatpush2.msra.mxu0 0.0
    %734 = vmatprep.subr.mxu0 0.0
    %735 = vmatpush2.msra.mxu0 0.0
    %736 = vmatprep.subr.mxu0 0.0
    %737 = vmatpush2.msra.mxu0 0.0
    %738 = vmatprep.subr.mxu0 0.0
    %739 = vmatpush2.msra.mxu0 0.0
    %740 = vmatprep.subr.mxu0 0.0
    %741 = vmatpush2.msra.mxu0 0.0
    %742 = vmatprep.mubr.f32.mxu0 0.0
    %743 = vmatmul.mubr.f32.gmra.mxu0 %v670
    %v744 = vpop.f32.mrf.mxu0
    %v745 = vadd.f32 0.0, %v744
    %v746 = vpop.f32.mrf.mxu0
    %747 = vmatprep.mubr.f32.mxu0 0.0
    %748 = vmatmul.mubr.f32.gmra.mxu0 %v673
    %v749 = vpop.f32.mrf.mxu0
    %v750 = vadd.f32 0.0, %v749
    %v751 = vpop.f32.mrf.mxu0
    %752 = vmatprep.mubr.f32.mxu0 0.0
    %753 = vmatmul.mubr.f32.gmra.mxu0 %v676
    %v754 = vpop.f32.mrf.mxu0
    %v755 = vadd.f32 0.0, %v754
    %v756 = vpop.f32.mrf.mxu0
    %757 = vdwg.mxu0
    %761 = vrot.lane.b32.xlu0 %v745, 16
    %v762 = vpop.permute.xlu0 %761
    %763 = vrot.lane.b32.xlu0 %v750, 16
    %v764 = vpop.permute.xlu0 %763
    %765 = vrot.lane.b32.xlu0 %v755, 16
    %v766 = vpop.permute.xlu0 %765
    %v770 = vsel %vm298, %v510, %v762
    %v771 = vsel %vm298, %v515, %v764
    %v772 = vsel %vm298, %v520, %v766
    %776 = vrot.lane.b32.xlu0 %v276, 96
    %v777 = vpop.permute.xlu0 %776
    %778 = vrot.lane.b32.xlu0 %v281, 96
    %v779 = vpop.permute.xlu0 %778
    %780 = vrot.lane.b32.xlu0 %v286, 96
    %v781 = vpop.permute.xlu0 %780
    %v782 = vsel %vm298, %v276, 0
    %v784 = vsel %vm298, %v281, 0
    %v786 = vsel %vm298, %v286, 0
    %v788 = vsel %vm298, %v777, 0
    %v790 = vsel %vm298, %v779, 0
    %v792 = vsel %vm298, %v781, 0
    %794 = vmatprep.subr.mxu0 0.0
    %795 = vmatpush1.xpose.msra.mxu0 0.0
    %796 = vmatprep.subr.mxu0 0.0
    %797 = vmatpush1.xpose.msra.mxu0 0.0
    %798 = vmatprep.subr.mxu0 0.0
    %799 = vmatpush1.xpose.msra.mxu0 0.0
    %800 = vmatprep.subr.mxu0 0.0
    %801 = vmatpush1.xpose.msra.mxu0 0.0
    %802 = vmatprep.subr.mxu0 0.0
    %803 = vmatpush1.xpose.msra.mxu0 0.0
    %804 = vmatprep.subr.mxu0 0.0
    %805 = vmatpush1.xpose.msra.mxu0 0.0
    %806 = vmatprep.subr.mxu0 0.0
    %807 = vmatpush1.xpose.msra.mxu0 0.0
    %808 = vmatprep.subr.mxu0 0.0
    %809 = vmatpush1.xpose.msra.mxu0 0.0
    %810 = vmatprep.subr.mxu0 0.0
    %811 = vmatpush1.xpose.msra.mxu0 0.0
    %812 = vmatprep.subr.mxu0 0.0
    %813 = vmatpush1.xpose.msra.mxu0 0.0
    %814 = vmatprep.subr.mxu0 0.0
    %815 = vmatpush1.xpose.msra.mxu0 0.0
    %816 = vmatprep.subr.mxu0 0.0
    %817 = vmatpush1.xpose.msra.mxu0 0.0
    %818 = vmatprep.subr.mxu0 0.0
    %819 = vmatpush1.xpose.msra.mxu0 0.0
    %820 = vmatprep.subr.mxu0 0.0
    %821 = vmatpush1.xpose.msra.mxu0 %v792
    %822 = vmatprep.subr.mxu0 0.0
    %823 = vmatpush1.xpose.msra.mxu0 %v790
    %824 = vmatprep.subr.mxu0 0.0
    %825 = vmatpush1.xpose.msra.mxu0 %v788
    %826 = vmatprep.subr.mxu0 0.0
    %827 = vmatpush2.xpose.msra.mxu0 0.0
    %828 = vmatprep.subr.mxu0 0.0
    %829 = vmatpush2.xpose.msra.mxu0 0.0
    %830 = vmatprep.subr.mxu0 0.0
    %831 = vmatpush2.xpose.msra.mxu0 0.0
    %832 = vmatprep.subr.mxu0 0.0
    %833 = vmatpush2.xpose.msra.mxu0 0.0
    %834 = vmatprep.subr.mxu0 0.0
    %835 = vmatpush2.xpose.msra.mxu0 0.0
    %836 = vmatprep.subr.mxu0 0.0
    %837 = vmatpush2.xpose.msra.mxu0 0.0
    %838 = vmatprep.subr.mxu0 0.0
    %839 = vmatpush2.xpose.msra.mxu0 0.0
    %840 = vmatprep.subr.mxu0 0.0
    %841 = vmatpush2.xpose.msra.mxu0 0.0
    %842 = vmatprep.subr.mxu0 0.0
    %843 = vmatpush2.xpose.msra.mxu0 0.0
    %844 = vmatprep.subr.mxu0 0.0
    %845 = vmatpush2.xpose.msra.mxu0 0.0
    %846 = vmatprep.subr.mxu0 0.0
    %847 = vmatpush2.xpose.msra.mxu0 0.0
    %848 = vmatprep.subr.mxu0 0.0
    %849 = vmatpush2.xpose.msra.mxu0 0.0
    %850 = vmatprep.subr.mxu0 0.0
    %851 = vmatpush2.xpose.msra.mxu0 0.0
    %852 = vmatprep.subr.mxu0 0.0
    %853 = vmatpush2.xpose.msra.mxu0 0.0
    %854 = vmatprep.subr.mxu0 0.0
    %855 = vmatpush2.xpose.msra.mxu0 0.0
    %856 = vmatprep.subr.mxu0 0.0
    %857 = vmatpush2.xpose.msra.mxu0 0.0
    %858 = vmatprep.mubr.f32.mxu0 0.0
    %859 = vmatmul.mubr.f32.gmra.mxu0 %v782
    %v860 = vpop.f32.mrf.mxu0
    %v861 = vadd.f32 %v63, %v860
    %v862 = vpop.f32.mrf.mxu0
    %863 = vmatprep.mubr.f32.mxu0 0.0
    %864 = vmatmul.mubr.f32.gmra.mxu0 %v784
    %v865 = vpop.f32.mrf.mxu0
    %v866 = vadd.f32 %v64, %v865
    %v867 = vpop.f32.mrf.mxu0
    %868 = vmatprep.mubr.f32.mxu0 0.0
    %869 = vmatmul.mubr.f32.gmra.mxu0 %v786
    %v870 = vpop.f32.mrf.mxu0
    %v871 = vadd.f32 %v65, %v870
    %v872 = vpop.f32.mrf.mxu0
    %873 = vdwg.mxu0
    %v874 = vsel %vm391, %v861, -inf
    %875 = vmax.xlane.f32.xlu0 %v874
    %v876 = vpop.xlane.xlu0 %875
    %v877 = vsel %vm391, %v866, -inf
    %878 = vmax.xlane.f32.xlu0 %v877
    %v879 = vpop.xlane.xlu0 %878
    %v880 = vsel %vm391, %v871, -inf
    %881 = vmax.xlane.f32.xlu0 %v880
    %v882 = vpop.xlane.xlu0 %881
    %v883 = vsub.f32 %v861, %v876
    %v884 = vsub.f32 %v866, %v879
    %v885 = vsub.f32 %v871, %v882
    %v886 = vmul.f32 %v883, 1.442695
    %v887 = vpow.pop %v886
    %v888 = vmul.f32 %v884, 1.442695
    %v889 = vpow.pop %v888
    %v890 = vmul.f32 %v885, 1.442695
    %v891 = vpow.pop %v890
    %v892 = vsel %vm391, %v887, 0.0
    %893 = vadd.xlane.f32.xlu0 %v892
    %v894 = vpop.xlane.xlu0 %893
    %v895 = vsel %vm391, %v889, 0.0
    %896 = vadd.xlane.f32.xlu0 %v895
    %v897 = vpop.xlane.xlu0 %896
    %v898 = vsel %vm391, %v891, 0.0
    %899 = vadd.xlane.f32.xlu0 %v898
    %v900 = vpop.xlane.xlu0 %899
    %v901 = vrcp.pop %v894
    %v902 = vrcp.pop %v897
    %v903 = vrcp.pop %v900
    %v904 = vmul.f32 %v887, %v901
    %v905 = vmul.f32 %v889, %v902
    %v906 = vmul.f32 %v891, %v903
    %907 = vrot.lane.b32.xlu0 %v276, 64
    %v908 = vpop.permute.xlu0 %907
    %909 = vrot.lane.b32.xlu0 %v281, 64
    %v910 = vpop.permute.xlu0 %909
    %911 = vrot.lane.b32.xlu0 %v286, 64
    %v912 = vpop.permute.xlu0 %911
    %v917 = vsel %vm391, %v904, 0
    %v920 = vsel %vm391, %v905, 0
    %v923 = vsel %vm391, %v906, 0
    %925 = vmatprep.subr.mxu0 0.0
    %926 = vmatpush1.msra.mxu0 0.0
    %927 = vmatprep.subr.mxu0 0.0
    %928 = vmatpush1.msra.mxu0 0.0
    %929 = vmatprep.subr.mxu0 0.0
    %930 = vmatpush1.msra.mxu0 0.0
    %931 = vmatprep.subr.mxu0 0.0
    %932 = vmatpush1.msra.mxu0 0.0
    %933 = vmatprep.subr.mxu0 0.0
    %934 = vmatpush1.msra.mxu0 0.0
    %935 = vmatprep.subr.mxu0 0.0
    %936 = vmatpush1.msra.mxu0 0.0
    %937 = vmatprep.subr.mxu0 0.0
    %938 = vmatpush1.msra.mxu0 0.0
    %939 = vmatprep.subr.mxu0 0.0
    %940 = vmatpush1.msra.mxu0 0.0
    %941 = vmatprep.subr.mxu0 0.0
    %942 = vmatpush1.msra.mxu0 0.0
    %943 = vmatprep.subr.mxu0 0.0
    %944 = vmatpush1.msra.mxu0 0.0
    %945 = vmatprep.subr.mxu0 0.0
    %946 = vmatpush1.msra.mxu0 0.0
    %947 = vmatprep.subr.mxu0 0.0
    %948 = vmatpush1.msra.mxu0 0.0
    %949 = vmatprep.subr.mxu0 0.0
    %950 = vmatpush1.msra.mxu0 0.0
    %951 = vmatprep.subr.mxu0 0.0
    %952 = vmatpush1.msra.mxu0 %v912
    %953 = vmatprep.subr.mxu0 0.0
    %954 = vmatpush1.msra.mxu0 %v910
    %955 = vmatprep.subr.mxu0 0.0
    %956 = vmatpush1.msra.mxu0 %v908
    %957 = vmatprep.subr.mxu0 0.0
    %958 = vmatpush2.msra.mxu0 0.0
    %959 = vmatprep.subr.mxu0 0.0
    %960 = vmatpush2.msra.mxu0 0.0
    %961 = vmatprep.subr.mxu0 0.0
    %962 = vmatpush2.msra.mxu0 0.0
    %963 = vmatprep.subr.mxu0 0.0
    %964 = vmatpush2.msra.mxu0 0.0
    %965 = vmatprep.subr.mxu0 0.0
    %966 = vmatpush2.msra.mxu0 0.0
    %967 = vmatprep.subr.mxu0 0.0
    %968 = vmatpush2.msra.mxu0 0.0
    %969 = vmatprep.subr.mxu0 0.0
    %970 = vmatpush2.msra.mxu0 0.0
    %971 = vmatprep.subr.mxu0 0.0
    %972 = vmatpush2.msra.mxu0 0.0
    %973 = vmatprep.subr.mxu0 0.0
    %974 = vmatpush2.msra.mxu0 0.0
    %975 = vmatprep.subr.mxu0 0.0
    %976 = vmatpush2.msra.mxu0 0.0
    %977 = vmatprep.subr.mxu0 0.0
    %978 = vmatpush2.msra.mxu0 0.0
    %979 = vmatprep.subr.mxu0 0.0
    %980 = vmatpush2.msra.mxu0 0.0
    %981 = vmatprep.subr.mxu0 0.0
    %982 = vmatpush2.msra.mxu0 0.0
    %983 = vmatprep.subr.mxu0 0.0
    %984 = vmatpush2.msra.mxu0 0.0
    %985 = vmatprep.subr.mxu0 0.0
    %986 = vmatpush2.msra.mxu0 0.0
    %987 = vmatprep.subr.mxu0 0.0
    %988 = vmatpush2.msra.mxu0 0.0
    %989 = vmatprep.mubr.f32.mxu0 0.0
    %990 = vmatmul.mubr.f32.gmra.mxu0 %v917
    %v991 = vpop.f32.mrf.mxu0
    %v992 = vadd.f32 0.0, %v991
    %v993 = vpop.f32.mrf.mxu0
    %994 = vmatprep.mubr.f32.mxu0 0.0
    %995 = vmatmul.mubr.f32.gmra.mxu0 %v920
    %v996 = vpop.f32.mrf.mxu0
    %v997 = vadd.f32 0.0, %v996
    %v998 = vpop.f32.mrf.mxu0
    %999 = vmatprep.mubr.f32.mxu0 0.0
    %1000 = vmatmul.mubr.f32.gmra.mxu0 %v923
    %v1001 = vpop.f32.mrf.mxu0
    %v1002 = vadd.f32 0.0, %v1001
    %v1003 = vpop.f32.mrf.mxu0
    %1004 = vdwg.mxu0
    %1005 = vrot.lane.b32.xlu0 %v276, 112
    %v1006 = vpop.permute.xlu0 %1005
    %1007 = vrot.lane.b32.xlu0 %v281, 112
    %v1008 = vpop.permute.xlu0 %1007
    %1009 = vrot.lane.b32.xlu0 %v286, 112
    %v1010 = vpop.permute.xlu0 %1009
    %1011 = vrot.lane.b32.xlu0 %v276, 80
    %v1012 = vpop.permute.xlu0 %1011
    %1013 = vrot.lane.b32.xlu0 %v281, 80
    %v1014 = vpop.permute.xlu0 %1013
    %1015 = vrot.lane.b32.xlu0 %v286, 80
    %v1016 = vpop.permute.xlu0 %1015
    %v1017 = vsel %vm298, %v1006, 0
    %v1019 = vsel %vm298, %v1008, 0
    %v1021 = vsel %vm298, %v1010, 0
    %v1023 = vsel %vm298, %v1012, 0
    %v1025 = vsel %vm298, %v1014, 0
    %v1027 = vsel %vm298, %v1016, 0
    %1029 = vmatprep.subr.mxu0 0.0
    %1030 = vmatpush1.xpose.msra.mxu0 0.0
    %1031 = vmatprep.subr.mxu0 0.0
    %1032 = vmatpush1.xpose.msra.mxu0 0.0
    %1033 = vmatprep.subr.mxu0 0.0
    %1034 = vmatpush1.xpose.msra.mxu0 0.0
    %1035 = vmatprep.subr.mxu0 0.0
    %1036 = vmatpush1.xpose.msra.mxu0 0.0
    %1037 = vmatprep.subr.mxu0 0.0
    %1038 = vmatpush1.xpose.msra.mxu0 0.0
    %1039 = vmatprep.subr.mxu0 0.0
    %1040 = vmatpush1.xpose.msra.mxu0 0.0
    %1041 = vmatprep.subr.mxu0 0.0
    %1042 = vmatpush1.xpose.msra.mxu0 0.0
    %1043 = vmatprep.subr.mxu0 0.0
    %1044 = vmatpush1.xpose.msra.mxu0 0.0
    %1045 = vmatprep.subr.mxu0 0.0
    %1046 = vmatpush1.xpose.msra.mxu0 0.0
    %1047 = vmatprep.subr.mxu0 0.0
    %1048 = vmatpush1.xpose.msra.mxu0 0.0
    %1049 = vmatprep.subr.mxu0 0.0
    %1050 = vmatpush1.xpose.msra.mxu0 0.0
    %1051 = vmatprep.subr.mxu0 0.0
    %1052 = vmatpush1.xpose.msra.mxu0 0.0
    %1053 = vmatprep.subr.mxu0 0.0
    %1054 = vmatpush1.xpose.msra.mxu0 0.0
    %1055 = vmatprep.subr.mxu0 0.0
    %1056 = vmatpush1.xpose.msra.mxu0 %v1027
    %1057 = vmatprep.subr.mxu0 0.0
    %1058 = vmatpush1.xpose.msra.mxu0 %v1025
    %1059 = vmatprep.subr.mxu0 0.0
    %1060 = vmatpush1.xpose.msra.mxu0 %v1023
    %1061 = vmatprep.subr.mxu0 0.0
    %1062 = vmatpush2.xpose.msra.mxu0 0.0
    %1063 = vmatprep.subr.mxu0 0.0
    %1064 = vmatpush2.xpose.msra.mxu0 0.0
    %1065 = vmatprep.subr.mxu0 0.0
    %1066 = vmatpush2.xpose.msra.mxu0 0.0
    %1067 = vmatprep.subr.mxu0 0.0
    %1068 = vmatpush2.xpose.msra.mxu0 0.0
    %1069 = vmatprep.subr.mxu0 0.0
    %1070 = vmatpush2.xpose.msra.mxu0 0.0
    %1071 = vmatprep.subr.mxu0 0.0
    %1072 = vmatpush2.xpose.msra.mxu0 0.0
    %1073 = vmatprep.subr.mxu0 0.0
    %1074 = vmatpush2.xpose.msra.mxu0 0.0
    %1075 = vmatprep.subr.mxu0 0.0
    %1076 = vmatpush2.xpose.msra.mxu0 0.0
    %1077 = vmatprep.subr.mxu0 0.0
    %1078 = vmatpush2.xpose.msra.mxu0 0.0
    %1079 = vmatprep.subr.mxu0 0.0
    %1080 = vmatpush2.xpose.msra.mxu0 0.0
    %1081 = vmatprep.subr.mxu0 0.0
    %1082 = vmatpush2.xpose.msra.mxu0 0.0
    %1083 = vmatprep.subr.mxu0 0.0
    %1084 = vmatpush2.xpose.msra.mxu0 0.0
    %1085 = vmatprep.subr.mxu0 0.0
    %1086 = vmatpush2.xpose.msra.mxu0 0.0
    %1087 = vmatprep.subr.mxu0 0.0
    %1088 = vmatpush2.xpose.msra.mxu0 0.0
    %1089 = vmatprep.subr.mxu0 0.0
    %1090 = vmatpush2.xpose.msra.mxu0 0.0
    %1091 = vmatprep.subr.mxu0 0.0
    %1092 = vmatpush2.xpose.msra.mxu0 0.0
    %1093 = vmatprep.mubr.f32.mxu0 0.0
    %1094 = vmatmul.mubr.f32.gmra.mxu0 %v1017
    %v1095 = vpop.f32.mrf.mxu0
    %v1096 = vadd.f32 %v63, %v1095
    %v1097 = vpop.f32.mrf.mxu0
    %1098 = vmatprep.mubr.f32.mxu0 0.0
    %1099 = vmatmul.mubr.f32.gmra.mxu0 %v1019
    %v1100 = vpop.f32.mrf.mxu0
    %v1101 = vadd.f32 %v64, %v1100
    %v1102 = vpop.f32.mrf.mxu0
    %1103 = vmatprep.mubr.f32.mxu0 0.0
    %1104 = vmatmul.mubr.f32.gmra.mxu0 %v1021
    %v1105 = vpop.f32.mrf.mxu0
    %v1106 = vadd.f32 %v65, %v1105
    %v1107 = vpop.f32.mrf.mxu0
    %1108 = vdwg.mxu0
    %v1109 = vsel %vm391, %v1096, -inf
    %1110 = vmax.xlane.f32.xlu0 %v1109
    %v1111 = vpop.xlane.xlu0 %1110
    %v1112 = vsel %vm391, %v1101, -inf
    %1113 = vmax.xlane.f32.xlu0 %v1112
    %v1114 = vpop.xlane.xlu0 %1113
    %v1115 = vsel %vm391, %v1106, -inf
    %1116 = vmax.xlane.f32.xlu0 %v1115
    %v1117 = vpop.xlane.xlu0 %1116
    %v1118 = vsub.f32 %v1096, %v1111
    %v1119 = vsub.f32 %v1101, %v1114
    %v1120 = vsub.f32 %v1106, %v1117
    %v1121 = vmul.f32 %v1118, 1.442695
    %v1122 = vpow.pop %v1121
    %v1123 = vmul.f32 %v1119, 1.442695
    %v1124 = vpow.pop %v1123
    %v1125 = vmul.f32 %v1120, 1.442695
    %v1126 = vpow.pop %v1125
    %v1127 = vsel %vm391, %v1122, 0.0
    %1128 = vadd.xlane.f32.xlu0 %v1127
    %v1129 = vpop.xlane.xlu0 %1128
    %v1130 = vsel %vm391, %v1124, 0.0
    %1131 = vadd.xlane.f32.xlu0 %v1130
    %v1132 = vpop.xlane.xlu0 %1131
    %v1133 = vsel %vm391, %v1126, 0.0
    %1134 = vadd.xlane.f32.xlu0 %v1133
    %v1135 = vpop.xlane.xlu0 %1134
    %v1136 = vrcp.pop %v1129
    %v1137 = vrcp.pop %v1132
    %v1138 = vrcp.pop %v1135
    %v1139 = vmul.f32 %v1122, %v1136
    %v1140 = vmul.f32 %v1124, %v1137
    %v1141 = vmul.f32 %v1126, %v1138
    %1142 = vrot.lane.b32.xlu0 %v276, 48
    %v1143 = vpop.permute.xlu0 %1142
    %1144 = vrot.lane.b32.xlu0 %v281, 48
    %v1145 = vpop.permute.xlu0 %1144
    %1146 = vrot.lane.b32.xlu0 %v286, 48
    %v1147 = vpop.permute.xlu0 %1146
    %v1152 = vsel %vm391, %v1139, 0
    %v1155 = vsel %vm391, %v1140, 0
    %v1158 = vsel %vm391, %v1141, 0
    %1160 = vmatprep.subr.mxu0 0.0
    %1161 = vmatpush1.msra.mxu0 0.0
    %1162 = vmatprep.subr.mxu0 0.0
    %1163 = vmatpush1.msra.mxu0 0.0
    %1164 = vmatprep.subr.mxu0 0.0
    %1165 = vmatpush1.msra.mxu0 0.0
    %1166 = vmatprep.subr.mxu0 0.0
    %1167 = vmatpush1.msra.mxu0 0.0
    %1168 = vmatprep.subr.mxu0 0.0
    %1169 = vmatpush1.msra.mxu0 0.0
    %1170 = vmatprep.subr.mxu0 0.0
    %1171 = vmatpush1.msra.mxu0 0.0
    %1172 = vmatprep.subr.mxu0 0.0
    %1173 = vmatpush1.msra.mxu0 0.0
    %1174 = vmatprep.subr.mxu0 0.0
    %1175 = vmatpush1.msra.mxu0 0.0
    %1176 = vmatprep.subr.mxu0 0.0
    %1177 = vmatpush1.msra.mxu0 0.0
    %1178 = vmatprep.subr.mxu0 0.0
    %1179 = vmatpush1.msra.mxu0 0.0
    %1180 = vmatprep.subr.mxu0 0.0
    %1181 = vmatpush1.msra.mxu0 0.0
    %1182 = vmatprep.subr.mxu0 0.0
    %1183 = vmatpush1.msra.mxu0 0.0
    %1184 = vmatprep.subr.mxu0 0.0
    %1185 = vmatpush1.msra.mxu0 0.0
    %1186 = vmatprep.subr.mxu0 0.0
    %1187 = vmatpush1.msra.mxu0 %v1147
    %1188 = vmatprep.subr.mxu0 0.0
    %1189 = vmatpush1.msra.mxu0 %v1145
    %1190 = vmatprep.subr.mxu0 0.0
    %1191 = vmatpush1.msra.mxu0 %v1143
    %1192 = vmatprep.subr.mxu0 0.0
    %1193 = vmatpush2.msra.mxu0 0.0
    %1194 = vmatprep.subr.mxu0 0.0
    %1195 = vmatpush2.msra.mxu0 0.0
    %1196 = vmatprep.subr.mxu0 0.0
    %1197 = vmatpush2.msra.mxu0 0.0
    %1198 = vmatprep.subr.mxu0 0.0
    %1199 = vmatpush2.msra.mxu0 0.0
    %1200 = vmatprep.subr.mxu0 0.0
    %1201 = vmatpush2.msra.mxu0 0.0
    %1202 = vmatprep.subr.mxu0 0.0
    %1203 = vmatpush2.msra.mxu0 0.0
    %1204 = vmatprep.subr.mxu0 0.0
    %1205 = vmatpush2.msra.mxu0 0.0
    %1206 = vmatprep.subr.mxu0 0.0
    %1207 = vmatpush2.msra.mxu0 0.0
    %1208 = vmatprep.subr.mxu0 0.0
    %1209 = vmatpush2.msra.mxu0 0.0
    %1210 = vmatprep.subr.mxu0 0.0
    %1211 = vmatpush2.msra.mxu0 0.0
    %1212 = vmatprep.subr.mxu0 0.0
    %1213 = vmatpush2.msra.mxu0 0.0
    %1214 = vmatprep.subr.mxu0 0.0
    %1215 = vmatpush2.msra.mxu0 0.0
    %1216 = vmatprep.subr.mxu0 0.0
    %1217 = vmatpush2.msra.mxu0 0.0
    %1218 = vmatprep.subr.mxu0 0.0
    %1219 = vmatpush2.msra.mxu0 0.0
    %1220 = vmatprep.subr.mxu0 0.0
    %1221 = vmatpush2.msra.mxu0 0.0
    %1222 = vmatprep.subr.mxu0 0.0
    %1223 = vmatpush2.msra.mxu0 0.0
    %1224 = vmatprep.mubr.f32.mxu0 0.0
    %1225 = vmatmul.mubr.f32.gmra.mxu0 %v1152
    %v1226 = vpop.f32.mrf.mxu0
    %v1227 = vadd.f32 0.0, %v1226
    %v1228 = vpop.f32.mrf.mxu0
    %1229 = vmatprep.mubr.f32.mxu0 0.0
    %1230 = vmatmul.mubr.f32.gmra.mxu0 %v1155
    %v1231 = vpop.f32.mrf.mxu0
    %v1232 = vadd.f32 0.0, %v1231
    %v1233 = vpop.f32.mrf.mxu0
    %1234 = vmatprep.mubr.f32.mxu0 0.0
    %1235 = vmatmul.mubr.f32.gmra.mxu0 %v1158
    %v1236 = vpop.f32.mrf.mxu0
    %v1237 = vadd.f32 0.0, %v1236
    %v1238 = vpop.f32.mrf.mxu0
    %1239 = vdwg.mxu0
    %1243 = vrot.lane.b32.xlu0 %v1227, 16
    %v1244 = vpop.permute.xlu0 %1243
    %1245 = vrot.lane.b32.xlu0 %v1232, 16
    %v1246 = vpop.permute.xlu0 %1245
    %1247 = vrot.lane.b32.xlu0 %v1237, 16
    %v1248 = vpop.permute.xlu0 %1247
    %v1252 = vsel %vm298, %v992, %v1244
    %v1253 = vsel %vm298, %v997, %v1246
    %v1254 = vsel %vm298, %v1002, %v1248
    %v1255 = vld [vmem:[%s4] sm:$0xff]
    %v1256 = vld [vmem:[%s4 + $0x8] sm:$0xff]
    %v1257 = vld [vmem:[%s4 + $0x10] sm:$0xff]
    %v1258 = vld [vmem:[%s4 + $0x18] sm:$0xff]
    %v1260 = vsel %vm68, %v770, 0
    %v1263 = vsel %vm68, %v771, 0
    %v1266 = vsel %vm68, %v772, 0
    %v1269 = vsel %vm68, %v1252, 0
    %v1272 = vsel %vm68, %v1253, 0
    %v1275 = vsel %vm68, %v1254, 0
    %1277 = vmatprep.subr.mxu0 0.0
    %1278 = vmatpush1.msra.mxu0 0.0
    %1279 = vmatprep.subr.mxu0 0.0
    %1280 = vmatpush1.msra.mxu0 0.0
    %1281 = vmatprep.subr.mxu0 0.0
    %1282 = vmatpush1.msra.mxu0 0.0
    %1283 = vmatprep.subr.mxu0 0.0
    %1284 = vmatpush1.msra.mxu0 0.0
    %1285 = vmatprep.subr.mxu0 0.0
    %1286 = vmatpush1.msra.mxu0 0.0
    %1287 = vmatprep.subr.mxu0 0.0
    %1288 = vmatpush1.msra.mxu0 0.0
    %1289 = vmatprep.subr.mxu0 0.0
    %1290 = vmatpush1.msra.mxu0 0.0
    %1291 = vmatprep.subr.mxu0 0.0
    %1292 = vmatpush1.msra.mxu0 0.0
    %1293 = vmatprep.subr.mxu0 0.0
    %1294 = vmatpush1.msra.mxu0 0.0
    %1295 = vmatprep.subr.mxu0 0.0
    %1296 = vmatpush1.msra.mxu0 0.0
    %1297 = vmatprep.subr.mxu0 0.0
    %1298 = vmatpush1.msra.mxu0 0.0
    %1299 = vmatprep.subr.mxu0 0.0
    %1300 = vmatpush1.msra.mxu0 0.0
    %1301 = vmatprep.subr.mxu0 0.0
    %1302 = vmatpush1.msra.mxu0 %v1258
    %1303 = vmatprep.subr.mxu0 0.0
    %1304 = vmatpush1.msra.mxu0 %v1257
    %1305 = vmatprep.subr.mxu0 0.0
    %1306 = vmatpush1.msra.mxu0 %v1256
    %1307 = vmatprep.subr.mxu0 0.0
    %1308 = vmatpush1.msra.mxu0 %v1255
    %1309 = vmatprep.subr.mxu0 0.0
    %1310 = vmatpush2.msra.mxu0 0.0
    %1311 = vmatprep.subr.mxu0 0.0
    %1312 = vmatpush2.msra.mxu0 0.0
    %1313 = vmatprep.subr.mxu0 0.0
    %1314 = vmatpush2.msra.mxu0 0.0
    %1315 = vmatprep.subr.mxu0 0.0
    %1316 = vmatpush2.msra.mxu0 0.0
    %1317 = vmatprep.subr.mxu0 0.0
    %1318 = vmatpush2.msra.mxu0 0.0
    %1319 = vmatprep.subr.mxu0 0.0
    %1320 = vmatpush2.msra.mxu0 0.0
    %1321 = vmatprep.subr.mxu0 0.0
    %1322 = vmatpush2.msra.mxu0 0.0
    %1323 = vmatprep.subr.mxu0 0.0
    %1324 = vmatpush2.msra.mxu0 0.0
    %1325 = vmatprep.subr.mxu0 0.0
    %1326 = vmatpush2.msra.mxu0 0.0
    %1327 = vmatprep.subr.mxu0 0.0
    %1328 = vmatpush2.msra.mxu0 0.0
    %1329 = vmatprep.subr.mxu0 0.0
    %1330 = vmatpush2.msra.mxu0 0.0
    %1331 = vmatprep.subr.mxu0 0.0
    %1332 = vmatpush2.msra.mxu0 0.0
    %1333 = vmatprep.subr.mxu0 0.0
    %1334 = vmatpush2.msra.mxu0 0.0
    %1335 = vmatprep.subr.mxu0 0.0
    %1336 = vmatpush2.msra.mxu0 0.0
    %1337 = vmatprep.subr.mxu0 0.0
    %1338 = vmatpush2.msra.mxu0 0.0
    %1339 = vmatprep.subr.mxu0 0.0
    %1340 = vmatpush2.msra.mxu0 0.0
    %1341 = vmatprep.mubr.f32.mxu0 0.0
    %1342 = vmatmul.mubr.f32.gmra.mxu0 %v1260
    %v1343 = vpop.f32.mrf.mxu0
    %v1344 = vadd.f32 0.0, %v1343
    %v1345 = vpop.f32.mrf.mxu0
    %1346 = vmatprep.mubr.f32.mxu0 0.0
    %1347 = vmatmul.mubr.f32.gmra.mxu0 %v1263
    %v1348 = vpop.f32.mrf.mxu0
    %v1349 = vadd.f32 0.0, %v1348
    %v1350 = vpop.f32.mrf.mxu0
    %1351 = vmatprep.mubr.f32.mxu0 0.0
    %1352 = vmatmul.mubr.f32.gmra.mxu0 %v1266
    %v1353 = vpop.f32.mrf.mxu0
    %v1354 = vadd.f32 0.0, %v1353
    %v1355 = vpop.f32.mrf.mxu0
    %1356 = vmatprep.mubr.f32.mxu0 0.0
    %1357 = vmatmul.mubr.f32.gmra.mxu0 %v1269
    %v1358 = vpop.f32.mrf.mxu0
    %v1359 = vadd.f32 0.0, %v1358
    %v1360 = vpop.f32.mrf.mxu0
    %1361 = vmatprep.mubr.f32.mxu0 0.0
    %1362 = vmatmul.mubr.f32.gmra.mxu0 %v1272
    %v1363 = vpop.f32.mrf.mxu0
    %v1364 = vadd.f32 0.0, %v1363
    %v1365 = vpop.f32.mrf.mxu0
    %1366 = vmatprep.mubr.f32.mxu0 0.0
    %1367 = vmatmul.mubr.f32.gmra.mxu0 %v1275
    %v1368 = vpop.f32.mrf.mxu0
    %v1369 = vadd.f32 0.0, %v1368
    %v1370 = vpop.f32.mrf.mxu0
    %1371 = vdwg.mxu0
    %v1372 = vadd.f32 %v48, %v1344
    %v1373 = vadd.f32 %v49, %v1349
    %v1374 = vadd.f32 %v50, %v1354
    %v1375 = vadd.f32 %v51, %v1359
    %v1376 = vadd.f32 %v52, %v1364
    %v1377 = vadd.f32 %v53, %v1369
    %v1378 = vld [vmem:[%s5] sm:$0x1]
    %v1380 = vlaneseq
    %v1381 = vshrl.u32 %v1380, 7
    %v1382 = vsub.s32 0, %v1381
    %v1383 = vrot.slane %v1378, %v1382
    %v1385 = vadd.f32 %v1372, %v1383
    %v1386 = vadd.f32 %v1373, %v1383
    %v1387 = vadd.f32 %v1374, %v1383
    %v1388 = vadd.f32 %v1375, %v1383
    %v1389 = vadd.f32 %v1376, %v1383
    %v1390 = vadd.f32 %v1377, %v1383
    %v1391 = vld [vmem:[%s6] sm:$0x1]
    %v1392 = vld [vmem:[%s7] sm:$0x1]
    %v1393 = vsel %vm68, %v1385, 0.0
    %1394 = vadd.xlane.f32.xlu0 %v1393
    %v1395 = vpop.xlane.xlu0 %1394
    %v1396 = vsel %vm68, %v1386, 0.0
    %1397 = vadd.xlane.f32.xlu0 %v1396
    %v1398 = vpop.xlane.xlu0 %1397
    %v1399 = vsel %vm68, %v1387, 0.0
    %1400 = vadd.xlane.f32.xlu0 %v1399
    %v1401 = vpop.xlane.xlu0 %1400
    %v1402 = vsel %vm68, %v1388, 0.0
    %1403 = vadd.xlane.f32.xlu0 %v1402
    %v1404 = vpop.xlane.xlu0 %1403
    %v1405 = vsel %vm68, %v1389, 0.0
    %1406 = vadd.xlane.f32.xlu0 %v1405
    %v1407 = vpop.xlane.xlu0 %1406
    %v1408 = vsel %vm68, %v1390, 0.0
    %1409 = vadd.xlane.f32.xlu0 %v1408
    %v1410 = vpop.xlane.xlu0 %1409
    %v1411 = vmul.f32 %v1395, %v87
    %v1412 = vmul.f32 %v1398, %v87
    %v1413 = vmul.f32 %v1401, %v87
    %v1414 = vmul.f32 %v1404, %v87
    %v1415 = vmul.f32 %v1407, %v87
    %v1416 = vmul.f32 %v1410, %v87
    %v1417 = vsub.f32 %v1385, %v1411
    %v1418 = vsub.f32 %v1386, %v1412
    %v1419 = vsub.f32 %v1387, %v1413
    %v1420 = vsub.f32 %v1388, %v1414
    %v1421 = vsub.f32 %v1389, %v1415
    %v1422 = vsub.f32 %v1390, %v1416
    %v1423 = vmul.f32 %v1417, %v1417
    %v1424 = vmul.f32 %v1418, %v1418
    %v1425 = vmul.f32 %v1419, %v1419
    %v1426 = vmul.f32 %v1420, %v1420
    %v1427 = vmul.f32 %v1421, %v1421
    %v1428 = vmul.f32 %v1422, %v1422
    %v1429 = vsel %vm68, %v1423, 0.0
    %1430 = vadd.xlane.f32.xlu0 %v1429
    %v1431 = vpop.xlane.xlu0 %1430
    %v1432 = vsel %vm68, %v1424, 0.0
    %1433 = vadd.xlane.f32.xlu0 %v1432
    %v1434 = vpop.xlane.xlu0 %1433
    %v1435 = vsel %vm68, %v1425, 0.0
    %1436 = vadd.xlane.f32.xlu0 %v1435
    %v1437 = vpop.xlane.xlu0 %1436
    %v1438 = vsel %vm68, %v1426, 0.0
    %1439 = vadd.xlane.f32.xlu0 %v1438
    %v1440 = vpop.xlane.xlu0 %1439
    %v1441 = vsel %vm68, %v1427, 0.0
    %1442 = vadd.xlane.f32.xlu0 %v1441
    %v1443 = vpop.xlane.xlu0 %1442
    %v1444 = vsel %vm68, %v1428, 0.0
    %1445 = vadd.xlane.f32.xlu0 %v1444
    %v1446 = vpop.xlane.xlu0 %1445
    %v1447 = vmul.f32 %v1431, %v87
    %v1448 = vmul.f32 %v1434, %v87
    %v1449 = vmul.f32 %v1437, %v87
    %v1450 = vmul.f32 %v1440, %v87
    %v1451 = vmul.f32 %v1443, %v87
    %v1452 = vmul.f32 %v1446, %v87
    %v1453 = vadd.f32 %v1447, 1e-05
    %v1454 = vadd.f32 %v1448, 1e-05
    %v1455 = vadd.f32 %v1449, 1e-05
    %v1456 = vadd.f32 %v1450, 1e-05
    %v1457 = vadd.f32 %v1451, 1e-05
    %v1458 = vadd.f32 %v1452, 1e-05
    %v1459 = vrsqrt.pop %v1453
    %v1460 = vrsqrt.pop %v1454
    %v1461 = vrsqrt.pop %v1455
    %v1462 = vrsqrt.pop %v1456
    %v1463 = vrsqrt.pop %v1457
    %v1464 = vrsqrt.pop %v1458
    %v1465 = vmul.f32 %v1417, %v1459
    %v1466 = vmul.f32 %v1418, %v1460
    %v1467 = vmul.f32 %v1419, %v1461
    %v1468 = vmul.f32 %v1420, %v1462
    %v1469 = vmul.f32 %v1421, %v1463
    %v1470 = vmul.f32 %v1422, %v1464
    %v1472 = vlaneseq
    %v1473 = vshrl.u32 %v1472, 7
    %v1474 = vsub.s32 0, %v1473
    %v1475 = vrot.slane %v1391, %v1474
    %v1477 = vmul.f32 %v1465, %v1475
    %v1478 = vmul.f32 %v1466, %v1475
    %v1479 = vmul.f32 %v1467, %v1475
    %v1480 = vmul.f32 %v1468, %v1475
    %v1481 = vmul.f32 %v1469, %v1475
    %v1482 = vmul.f32 %v1470, %v1475
    %v1484 = vlaneseq
    %v1485 = vshrl.u32 %v1484, 7
    %v1486 = vsub.s32 0, %v1485
    %v1487 = vrot.slane %v1392, %v1486
    %v1489 = vadd.f32 %v1477, %v1487
    %v1490 = vadd.f32 %v1478, %v1487
    %v1491 = vadd.f32 %v1479, %v1487
    %v1492 = vadd.f32 %v1480, %v1487
    %v1493 = vadd.f32 %v1481, %v1487
    %v1494 = vadd.f32 %v1482, %v1487
    %v1495 = vld [vmem:[%s8] sm:$0xff]
    %v1496 = vld [vmem:[%s8 + $0x8] sm:$0xff]
    %v1497 = vld [vmem:[%s8 + $0x10] sm:$0xff]
    %v1498 = vld [vmem:[%s8 + $0x18] sm:$0xff]
    %v1499 = vld [vmem:[%s8 + $0x20] sm:$0xff]
    %v1500 = vld [vmem:[%s8 + $0x28] sm:$0xff]
    %v1501 = vld [vmem:[%s8 + $0x30] sm:$0xff]
    %v1502 = vld [vmem:[%s8 + $0x38] sm:$0xff]
    %v1503 = vld [vmem:[%s9] sm:$0x3]
    %v1505 = vlaneseq
    %v1506 = vshrl.u32 %v1505, 7
    %v1507 = vsub.s32 0, %v1506
    %v1508 = vrot.slane %v1503, %v1507
    %v1509 = vlaneseq
    %v1510 = vshrl.u32 %v1509, 7
    %v1511 = vsub.s32 1, %v1510
    %v1512 = vrot.slane %v1503, %v1511
    %v1516 = vsel %vm68, %v1489, 0
    %v1519 = vsel %vm68, %v1490, 0
    %v1522 = vsel %vm68, %v1491, 0
    %v1525 = vsel %vm68, %v1492, 0
    %v1528 = vsel %vm68, %v1493, 0
    %v1531 = vsel %vm68, %v1494, 0
    %1533 = vmatprep.subr.mxu0 0.0
    %1534 = vmatpush1.msra.mxu0 0.0
    %1535 = vmatprep.subr.mxu0 0.0
    %1536 = vmatpush1.msra.mxu0 0.0
    %1537 = vmatprep.subr.mxu0 0.0
    %1538 = vmatpush1.msra.mxu0 0.0
    %1539 = vmatprep.subr.mxu0 0.0
    %1540 = vmatpush1.msra.mxu0 0.0
    %1541 = vmatprep.subr.mxu0 0.0
    %1542 = vmatpush1.msra.mxu0 0.0
    %1543 = vmatprep.subr.mxu0 0.0
    %1544 = vmatpush1.msra.mxu0 0.0
    %1545 = vmatprep.subr.mxu0 0.0
    %1546 = vmatpush1.msra.mxu0 0.0
    %1547 = vmatprep.subr.mxu0 0.0
    %1548 = vmatpush1.msra.mxu0 0.0
    %1549 = vmatprep.subr.mxu0 0.0
    %1550 = vmatpush1.msra.mxu0 0.0
    %1551 = vmatprep.subr.mxu0 0.0
    %1552 = vmatpush1.msra.mxu0 0.0
    %1553 = vmatprep.subr.mxu0 0.0
    %1554 = vmatpush1.msra.mxu0 0.0
    %1555 = vmatprep.subr.mxu0 0.0
    %1556 = vmatpush1.msra.mxu0 0.0
    %1557 = vmatprep.subr.mxu0 %v1502
    %1558 = vmatpush1.msra.mxu0 %v1501
    %1559 = vmatprep.subr.mxu0 %v1500
    %1560 = vmatpush1.msra.mxu0 %v1499
    %1561 = vmatprep.subr.mxu0 %v1498
    %1562 = vmatpush1.msra.mxu0 %v1497
    %1563 = vmatprep.subr.mxu0 %v1496
    %1564 = vmatpush1.msra.mxu0 %v1495
    %1565 = vmatprep.subr.mxu0 0.0
    %1566 = vmatpush2.msra.mxu0 0.0
    %1567 = vmatprep.subr.mxu0 0.0
    %1568 = vmatpush2.msra.mxu0 0.0
    %1569 = vmatprep.subr.mxu0 0.0
    %1570 = vmatpush2.msra.mxu0 0.0
    %1571 = vmatprep.subr.mxu0 0.0
    %1572 = vmatpush2.msra.mxu0 0.0
    %1573 = vmatprep.subr.mxu0 0.0
    %1574 = vmatpush2.msra.mxu0 0.0
    %1575 = vmatprep.subr.mxu0 0.0
    %1576 = vmatpush2.msra.mxu0 0.0
    %1577 = vmatprep.subr.mxu0 0.0
    %1578 = vmatpush2.msra.mxu0 0.0
    %1579 = vmatprep.subr.mxu0 0.0
    %1580 = vmatpush2.msra.mxu0 0.0
    %1581 = vmatprep.subr.mxu0 0.0
    %1582 = vmatpush2.msra.mxu0 0.0
    %1583 = vmatprep.subr.mxu0 0.0
    %1584 = vmatpush2.msra.mxu0 0.0
    %1585 = vmatprep.subr.mxu0 0.0
    %1586 = vmatpush2.msra.mxu0 0.0
    %1587 = vmatprep.subr.mxu0 0.0
    %1588 = vmatpush2.msra.mxu0 0.0
    %1589 = vmatprep.subr.mxu0 0.0
    %1590 = vmatpush2.msra.mxu0 0.0
    %1591 = vmatprep.subr.mxu0 0.0
    %1592 = vmatpush2.msra.mxu0 0.0
    %1593 = vmatprep.subr.mxu0 0.0
    %1594 = vmatpush2.msra.mxu0 0.0
    %1595 = vmatprep.subr.mxu0 0.0
    %1596 = vmatpush2.msra.mxu0 0.0
    %1597 = vmatprep.mubr.f32.mxu0 0.0
    %1598 = vmatmul.mubr.f32.gmra.mxu0 %v1516
    %v1599 = vpop.f32.mrf.mxu0
    %v1600 = vadd.f32 %v1508, %v1599
    %v1601 = vpop.f32.mrf.mxu0
    %v1602 = vadd.f32 %v1512, %v1601
    %1603 = vmatprep.mubr.f32.mxu0 0.0
    %1604 = vmatmul.mubr.f32.gmra.mxu0 %v1519
    %v1605 = vpop.f32.mrf.mxu0
    %v1606 = vadd.f32 %v1508, %v1605
    %v1607 = vpop.f32.mrf.mxu0
    %v1608 = vadd.f32 %v1512, %v1607
    %1609 = vmatprep.mubr.f32.mxu0 0.0
    %1610 = vmatmul.mubr.f32.gmra.mxu0 %v1522
    %v1611 = vpop.f32.mrf.mxu0
    %v1612 = vadd.f32 %v1508, %v1611
    %v1613 = vpop.f32.mrf.mxu0
    %v1614 = vadd.f32 %v1512, %v1613
    %1615 = vmatprep.mubr.f32.mxu0 0.0
    %1616 = vmatmul.mubr.f32.gmra.mxu0 %v1525
    %v1617 = vpop.f32.mrf.mxu0
    %v1618 = vadd.f32 %v1508, %v1617
    %v1619 = vpop.f32.mrf.mxu0
    %v1620 = vadd.f32 %v1512, %v1619
    %1621 = vmatprep.mubr.f32.mxu0 0.0
    %1622 = vmatmul.mubr.f32.gmra.mxu0 %v1528
    %v1623 = vpop.f32.mrf.mxu0
    %v1624 = vadd.f32 %v1508, %v1623
    %v1625 = vpop.f32.mrf.mxu0
    %v1626 = vadd.f32 %v1512, %v1625
    %1627 = vmatprep.mubr.f32.mxu0 0.0
    %1628 = vmatmul.mubr.f32.gmra.mxu0 %v1531
    %v1629 = vpop.f32.mrf.mxu0
    %v1630 = vadd.f32 %v1508, %v1629
    %v1631 = vpop.f32.mrf.mxu0
    %v1632 = vadd.f32 %v1512, %v1631
    %1633 = vdwg.mxu0
    %v1634 = vmul.f32 %v1602, 0.5
    %v1635 = vmul.f32 %v1608, 0.5
    %v1636 = vmul.f32 %v1614, 0.5
    %v1637 = vmul.f32 %v1620, 0.5
    %v1638 = vmul.f32 %v1626, 0.5
    %v1639 = vmul.f32 %v1632, 0.5
    %v1640 = vmul.f32 %v1602, 0.70710677
    %v1641 = vmul.f32 %v1608, 0.70710677
    %v1642 = vmul.f32 %v1614, 0.70710677
    %v1643 = vmul.f32 %v1620, 0.70710677
    %v1644 = vmul.f32 %v1626, 0.70710677
    %v1645 = vmul.f32 %v1632, 0.70710677
    %v1646 = verf.f32.pop %v1640
    %v1647 = verf.f32.pop %v1641
    %v1648 = verf.f32.pop %v1642
    %v1649 = verf.f32.pop %v1643
    %v1650 = verf.f32.pop %v1644
    %v1651 = verf.f32.pop %v1645
    %v1652 = vadd.f32 %v1646, 1.0
    %v1653 = vadd.f32 %v1647, 1.0
    %v1654 = vadd.f32 %v1648, 1.0
    %v1655 = vadd.f32 %v1649, 1.0
    %v1656 = vadd.f32 %v1650, 1.0
    %v1657 = vadd.f32 %v1651, 1.0
    %v1658 = vmul.f32 %v1634, %v1652
    %v1659 = vmul.f32 %v1635, %v1653
    %v1660 = vmul.f32 %v1636, %v1654
    %v1661 = vmul.f32 %v1637, %v1655
    %v1662 = vmul.f32 %v1638, %v1656
    %v1663 = vmul.f32 %v1639, %v1657
    %v1664 = vmul.f32 %v1600, %v1658
    %v1665 = vmul.f32 %v1606, %v1659
    %v1666 = vmul.f32 %v1612, %v1660
    %v1667 = vmul.f32 %v1618, %v1661
    %v1668 = vmul.f32 %v1624, %v1662
    %v1669 = vmul.f32 %v1630, %v1663
    %v1670 = vld [vmem:[%s10] sm:$0xff]
    %v1671 = vld [vmem:[%s10 + $0x8] sm:$0xff]
    %v1672 = vld [vmem:[%s10 + $0x10] sm:$0xff]
    %v1673 = vld [vmem:[%s10 + $0x18] sm:$0xff]
    %v1674 = vld [vmem:[%s10 + $0x20] sm:$0xff]
    %v1675 = vld [vmem:[%s10 + $0x28] sm:$0xff]
    %v1676 = vld [vmem:[%s10 + $0x30] sm:$0xff]
    %v1677 = vld [vmem:[%s10 + $0x38] sm:$0xff]
    %v1678 = vld [vmem:[%s10 + $0x40] sm:$0xff]
    %v1679 = vld [vmem:[%s10 + $0x48] sm:$0xff]
    %v1680 = vld [vmem:[%s10 + $0x50] sm:$0xff]
    %v1681 = vld [vmem:[%s10 + $0x58] sm:$0xff]
    %v1682 = vld [vmem:[%s10 + $0x60] sm:$0xff]
    %v1683 = vld [vmem:[%s10 + $0x68] sm:$0xff]
    %v1684 = vld [vmem:[%s10 + $0x70] sm:$0xff]
    %v1685 = vld [vmem:[%s10 + $0x78] sm:$0xff]
    %1686 = vmatprep.subr.mxu0 0.0
    %1687 = vmatpush1.msra.mxu0 %v1685
    %1688 = vmatprep.subr.mxu0 0.0
    %1689 = vmatpush1.msra.mxu0 %v1684
    %1690 = vmatprep.subr.mxu0 0.0
    %1691 = vmatpush1.msra.mxu0 %v1683
    %1692 = vmatprep.subr.mxu0 0.0
    %1693 = vmatpush1.msra.mxu0 %v1682
    %1694 = vmatprep.subr.mxu0 0.0
    %1695 = vmatpush1.msra.mxu0 %v1681
    %1696 = vmatprep.subr.mxu0 0.0
    %1697 = vmatpush1.msra.mxu0 %v1680
    %1698 = vmatprep.subr.mxu0 0.0
    %1699 = vmatpush1.msra.mxu0 %v1679
    %1700 = vmatprep.subr.mxu0 0.0
    %1701 = vmatpush1.msra.mxu0 %v1678
    %1702 = vmatprep.subr.mxu0 0.0
    %1703 = vmatpush1.msra.mxu0 %v1677
    %1704 = vmatprep.subr.mxu0 0.0
    %1705 = vmatpush1.msra.mxu0 %v1676
    %1706 = vmatprep.subr.mxu0 0.0
    %1707 = vmatpush1.msra.mxu0 %v1675
    %1708 = vmatprep.subr.mxu0 0.0
    %1709 = vmatpush1.msra.mxu0 %v1674
    %1710 = vmatprep.subr.mxu0 0.0
    %1711 = vmatpush1.msra.mxu0 %v1673
    %1712 = vmatprep.subr.mxu0 0.0
    %1713 = vmatpush1.msra.mxu0 %v1672
    %1714 = vmatprep.subr.mxu0 0.0
    %1715 = vmatpush1.msra.mxu0 %v1671
    %1716 = vmatprep.subr.mxu0 0.0
    %1717 = vmatpush1.msra.mxu0 %v1670
    %1718 = vmatprep.subr.mxu0 0.0
    %1719 = vmatpush2.msra.mxu0 0.0
    %1720 = vmatprep.subr.mxu0 0.0
    %1721 = vmatpush2.msra.mxu0 0.0
    %1722 = vmatprep.subr.mxu0 0.0
    %1723 = vmatpush2.msra.mxu0 0.0
    %1724 = vmatprep.subr.mxu0 0.0
    %1725 = vmatpush2.msra.mxu0 0.0
    %1726 = vmatprep.subr.mxu0 0.0
    %1727 = vmatpush2.msra.mxu0 0.0
    %1728 = vmatprep.subr.mxu0 0.0
    %1729 = vmatpush2.msra.mxu0 0.0
    %1730 = vmatprep.subr.mxu0 0.0
    %1731 = vmatpush2.msra.mxu0 0.0
    %1732 = vmatprep.subr.mxu0 0.0
    %1733 = vmatpush2.msra.mxu0 0.0
    %1734 = vmatprep.subr.mxu0 0.0
    %1735 = vmatpush2.msra.mxu0 0.0
    %1736 = vmatprep.subr.mxu0 0.0
    %1737 = vmatpush2.msra.mxu0 0.0
    %1738 = vmatprep.subr.mxu0 0.0
    %1739 = vmatpush2.msra.mxu0 0.0
    %1740 = vmatprep.subr.mxu0 0.0
    %1741 = vmatpush2.msra.mxu0 0.0
    %1742 = vmatprep.subr.mxu0 0.0
    %1743 = vmatpush2.msra.mxu0 0.0
    %1744 = vmatprep.subr.mxu0 0.0
    %1745 = vmatpush2.msra.mxu0 0.0
    %1746 = vmatprep.subr.mxu0 0.0
    %1747 = vmatpush2.msra.mxu0 0.0
    %1748 = vmatprep.subr.mxu0 0.0
    %1749 = vmatpush2.msra.mxu0 0.0
    %1750 = vmatprep.mubr.f32.mxu0 0.0
    %1751 = vmatmul.mubr.f32.gmra.mxu0 %v1664
    %v1752 = vpop.f32.mrf.mxu0
    %v1753 = vadd.f32 0.0, %v1752
    %v1754 = vpop.f32.mrf.mxu0
    %1755 = vmatprep.mubr.f32.mxu0 0.0
    %1756 = vmatmul.mubr.f32.gmra.mxu0 %v1665
    %v1757 = vpop.f32.mrf.mxu0
    %v1758 = vadd.f32 0.0, %v1757
    %v1759 = vpop.f32.mrf.mxu0
    %1760 = vmatprep.mubr.f32.mxu0 0.0
    %1761 = vmatmul.mubr.f32.gmra.mxu0 %v1666
    %v1762 = vpop.f32.mrf.mxu0
    %v1763 = vadd.f32 0.0, %v1762
    %v1764 = vpop.f32.mrf.mxu0
    %1765 = vmatprep.mubr.f32.mxu0 0.0
    %1766 = vmatmul.mubr.f32.gmra.mxu0 %v1667
    %v1767 = vpop.f32.mrf.mxu0
    %v1768 = vadd.f32 0.0, %v1767
    %v1769 = vpop.f32.mrf.mxu0
    %1770 = vmatprep.mubr.f32.mxu0 0.0
    %1771 = vmatmul.mubr.f32.gmra.mxu0 %v1668
    %v1772 = vpop.f32.mrf.mxu0
    %v1773 = vadd.f32 0.0, %v1772
    %v1774 = vpop.f32.mrf.mxu0
    %1775 = vmatprep.mubr.f32.mxu0 0.0
    %1776 = vmatmul.mubr.f32.gmra.mxu0 %v1669
    %v1777 = vpop.f32.mrf.mxu0
    %v1778 = vadd.f32 0.0, %v1777
    %v1779 = vpop.f32.mrf.mxu0
    %1780 = vdwg.mxu0
    %v1781 = vadd.f32 %v1385, %v1753
    %v1782 = vadd.f32 %v1386, %v1758
    %v1783 = vadd.f32 %v1387, %v1763
    %v1784 = vadd.f32 %v1388, %v1768
    %v1785 = vadd.f32 %v1389, %v1773
    %v1786 = vadd.f32 %v1390, %v1778
    %v1787 = vld [vmem:[%s11] sm:$0x1]
    %v1789 = vlaneseq
    %v1790 = vshrl.u32 %v1789, 7
    %v1791 = vsub.s32 0, %v1790
    %v1792 = vrot.slane %v1787, %v1791
    %v1794 = vadd.f32 %v1781, %v1792
    %v1795 = vadd.f32 %v1782, %v1792
    %v1796 = vadd.f32 %v1783, %v1792
    %v1797 = vadd.f32 %v1784, %v1792
    %v1798 = vadd.f32 %v1785, %v1792
    %v1799 = vadd.f32 %v1786, %v1792
    %s1800 = scalar_lea.vmem %s1, 1
    %v1801 = vld [vmem:[%s1800] sm:$0x1]
    %s1802 = scalar_lea.vmem %s2, 1
    %v1803 = vld [vmem:[%s1802] sm:$0x1]
    %v1804 = vsel %vm68, %v1794, 0.0
    %1805 = vadd.xlane.f32.xlu0 %v1804
    %v1806 = vpop.xlane.xlu0 %1805
    %v1807 = vsel %vm68, %v1795, 0.0
    %1808 = vadd.xlane.f32.xlu0 %v1807
    %v1809 = vpop.xlane.xlu0 %1808
    %v1810 = vsel %vm68, %v1796, 0.0
    %1811 = vadd.xlane.f32.xlu0 %v1810
    %v1812 = vpop.xlane.xlu0 %1811
    %v1813 = vsel %vm68, %v1797, 0.0
    %1814 = vadd.xlane.f32.xlu0 %v1813
    %v1815 = vpop.xlane.xlu0 %1814
    %v1816 = vsel %vm68, %v1798, 0.0
    %1817 = vadd.xlane.f32.xlu0 %v1816
    %v1818 = vpop.xlane.xlu0 %1817
    %v1819 = vsel %vm68, %v1799, 0.0
    %1820 = vadd.xlane.f32.xlu0 %v1819
    %v1821 = vpop.xlane.xlu0 %1820
    %v1822 = vmul.f32 %v1806, %v87
    %v1823 = vmul.f32 %v1809, %v87
    %v1824 = vmul.f32 %v1812, %v87
    %v1825 = vmul.f32 %v1815, %v87
    %v1826 = vmul.f32 %v1818, %v87
    %v1827 = vmul.f32 %v1821, %v87
    %v1828 = vsub.f32 %v1794, %v1822
    %v1829 = vsub.f32 %v1795, %v1823
    %v1830 = vsub.f32 %v1796, %v1824
    %v1831 = vsub.f32 %v1797, %v1825
    %v1832 = vsub.f32 %v1798, %v1826
    %v1833 = vsub.f32 %v1799, %v1827
    %v1834 = vmul.f32 %v1828, %v1828
    %v1835 = vmul.f32 %v1829, %v1829
    %v1836 = vmul.f32 %v1830, %v1830
    %v1837 = vmul.f32 %v1831, %v1831
    %v1838 = vmul.f32 %v1832, %v1832
    %v1839 = vmul.f32 %v1833, %v1833
    %v1840 = vsel %vm68, %v1834, 0.0
    %1841 = vadd.xlane.f32.xlu0 %v1840
    %v1842 = vpop.xlane.xlu0 %1841
    %v1843 = vsel %vm68, %v1835, 0.0
    %1844 = vadd.xlane.f32.xlu0 %v1843
    %v1845 = vpop.xlane.xlu0 %1844
    %v1846 = vsel %vm68, %v1836, 0.0
    %1847 = vadd.xlane.f32.xlu0 %v1846
    %v1848 = vpop.xlane.xlu0 %1847
    %v1849 = vsel %vm68, %v1837, 0.0
    %1850 = vadd.xlane.f32.xlu0 %v1849
    %v1851 = vpop.xlane.xlu0 %1850
    %v1852 = vsel %vm68, %v1838, 0.0
    %1853 = vadd.xlane.f32.xlu0 %v1852
    %v1854 = vpop.xlane.xlu0 %1853
    %v1855 = vsel %vm68, %v1839, 0.0
    %1856 = vadd.xlane.f32.xlu0 %v1855
    %v1857 = vpop.xlane.xlu0 %1856
    %v1858 = vmul.f32 %v1842, %v87
    %v1859 = vmul.f32 %v1845, %v87
    %v1860 = vmul.f32 %v1848, %v87
    %v1861 = vmul.f32 %v1851, %v87
    %v1862 = vmul.f32 %v1854, %v87
    %v1863 = vmul.f32 %v1857, %v87
    %v1864 = vadd.f32 %v1858, 1e-05
    %v1865 = vadd.f32 %v1859, 1e-05
    %v1866 = vadd.f32 %v1860, 1e-05
    %v1867 = vadd.f32 %v1861, 1e-05
    %v1868 = vadd.f32 %v1862, 1e-05
    %v1869 = vadd.f32 %v1863, 1e-05
    %v1870 = vrsqrt.pop %v1864
    %v1871 = vrsqrt.pop %v1865
    %v1872 = vrsqrt.pop %v1866
    %v1873 = vrsqrt.pop %v1867
    %v1874 = vrsqrt.pop %v1868
    %v1875 = vrsqrt.pop %v1869
    %v1876 = vmul.f32 %v1828, %v1870
    %v1877 = vmul.f32 %v1829, %v1871
    %v1878 = vmul.f32 %v1830, %v1872
    %v1879 = vmul.f32 %v1831, %v1873
    %v1880 = vmul.f32 %v1832, %v1874
    %v1881 = vmul.f32 %v1833, %v1875
    %v1883 = vlaneseq
    %v1884 = vshrl.u32 %v1883, 7
    %v1885 = vsub.s32 0, %v1884
    %v1886 = vrot.slane %v1801, %v1885
    %v1888 = vmul.f32 %v1876, %v1886
    %v1889 = vmul.f32 %v1877, %v1886
    %v1890 = vmul.f32 %v1878, %v1886
    %v1891 = vmul.f32 %v1879, %v1886
    %v1892 = vmul.f32 %v1880, %v1886
    %v1893 = vmul.f32 %v1881, %v1886
    %v1895 = vlaneseq
    %v1896 = vshrl.u32 %v1895, 7
    %v1897 = vsub.s32 0, %v1896
    %v1898 = vrot.slane %v1803, %v1897
    %v1900 = vadd.f32 %v1888, %v1898
    %v1901 = vadd.f32 %v1889, %v1898
    %v1902 = vadd.f32 %v1890, %v1898
    %v1903 = vadd.f32 %v1891, %v1898
    %v1904 = vadd.f32 %v1892, %v1898
    %v1905 = vadd.f32 %v1893, %v1898
    %s1906 = scalar_lea.vmem %s3, 32
    %v1907 = vld [vmem:[%s1906] sm:$0xff]
    %v1908 = vld [vmem:[%s1906 + $0x8] sm:$0xff]
    %v1909 = vld [vmem:[%s1906 + $0x10] sm:$0xff]
    %v1910 = vld [vmem:[%s1906 + $0x18] sm:$0xff]
    %v1912 = vsel %vm68, %v1900, 0
    %v1915 = vsel %vm68, %v1901, 0
    %v1918 = vsel %vm68, %v1902, 0
    %v1921 = vsel %vm68, %v1903, 0
    %v1924 = vsel %vm68, %v1904, 0
    %v1927 = vsel %vm68, %v1905, 0
    %1929 = vmatprep.subr.mxu0 0.0
    %1930 = vmatpush1.msra.mxu0 0.0
    %1931 = vmatprep.subr.mxu0 0.0
    %1932 = vmatpush1.msra.mxu0 0.0
    %1933 = vmatprep.subr.mxu0 0.0
    %1934 = vmatpush1.msra.mxu0 0.0
    %1935 = vmatprep.subr.mxu0 0.0
    %1936 = vmatpush1.msra.mxu0 0.0
    %1937 = vmatprep.subr.mxu0 0.0
    %1938 = vmatpush1.msra.mxu0 0.0
    %1939 = vmatprep.subr.mxu0 0.0
    %1940 = vmatpush1.msra.mxu0 0.0
    %1941 = vmatprep.subr.mxu0 0.0
    %1942 = vmatpush1.msra.mxu0 0.0
    %1943 = vmatprep.subr.mxu0 0.0
    %1944 = vmatpush1.msra.mxu0 0.0
    %1945 = vmatprep.subr.mxu0 0.0
    %1946 = vmatpush1.msra.mxu0 0.0
    %1947 = vmatprep.subr.mxu0 0.0
    %1948 = vmatpush1.msra.mxu0 0.0
    %1949 = vmatprep.subr.mxu0 0.0
    %1950 = vmatpush1.msra.mxu0 0.0
    %1951 = vmatprep.subr.mxu0 0.0
    %1952 = vmatpush1.msra.mxu0 0.0
    %1953 = vmatprep.subr.mxu0 0.0
    %1954 = vmatpush1.msra.mxu0 %v1910
    %1955 = vmatprep.subr.mxu0 0.0
    %1956 = vmatpush1.msra.mxu0 %v1909
    %1957 = vmatprep.subr.mxu0 0.0
    %1958 = vmatpush1.msra.mxu0 %v1908
    %1959 = vmatprep.subr.mxu0 0.0
    %1960 = vmatpush1.msra.mxu0 %v1907
    %1961 = vmatprep.subr.mxu0 0.0
    %1962 = vmatpush2.msra.mxu0 0.0
    %1963 = vmatprep.subr.mxu0 0.0
    %1964 = vmatpush2.msra.mxu0 0.0
    %1965 = vmatprep.subr.mxu0 0.0
    %1966 = vmatpush2.msra.mxu0 0.0
    %1967 = vmatprep.subr.mxu0 0.0
    %1968 = vmatpush2.msra.mxu0 0.0
    %1969 = vmatprep.subr.mxu0 0.0
    %1970 = vmatpush2.msra.mxu0 0.0
    %1971 = vmatprep.subr.mxu0 0.0
    %1972 = vmatpush2.msra.mxu0 0.0
    %1973 = vmatprep.subr.mxu0 0.0
    %1974 = vmatpush2.msra.mxu0 0.0
    %1975 = vmatprep.subr.mxu0 0.0
    %1976 = vmatpush2.msra.mxu0 0.0
    %1977 = vmatprep.subr.mxu0 0.0
    %1978 = vmatpush2.msra.mxu0 0.0
    %1979 = vmatprep.subr.mxu0 0.0
    %1980 = vmatpush2.msra.mxu0 0.0
    %1981 = vmatprep.subr.mxu0 0.0
    %1982 = vmatpush2.msra.mxu0 0.0
    %1983 = vmatprep.subr.mxu0 0.0
    %1984 = vmatpush2.msra.mxu0 0.0
    %1985 = vmatprep.subr.mxu0 0.0
    %1986 = vmatpush2.msra.mxu0 0.0
    %1987 = vmatprep.subr.mxu0 0.0
    %1988 = vmatpush2.msra.mxu0 0.0
    %1989 = vmatprep.subr.mxu0 0.0
    %1990 = vmatpush2.msra.mxu0 0.0
    %1991 = vmatprep.subr.mxu0 0.0
    %1992 = vmatpush2.msra.mxu0 0.0
    %1993 = vmatprep.mubr.f32.mxu0 0.0
    %1994 = vmatmul.mubr.f32.gmra.mxu0 %v1912
    %v1995 = vpop.f32.mrf.mxu0
    %v1996 = vadd.f32 0.0, %v1995
    %v1997 = vpop.f32.mrf.mxu0
    %1998 = vmatprep.mubr.f32.mxu0 0.0
    %1999 = vmatmul.mubr.f32.gmra.mxu0 %v1915
    %v2000 = vpop.f32.mrf.mxu0
    %v2001 = vadd.f32 0.0, %v2000
    %v2002 = vpop.f32.mrf.mxu0
    %2003 = vmatprep.mubr.f32.mxu0 0.0
    %2004 = vmatmul.mubr.f32.gmra.mxu0 %v1918
    %v2005 = vpop.f32.mrf.mxu0
    %v2006 = vadd.f32 0.0, %v2005
    %v2007 = vpop.f32.mrf.mxu0
    %2008 = vmatprep.mubr.f32.mxu0 0.0
    %2009 = vmatmul.mubr.f32.gmra.mxu0 %v1921
    %v2010 = vpop.f32.mrf.mxu0
    %v2011 = vadd.f32 0.0, %v2010
    %v2012 = vpop.f32.mrf.mxu0
    %2013 = vmatprep.mubr.f32.mxu0 0.0
    %2014 = vmatmul.mubr.f32.gmra.mxu0 %v1924
    %v2015 = vpop.f32.mrf.mxu0
    %v2016 = vadd.f32 0.0, %v2015
    %v2017 = vpop.f32.mrf.mxu0
    %2018 = vmatprep.mubr.f32.mxu0 0.0
    %2019 = vmatmul.mubr.f32.gmra.mxu0 %v1927
    %v2020 = vpop.f32.mrf.mxu0
    %v2021 = vadd.f32 0.0, %v2020
    %v2022 = vpop.f32.mrf.mxu0
    %2023 = vdwg.mxu0
    %2027 = vrot.lane.b32.xlu0 %v1996, 96
    %v2028 = vpop.permute.xlu0 %2027
    %2029 = vrot.lane.b32.xlu0 %v2001, 96
    %v2030 = vpop.permute.xlu0 %2029
    %2031 = vrot.lane.b32.xlu0 %v2006, 96
    %v2032 = vpop.permute.xlu0 %2031
    %v2033 = vsel %vm298, %v1996, 0
    %v2035 = vsel %vm298, %v2001, 0
    %v2037 = vsel %vm298, %v2006, 0
    %v2039 = vsel %vm298, %v2028, 0
    %v2041 = vsel %vm298, %v2030, 0
    %v2043 = vsel %vm298, %v2032, 0
    %2045 = vmatprep.subr.mxu0 0.0
    %2046 = vmatpush1.xpose.msra.mxu0 0.0
    %2047 = vmatprep.subr.mxu0 0.0
    %2048 = vmatpush1.xpose.msra.mxu0 0.0
    %2049 = vmatprep.subr.mxu0 0.0
    %2050 = vmatpush1.xpose.msra.mxu0 0.0
    %2051 = vmatprep.subr.mxu0 0.0
    %2052 = vmatpush1.xpose.msra.mxu0 0.0
    %2053 = vmatprep.subr.mxu0 0.0
    %2054 = vmatpush1.xpose.msra.mxu0 0.0
    %2055 = vmatprep.subr.mxu0 0.0
    %2056 = vmatpush1.xpose.msra.mxu0 0.0
    %2057 = vmatprep.subr.mxu0 0.0
    %2058 = vmatpush1.xpose.msra.mxu0 0.0
    %2059 = vmatprep.subr.mxu0 0.0
    %2060 = vmatpush1.xpose.msra.mxu0 0.0
    %2061 = vmatprep.subr.mxu0 0.0
    %2062 = vmatpush1.xpose.msra.mxu0 0.0
    %2063 = vmatprep.subr.mxu0 0.0
    %2064 = vmatpush1.xpose.msra.mxu0 0.0
    %2065 = vmatprep.subr.mxu0 0.0
    %2066 = vmatpush1.xpose.msra.mxu0 0.0
    %2067 = vmatprep.subr.mxu0 0.0
    %2068 = vmatpush1.xpose.msra.mxu0 0.0
    %2069 = vmatprep.subr.mxu0 0.0
    %2070 = vmatpush1.xpose.msra.mxu0 0.0
    %2071 = vmatprep.subr.mxu0 0.0
    %2072 = vmatpush1.xpose.msra.mxu0 %v2043
    %2073 = vmatprep.subr.mxu0 0.0
    %2074 = vmatpush1.xpose.msra.mxu0 %v2041
    %2075 = vmatprep.subr.mxu0 0.0
    %2076 = vmatpush1.xpose.msra.mxu0 %v2039
    %2077 = vmatprep.subr.mxu0 0.0
    %2078 = vmatpush2.xpose.msra.mxu0 0.0
    %2079 = vmatprep.subr.mxu0 0.0
    %2080 = vmatpush2.xpose.msra.mxu0 0.0
    %2081 = vmatprep.subr.mxu0 0.0
    %2082 = vmatpush2.xpose.msra.mxu0 0.0
    %2083 = vmatprep.subr.mxu0 0.0
    %2084 = vmatpush2.xpose.msra.mxu0 0.0
    %2085 = vmatprep.subr.mxu0 0.0
    %2086 = vmatpush2.xpose.msra.mxu0 0.0
    %2087 = vmatprep.subr.mxu0 0.0
    %2088 = vmatpush2.xpose.msra.mxu0 0.0
    %2089 = vmatprep.subr.mxu0 0.0
    %2090 = vmatpush2.xpose.msra.mxu0 0.0
    %2091 = vmatprep.subr.mxu0 0.0
    %2092 = vmatpush2.xpose.msra.mxu0 0.0
    %2093 = vmatprep.subr.mxu0 0.0
    %2094 = vmatpush2.xpose.msra.mxu0 0.0
    %2095 = vmatprep.subr.mxu0 0.0
    %2096 = vmatpush2.xpose.msra.mxu0 0.0
    %2097 = vmatprep.subr.mxu0 0.0
    %2098 = vmatpush2.xpose.msra.mxu0 0.0
    %2099 = vmatprep.subr.mxu0 0.0
    %2100 = vmatpush2.xpose.msra.mxu0 0.0
    %2101 = vmatprep.subr.mxu0 0.0
    %2102 = vmatpush2.xpose.msra.mxu0 0.0
    %2103 = vmatprep.subr.mxu0 0.0
    %2104 = vmatpush2.xpose.msra.mxu0 0.0
    %2105 = vmatprep.subr.mxu0 0.0
    %2106 = vmatpush2.xpose.msra.mxu0 0.0
    %2107 = vmatprep.subr.mxu0 0.0
    %2108 = vmatpush2.xpose.msra.mxu0 0.0
    %2109 = vmatprep.mubr.f32.mxu0 0.0
    %2110 = vmatmul.mubr.f32.gmra.mxu0 %v2033
    %v2111 = vpop.f32.mrf.mxu0
    %v2112 = vadd.f32 %v63, %v2111
    %v2113 = vpop.f32.mrf.mxu0
    %2114 = vmatprep.mubr.f32.mxu0 0.0
    %2115 = vmatmul.mubr.f32.gmra.mxu0 %v2035
    %v2116 = vpop.f32.mrf.mxu0
    %v2117 = vadd.f32 %v64, %v2116
    %v2118 = vpop.f32.mrf.mxu0
    %2119 = vmatprep.mubr.f32.mxu0 0.0
    %2120 = vmatmul.mubr.f32.gmra.mxu0 %v2037
    %v2121 = vpop.f32.mrf.mxu0
    %v2122 = vadd.f32 %v65, %v2121
    %v2123 = vpop.f32.mrf.mxu0
    %2124 = vdwg.mxu0
    %v2125 = vsel %vm391, %v2112, -inf
    %2126 = vmax.xlane.f32.xlu0 %v2125
    %v2127 = vpop.xlane.xlu0 %2126
    %v2128 = vsel %vm391, %v2117, -inf
    %2129 = vmax.xlane.f32.xlu0 %v2128
    %v2130 = vpop.xlane.xlu0 %2129
    %v2131 = vsel %vm391, %v2122, -inf
    %2132 = vmax.xlane.f32.xlu0 %v2131
    %v2133 = vpop.xlane.xlu0 %2132
    %v2134 = vsub.f32 %v2112, %v2127
    %v2135 = vsub.f32 %v2117, %v2130
    %v2136 = vsub.f32 %v2122, %v2133
    %v2137 = vmul.f32 %v2134, 1.442695
    %v2138 = vpow.pop %v2137
    %v2139 = vmul.f32 %v2135, 1.442695
    %v2140 = vpow.pop %v2139
    %v2141 = vmul.f32 %v2136, 1.442695
    %v2142 = vpow.pop %v2141
    %v2143 = vsel %vm391, %v2138, 0.0
    %2144 = vadd.xlane.f32.xlu0 %v2143
    %v2145 = vpop.xlane.xlu0 %2144
    %v2146 = vsel %vm391, %v2140, 0.0
    %2147 = vadd.xlane.f32.xlu0 %v2146
    %v2148 = vpop.xlane.xlu0 %2147
    %v2149 = vsel %vm391, %v2142, 0.0
    %2150 = vadd.xlane.f32.xlu0 %v2149
    %v2151 = vpop.xlane.xlu0 %2150
    %v2152 = vrcp.pop %v2145
    %v2153 = vrcp.pop %v2148
    %v2154 = vrcp.pop %v2151
    %v2155 = vmul.f32 %v2138, %v2152
    %v2156 = vmul.f32 %v2140, %v2153
    %v2157 = vmul.f32 %v2142, %v2154
    %2158 = vrot.lane.b32.xlu0 %v1996, 64
    %v2159 = vpop.permute.xlu0 %2158
    %2160 = vrot.lane.b32.xlu0 %v2001, 64
    %v2161 = vpop.permute.xlu0 %2160
    %2162 = vrot.lane.b32.xlu0 %v2006, 64
    %v2163 = vpop.permute.xlu0 %2162
    %v2168 = vsel %vm391, %v2155, 0
    %v2171 = vsel %vm391, %v2156, 0
    %v2174 = vsel %vm391, %v2157, 0
    %2176 = vmatprep.subr.mxu0 0.0
    %2177 = vmatpush1.msra.mxu0 0.0
    %2178 = vmatprep.subr.mxu0 0.0
    %2179 = vmatpush1.msra.mxu0 0.0
    %2180 = vmatprep.subr.mxu0 0.0
    %2181 = vmatpush1.msra.mxu0 0.0
    %2182 = vmatprep.subr.mxu0 0.0
    %2183 = vmatpush1.msra.mxu0 0.0
    %2184 = vmatprep.subr.mxu0 0.0
    %2185 = vmatpush1.msra.mxu0 0.0
    %2186 = vmatprep.subr.mxu0 0.0
    %2187 = vmatpush1.msra.mxu0 0.0
    %2188 = vmatprep.subr.mxu0 0.0
    %2189 = vmatpush1.msra.mxu0 0.0
    %2190 = vmatprep.subr.mxu0 0.0
    %2191 = vmatpush1.msra.mxu0 0.0
    %2192 = vmatprep.subr.mxu0 0.0
    %2193 = vmatpush1.msra.mxu0 0.0
    %2194 = vmatprep.subr.mxu0 0.0
    %2195 = vmatpush1.msra.mxu0 0.0
    %2196 = vmatprep.subr.mxu0 0.0
    %2197 = vmatpush1.msra.mxu0 0.0
    %2198 = vmatprep.subr.mxu0 0.0
    %2199 = vmatpush1.msra.mxu0 0.0
    %2200 = vmatprep.subr.mxu0 0.0
    %2201 = vmatpush1.msra.mxu0 0.0
    %2202 = vmatprep.subr.mxu0 0.0
    %2203 = vmatpush1.msra.mxu0 %v2163
    %2204 = vmatprep.subr.mxu0 0.0
    %2205 = vmatpush1.msra.mxu0 %v2161
    %2206 = vmatprep.subr.mxu0 0.0
    %2207 = vmatpush1.msra.mxu0 %v2159
    %2208 = vmatprep.subr.mxu0 0.0
    %2209 = vmatpush2.msra.mxu0 0.0
    %2210 = vmatprep.subr.mxu0 0.0
    %2211 = vmatpush2.msra.mxu0 0.0
    %2212 = vmatprep.subr.mxu0 0.0
    %2213 = vmatpush2.msra.mxu0 0.0
    %2214 = vmatprep.subr.mxu0 0.0
    %2215 = vmatpush2.msra.mxu0 0.0
    %2216 = vmatprep.subr.mxu0 0.0
    %2217 = vmatpush2.msra.mxu0 0.0
    %2218 = vmatprep.subr.mxu0 0.0
    %2219 = vmatpush2.msra.mxu0 0.0
    %2220 = vmatprep.subr.mxu0 0.0
    %2221 = vmatpush2.msra.mxu0 0.0
    %2222 = vmatprep.subr.mxu0 0.0
    %2223 = vmatpush2.msra.mxu0 0.0
    %2224 = vmatprep.subr.mxu0 0.0
    %2225 = vmatpush2.msra.mxu0 0.0
    %2226 = vmatprep.subr.mxu0 0.0
    %2227 = vmatpush2.msra.mxu0 0.0
    %2228 = vmatprep.subr.mxu0 0.0
    %2229 = vmatpush2.msra.mxu0 0.0
    %2230 = vmatprep.subr.mxu0 0.0
    %2231 = vmatpush2.msra.mxu0 0.0
    %2232 = vmatprep.subr.mxu0 0.0
    %2233 = vmatpush2.msra.mxu0 0.0
    %2234 = vmatprep.subr.mxu0 0.0
    %2235 = vmatpush2.msra.mxu0 0.0
    %2236 = vmatprep.subr.mxu0 0.0
    %2237 = vmatpush2.msra.mxu0 0.0
    %2238 = vmatprep.subr.mxu0 0.0
    %2239 = vmatpush2.msra.mxu0 0.0
    %2240 = vmatprep.mubr.f32.mxu0 0.0
    %2241 = vmatmul.mubr.f32.gmra.mxu0 %v2168
    %v2242 = vpop.f32.mrf.mxu0
    %v2243 = vadd.f32 0.0, %v2242
    %v2244 = vpop.f32.mrf.mxu0
    %2245 = vmatprep.mubr.f32.mxu0 0.0
    %2246 = vmatmul.mubr.f32.gmra.mxu0 %v2171
    %v2247 = vpop.f32.mrf.mxu0
    %v2248 = vadd.f32 0.0, %v2247
    %v2249 = vpop.f32.mrf.mxu0
    %2250 = vmatprep.mubr.f32.mxu0 0.0
    %2251 = vmatmul.mubr.f32.gmra.mxu0 %v2174
    %v2252 = vpop.f32.mrf.mxu0
    %v2253 = vadd.f32 0.0, %v2252
    %v2254 = vpop.f32.mrf.mxu0
    %2255 = vdwg.mxu0
    %2256 = vrot.lane.b32.xlu0 %v1996, 112
    %v2257 = vpop.permute.xlu0 %2256
    %2258 = vrot.lane.b32.xlu0 %v2001, 112
    %v2259 = vpop.permute.xlu0 %2258
    %2260 = vrot.lane.b32.xlu0 %v2006, 112
    %v2261 = vpop.permute.xlu0 %2260
    %2262 = vrot.lane.b32.xlu0 %v1996, 80
    %v2263 = vpop.permute.xlu0 %2262
    %2264 = vrot.lane.b32.xlu0 %v2001, 80
    %v2265 = vpop.permute.xlu0 %2264
    %2266 = vrot.lane.b32.xlu0 %v2006, 80
    %v2267 = vpop.permute.xlu0 %2266
    %v2268 = vsel %vm298, %v2257, 0
    %v2270 = vsel %vm298, %v2259, 0
    %v2272 = vsel %vm298, %v2261, 0
    %v2274 = vsel %vm298, %v2263, 0
    %v2276 = vsel %vm298, %v2265, 0
    %v2278 = vsel %vm298, %v2267, 0
    %2280 = vmatprep.subr.mxu0 0.0
    %2281 = vmatpush1.xpose.msra.mxu0 0.0
    %2282 = vmatprep.subr.mxu0 0.0
    %2283 = vmatpush1.xpose.msra.mxu0 0.0
    %2284 = vmatprep.subr.mxu0 0.0
    %2285 = vmatpush1.xpose.msra.mxu0 0.0
    %2286 = vmatprep.subr.mxu0 0.0
    %2287 = vmatpush1.xpose.msra.mxu0 0.0
    %2288 = vmatprep.subr.mxu0 0.0
    %2289 = vmatpush1.xpose.msra.mxu0 0.0
    %2290 = vmatprep.subr.mxu0 0.0
    %2291 = vmatpush1.xpose.msra.mxu0 0.0
    %2292 = vmatprep.subr.mxu0 0.0
    %2293 = vmatpush1.xpose.msra.mxu0 0.0
    %2294 = vmatprep.subr.mxu0 0.0
    %2295 = vmatpush1.xpose.msra.mxu0 0.0
    %2296 = vmatprep.subr.mxu0 0.0
    %2297 = vmatpush1.xpose.msra.mxu0 0.0
    %2298 = vmatprep.subr.mxu0 0.0
    %2299 = vmatpush1.xpose.msra.mxu0 0.0
    %2300 = vmatprep.subr.mxu0 0.0
    %2301 = vmatpush1.xpose.msra.mxu0 0.0
    %2302 = vmatprep.subr.mxu0 0.0
    %2303 = vmatpush1.xpose.msra.mxu0 0.0
    %2304 = vmatprep.subr.mxu0 0.0
    %2305 = vmatpush1.xpose.msra.mxu0 0.0
    %2306 = vmatprep.subr.mxu0 0.0
    %2307 = vmatpush1.xpose.msra.mxu0 %v2278
    %2308 = vmatprep.subr.mxu0 0.0
    %2309 = vmatpush1.xpose.msra.mxu0 %v2276
    %2310 = vmatprep.subr.mxu0 0.0
    %2311 = vmatpush1.xpose.msra.mxu0 %v2274
    %2312 = vmatprep.subr.mxu0 0.0
    %2313 = vmatpush2.xpose.msra.mxu0 0.0
    %2314 = vmatprep.subr.mxu0 0.0
    %2315 = vmatpush2.xpose.msra.mxu0 0.0
    %2316 = vmatprep.subr.mxu0 0.0
    %2317 = vmatpush2.xpose.msra.mxu0 0.0
    %2318 = vmatprep.subr.mxu0 0.0
    %2319 = vmatpush2.xpose.msra.mxu0 0.0
    %2320 = vmatprep.subr.mxu0 0.0
    %2321 = vmatpush2.xpose.msra.mxu0 0.0
    %2322 = vmatprep.subr.mxu0 0.0
    %2323 = vmatpush2.xpose.msra.mxu0 0.0
    %2324 = vmatprep.subr.mxu0 0.0
    %2325 = vmatpush2.xpose.msra.mxu0 0.0
    %2326 = vmatprep.subr.mxu0 0.0
    %2327 = vmatpush2.xpose.msra.mxu0 0.0
    %2328 = vmatprep.subr.mxu0 0.0
    %2329 = vmatpush2.xpose.msra.mxu0 0.0
    %2330 = vmatprep.subr.mxu0 0.0
    %2331 = vmatpush2.xpose.msra.mxu0 0.0
    %2332 = vmatprep.subr.mxu0 0.0
    %2333 = vmatpush2.xpose.msra.mxu0 0.0
    %2334 = vmatprep.subr.mxu0 0.0
    %2335 = vmatpush2.xpose.msra.mxu0 0.0
    %2336 = vmatprep.subr.mxu0 0.0
    %2337 = vmatpush2.xpose.msra.mxu0 0.0
    %2338 = vmatprep.subr.mxu0 0.0
    %2339 = vmatpush2.xpose.msra.mxu0 0.0
    %2340 = vmatprep.subr.mxu0 0.0
    %2341 = vmatpush2.xpose.msra.mxu0 0.0
    %2342 = vmatprep.subr.mxu0 0.0
    %2343 = vmatpush2.xpose.msra.mxu0 0.0
    %2344 = vmatprep.mubr.f32.mxu0 0.0
    %2345 = vmatmul.mubr.f32.gmra.mxu0 %v2268
    %v2346 = vpop.f32.mrf.mxu0
    %v2347 = vadd.f32 %v63, %v2346
    %v2348 = vpop.f32.mrf.mxu0
    %2349 = vmatprep.mubr.f32.mxu0 0.0
    %2350 = vmatmul.mubr.f32.gmra.mxu0 %v2270
    %v2351 = vpop.f32.mrf.mxu0
    %v2352 = vadd.f32 %v64, %v2351
    %v2353 = vpop.f32.mrf.mxu0
    %2354 = vmatprep.mubr.f32.mxu0 0.0
    %2355 = vmatmul.mubr.f32.gmra.mxu0 %v2272
    %v2356 = vpop.f32.mrf.mxu0
    %v2357 = vadd.f32 %v65, %v2356
    %v2358 = vpop.f32.mrf.mxu0
    %2359 = vdwg.mxu0
    %v2360 = vsel %vm391, %v2347, -inf
    %2361 = vmax.xlane.f32.xlu0 %v2360
    %v2362 = vpop.xlane.xlu0 %2361
    %v2363 = vsel %vm391, %v2352, -inf
    %2364 = vmax.xlane.f32.xlu0 %v2363
    %v2365 = vpop.xlane.xlu0 %2364
    %v2366 = vsel %vm391, %v2357, -inf
    %2367 = vmax.xlane.f32.xlu0 %v2366
    %v2368 = vpop.xlane.xlu0 %2367
    %v2369 = vsub.f32 %v2347, %v2362
    %v2370 = vsub.f32 %v2352, %v2365
    %v2371 = vsub.f32 %v2357, %v2368
    %v2372 = vmul.f32 %v2369, 1.442695
    %v2373 = vpow.pop %v2372
    %v2374 = vmul.f32 %v2370, 1.442695
    %v2375 = vpow.pop %v2374
    %v2376 = vmul.f32 %v2371, 1.442695
    %v2377 = vpow.pop %v2376
    %v2378 = vsel %vm391, %v2373, 0.0
    %2379 = vadd.xlane.f32.xlu0 %v2378
    %v2380 = vpop.xlane.xlu0 %2379
    %v2381 = vsel %vm391, %v2375, 0.0
    %2382 = vadd.xlane.f32.xlu0 %v2381
    %v2383 = vpop.xlane.xlu0 %2382
    %v2384 = vsel %vm391, %v2377, 0.0
    %2385 = vadd.xlane.f32.xlu0 %v2384
    %v2386 = vpop.xlane.xlu0 %2385
    %v2387 = vrcp.pop %v2380
    %v2388 = vrcp.pop %v2383
    %v2389 = vrcp.pop %v2386
    %v2390 = vmul.f32 %v2373, %v2387
    %v2391 = vmul.f32 %v2375, %v2388
    %v2392 = vmul.f32 %v2377, %v2389
    %2393 = vrot.lane.b32.xlu0 %v1996, 48
    %v2394 = vpop.permute.xlu0 %2393
    %2395 = vrot.lane.b32.xlu0 %v2001, 48
    %v2396 = vpop.permute.xlu0 %2395
    %2397 = vrot.lane.b32.xlu0 %v2006, 48
    %v2398 = vpop.permute.xlu0 %2397
    %v2403 = vsel %vm391, %v2390, 0
    %v2406 = vsel %vm391, %v2391, 0
    %v2409 = vsel %vm391, %v2392, 0
    %2411 = vmatprep.subr.mxu0 0.0
    %2412 = vmatpush1.msra.mxu0 0.0
    %2413 = vmatprep.subr.mxu0 0.0
    %2414 = vmatpush1.msra.mxu0 0.0
    %2415 = vmatprep.subr.mxu0 0.0
    %2416 = vmatpush1.msra.mxu0 0.0
    %2417 = vmatprep.subr.mxu0 0.0
    %2418 = vmatpush1.msra.mxu0 0.0
    %2419 = vmatprep.subr.mxu0 0.0
    %2420 = vmatpush1.msra.mxu0 0.0
    %2421 = vmatprep.subr.mxu0 0.0
    %2422 = vmatpush1.msra.mxu0 0.0
    %2423 = vmatprep.subr.mxu0 0.0
    %2424 = vmatpush1.msra.mxu0 0.0
    %2425 = vmatprep.subr.mxu0 0.0
    %2426 = vmatpush1.msra.mxu0 0.0
    %2427 = vmatprep.subr.mxu0 0.0
    %2428 = vmatpush1.msra.mxu0 0.0
    %2429 = vmatprep.subr.mxu0 0.0
    %2430 = vmatpush1.msra.mxu0 0.0
    %2431 = vmatprep.subr.mxu0 0.0
    %2432 = vmatpush1.msra.mxu0 0.0
    %2433 = vmatprep.subr.mxu0 0.0
    %2434 = vmatpush1.msra.mxu0 0.0
    %2435 = vmatprep.subr.mxu0 0.0
    %2436 = vmatpush1.msra.mxu0 0.0
    %2437 = vmatprep.subr.mxu0 0.0
    %2438 = vmatpush1.msra.mxu0 %v2398
    %2439 = vmatprep.subr.mxu0 0.0
    %2440 = vmatpush1.msra.mxu0 %v2396
    %2441 = vmatprep.subr.mxu0 0.0
    %2442 = vmatpush1.msra.mxu0 %v2394
    %2443 = vmatprep.subr.mxu0 0.0
    %2444 = vmatpush2.msra.mxu0 0.0
    %2445 = vmatprep.subr.mxu0 0.0
    %2446 = vmatpush2.msra.mxu0 0.0
    %2447 = vmatprep.subr.mxu0 0.0
    %2448 = vmatpush2.msra.mxu0 0.0
    %2449 = vmatprep.subr.mxu0 0.0
    %2450 = vmatpush2.msra.mxu0 0.0
    %2451 = vmatprep.subr.mxu0 0.0
    %2452 = vmatpush2.msra.mxu0 0.0
    %2453 = vmatprep.subr.mxu0 0.0
    %2454 = vmatpush2.msra.mxu0 0.0
    %2455 = vmatprep.subr.mxu0 0.0
    %2456 = vmatpush2.msra.mxu0 0.0
    %2457 = vmatprep.subr.mxu0 0.0
    %2458 = vmatpush2.msra.mxu0 0.0
    %2459 = vmatprep.subr.mxu0 0.0
    %2460 = vmatpush2.msra.mxu0 0.0
    %2461 = vmatprep.subr.mxu0 0.0
    %2462 = vmatpush2.msra.mxu0 0.0
    %2463 = vmatprep.subr.mxu0 0.0
    %2464 = vmatpush2.msra.mxu0 0.0
    %2465 = vmatprep.subr.mxu0 0.0
    %2466 = vmatpush2.msra.mxu0 0.0
    %2467 = vmatprep.subr.mxu0 0.0
    %2468 = vmatpush2.msra.mxu0 0.0
    %2469 = vmatprep.subr.mxu0 0.0
    %2470 = vmatpush2.msra.mxu0 0.0
    %2471 = vmatprep.subr.mxu0 0.0
    %2472 = vmatpush2.msra.mxu0 0.0
    %2473 = vmatprep.subr.mxu0 0.0
    %2474 = vmatpush2.msra.mxu0 0.0
    %2475 = vmatprep.mubr.f32.mxu0 0.0
    %2476 = vmatmul.mubr.f32.gmra.mxu0 %v2403
    %v2477 = vpop.f32.mrf.mxu0
    %v2478 = vadd.f32 0.0, %v2477
    %v2479 = vpop.f32.mrf.mxu0
    %2480 = vmatprep.mubr.f32.mxu0 0.0
    %2481 = vmatmul.mubr.f32.gmra.mxu0 %v2406
    %v2482 = vpop.f32.mrf.mxu0
    %v2483 = vadd.f32 0.0, %v2482
    %v2484 = vpop.f32.mrf.mxu0
    %2485 = vmatprep.mubr.f32.mxu0 0.0
    %2486 = vmatmul.mubr.f32.gmra.mxu0 %v2409
    %v2487 = vpop.f32.mrf.mxu0
    %v2488 = vadd.f32 0.0, %v2487
    %v2489 = vpop.f32.mrf.mxu0
    %2490 = vdwg.mxu0
    %2494 = vrot.lane.b32.xlu0 %v2478, 16
    %v2495 = vpop.permute.xlu0 %2494
    %2496 = vrot.lane.b32.xlu0 %v2483, 16
    %v2497 = vpop.permute.xlu0 %2496
    %2498 = vrot.lane.b32.xlu0 %v2488, 16
    %v2499 = vpop.permute.xlu0 %2498
    %v2503 = vsel %vm298, %v2243, %v2495
    %v2504 = vsel %vm298, %v2248, %v2497
    %v2505 = vsel %vm298, %v2253, %v2499
    %2509 = vrot.lane.b32.xlu0 %v2011, 96
    %v2510 = vpop.permute.xlu0 %2509
    %2511 = vrot.lane.b32.xlu0 %v2016, 96
    %v2512 = vpop.permute.xlu0 %2511
    %2513 = vrot.lane.b32.xlu0 %v2021, 96
    %v2514 = vpop.permute.xlu0 %2513
    %v2515 = vsel %vm298, %v2011, 0
    %v2517 = vsel %vm298, %v2016, 0
    %v2519 = vsel %vm298, %v2021, 0
    %v2521 = vsel %vm298, %v2510, 0
    %v2523 = vsel %vm298, %v2512, 0
    %v2525 = vsel %vm298, %v2514, 0
    %2527 = vmatprep.subr.mxu0 0.0
    %2528 = vmatpush1.xpose.msra.mxu0 0.0
    %2529 = vmatprep.subr.mxu0 0.0
    %2530 = vmatpush1.xpose.msra.mxu0 0.0
    %2531 = vmatprep.subr.mxu0 0.0
    %2532 = vmatpush1.xpose.msra.mxu0 0.0
    %2533 = vmatprep.subr.mxu0 0.0
    %2534 = vmatpush1.xpose.msra.mxu0 0.0
    %2535 = vmatprep.subr.mxu0 0.0
    %2536 = vmatpush1.xpose.msra.mxu0 0.0
    %2537 = vmatprep.subr.mxu0 0.0
    %2538 = vmatpush1.xpose.msra.mxu0 0.0
    %2539 = vmatprep.subr.mxu0 0.0
    %2540 = vmatpush1.xpose.msra.mxu0 0.0
    %2541 = vmatprep.subr.mxu0 0.0
    %2542 = vmatpush1.xpose.msra.mxu0 0.0
    %2543 = vmatprep.subr.mxu0 0.0
    %2544 = vmatpush1.xpose.msra.mxu0 0.0
    %2545 = vmatprep.subr.mxu0 0.0
    %2546 = vmatpush1.xpose.msra.mxu0 0.0
    %2547 = vmatprep.subr.mxu0 0.0
    %2548 = vmatpush1.xpose.msra.mxu0 0.0
    %2549 = vmatprep.subr.mxu0 0.0
    %2550 = vmatpush1.xpose.msra.mxu0 0.0
    %2551 = vmatprep.subr.mxu0 0.0
    %2552 = vmatpush1.xpose.msra.mxu0 0.0
    %2553 = vmatprep.subr.mxu0 0.0
    %2554 = vmatpush1.xpose.msra.mxu0 %v2525
    %2555 = vmatprep.subr.mxu0 0.0
    %2556 = vmatpush1.xpose.msra.mxu0 %v2523
    %2557 = vmatprep.subr.mxu0 0.0
    %2558 = vmatpush1.xpose.msra.mxu0 %v2521
    %2559 = vmatprep.subr.mxu0 0.0
    %2560 = vmatpush2.xpose.msra.mxu0 0.0
    %2561 = vmatprep.subr.mxu0 0.0
    %2562 = vmatpush2.xpose.msra.mxu0 0.0
    %2563 = vmatprep.subr.mxu0 0.0
    %2564 = vmatpush2.xpose.msra.mxu0 0.0
    %2565 = vmatprep.subr.mxu0 0.0
    %2566 = vmatpush2.xpose.msra.mxu0 0.0
    %2567 = vmatprep.subr.mxu0 0.0
    %2568 = vmatpush2.xpose.msra.mxu0 0.0
    %2569 = vmatprep.subr.mxu0 0.0
    %2570 = vmatpush2.xpose.msra.mxu0 0.0
    %2571 = vmatprep.subr.mxu0 0.0
    %2572 = vmatpush2.xpose.msra.mxu0 0.0
    %2573 = vmatprep.subr.mxu0 0.0
    %2574 = vmatpush2.xpose.msra.mxu0 0.0
    %2575 = vmatprep.subr.mxu0 0.0
    %2576 = vmatpush2.xpose.msra.mxu0 0.0
    %2577 = vmatprep.subr.mxu0 0.0
    %2578 = vmatpush2.xpose.msra.mxu0 0.0
    %2579 = vmatprep.subr.mxu0 0.0
    %2580 = vmatpush2.xpose.msra.mxu0 0.0
    %2581 = vmatprep.subr.mxu0 0.0
    %2582 = vmatpush2.xpose.msra.mxu0 0.0
    %2583 = vmatprep.subr.mxu0 0.0
    %2584 = vmatpush2.xpose.msra.mxu0 0.0
    %2585 = vmatprep.subr.mxu0 0.0
    %2586 = vmatpush2.xpose.msra.mxu0 0.0
    %2587 = vmatprep.subr.mxu0 0.0
    %2588 = vmatpush2.xpose.msra.mxu0 0.0
    %2589 = vmatprep.subr.mxu0 0.0
    %2590 = vmatpush2.xpose.msra.mxu0 0.0
    %2591 = vmatprep.mubr.f32.mxu0 0.0
    %2592 = vmatmul.mubr.f32.gmra.mxu0 %v2515
    %v2593 = vpop.f32.mrf.mxu0
    %v2594 = vadd.f32 %v63, %v2593
    %v2595 = vpop.f32.mrf.mxu0
    %2596 = vmatprep.mubr.f32.mxu0 0.0
    %2597 = vmatmul.mubr.f32.gmra.mxu0 %v2517
    %v2598 = vpop.f32.mrf.mxu0
    %v2599 = vadd.f32 %v64, %v2598
    %v2600 = vpop.f32.mrf.mxu0
    %2601 = vmatprep.mubr.f32.mxu0 0.0
    %2602 = vmatmul.mubr.f32.gmra.mxu0 %v2519
    %v2603 = vpop.f32.mrf.mxu0
    %v2604 = vadd.f32 %v65, %v2603
    %v2605 = vpop.f32.mrf.mxu0
    %2606 = vdwg.mxu0
    %v2607 = vsel %vm391, %v2594, -inf
    %2608 = vmax.xlane.f32.xlu0 %v2607
    %v2609 = vpop.xlane.xlu0 %2608
    %v2610 = vsel %vm391, %v2599, -inf
    %2611 = vmax.xlane.f32.xlu0 %v2610
    %v2612 = vpop.xlane.xlu0 %2611
    %v2613 = vsel %vm391, %v2604, -inf
    %2614 = vmax.xlane.f32.xlu0 %v2613
    %v2615 = vpop.xlane.xlu0 %2614
    %v2616 = vsub.f32 %v2594, %v2609
    %v2617 = vsub.f32 %v2599, %v2612
    %v2618 = vsub.f32 %v2604, %v2615
    %v2619 = vmul.f32 %v2616, 1.442695
    %v2620 = vpow.pop %v2619
    %v2621 = vmul.f32 %v2617, 1.442695
    %v2622 = vpow.pop %v2621
    %v2623 = vmul.f32 %v2618, 1.442695
    %v2624 = vpow.pop %v2623
    %v2625 = vsel %vm391, %v2620, 0.0
    %2626 = vadd.xlane.f32.xlu0 %v2625
    %v2627 = vpop.xlane.xlu0 %2626
    %v2628 = vsel %vm391, %v2622, 0.0
    %2629 = vadd.xlane.f32.xlu0 %v2628
    %v2630 = vpop.xlane.xlu0 %2629
    %v2631 = vsel %vm391, %v2624, 0.0
    %2632 = vadd.xlane.f32.xlu0 %v2631
    %v2633 = vpop.xlane.xlu0 %2632
    %v2634 = vrcp.pop %v2627
    %v2635 = vrcp.pop %v2630
    %v2636 = vrcp.pop %v2633
    %v2637 = vmul.f32 %v2620, %v2634
    %v2638 = vmul.f32 %v2622, %v2635
    %v2639 = vmul.f32 %v2624, %v2636
    %2640 = vrot.lane.b32.xlu0 %v2011, 64
    %v2641 = vpop.permute.xlu0 %2640
    %2642 = vrot.lane.b32.xlu0 %v2016, 64
    %v2643 = vpop.permute.xlu0 %2642
    %2644 = vrot.lane.b32.xlu0 %v2021, 64
    %v2645 = vpop.permute.xlu0 %2644
    %v2650 = vsel %vm391, %v2637, 0
    %v2653 = vsel %vm391, %v2638, 0
    %v2656 = vsel %vm391, %v2639, 0
    %2658 = vmatprep.subr.mxu0 0.0
    %2659 = vmatpush1.msra.mxu0 0.0
    %2660 = vmatprep.subr.mxu0 0.0
    %2661 = vmatpush1.msra.mxu0 0.0
    %2662 = vmatprep.subr.mxu0 0.0
    %2663 = vmatpush1.msra.mxu0 0.0
    %2664 = vmatprep.subr.mxu0 0.0
    %2665 = vmatpush1.msra.mxu0 0.0
    %2666 = vmatprep.subr.mxu0 0.0
    %2667 = vmatpush1.msra.mxu0 0.0
    %2668 = vmatprep.subr.mxu0 0.0
    %2669 = vmatpush1.msra.mxu0 0.0
    %2670 = vmatprep.subr.mxu0 0.0
    %2671 = vmatpush1.msra.mxu0 0.0
    %2672 = vmatprep.subr.mxu0 0.0
    %2673 = vmatpush1.msra.mxu0 0.0
    %2674 = vmatprep.subr.mxu0 0.0
    %2675 = vmatpush1.msra.mxu0 0.0
    %2676 = vmatprep.subr.mxu0 0.0
    %2677 = vmatpush1.msra.mxu0 0.0
    %2678 = vmatprep.subr.mxu0 0.0
    %2679 = vmatpush1.msra.mxu0 0.0
    %2680 = vmatprep.subr.mxu0 0.0
    %2681 = vmatpush1.msra.mxu0 0.0
    %2682 = vmatprep.subr.mxu0 0.0
    %2683 = vmatpush1.msra.mxu0 0.0
    %2684 = vmatprep.subr.mxu0 0.0
    %2685 = vmatpush1.msra.mxu0 %v2645
    %2686 = vmatprep.subr.mxu0 0.0
    %2687 = vmatpush1.msra.mxu0 %v2643
    %2688 = vmatprep.subr.mxu0 0.0
    %2689 = vmatpush1.msra.mxu0 %v2641
    %2690 = vmatprep.subr.mxu0 0.0
    %2691 = vmatpush2.msra.mxu0 0.0
    %2692 = vmatprep.subr.mxu0 0.0
    %2693 = vmatpush2.msra.mxu0 0.0
    %2694 = vmatprep.subr.mxu0 0.0
    %2695 = vmatpush2.msra.mxu0 0.0
    %2696 = vmatprep.subr.mxu0 0.0
    %2697 = vmatpush2.msra.mxu0 0.0
    %2698 = vmatprep.subr.mxu0 0.0
    %2699 = vmatpush2.msra.mxu0 0.0
    %2700 = vmatprep.subr.mxu0 0.0
    %2701 = vmatpush2.msra.mxu0 0.0
    %2702 = vmatprep.subr.mxu0 0.0
    %2703 = vmatpush2.msra.mxu0 0.0
    %2704 = vmatprep.subr.mxu0 0.0
    %2705 = vmatpush2.msra.mxu0 0.0
    %2706 = vmatprep.subr.mxu0 0.0
    %2707 = vmatpush2.msra.mxu0 0.0
    %2708 = vmatprep.subr.mxu0 0.0
    %2709 = vmatpush2.msra.mxu0 0.0
    %2710 = vmatprep.subr.mxu0 0.0
    %2711 = vmatpush2.msra.mxu0 0.0
    %2712 = vmatprep.subr.mxu0 0.0
    %2713 = vmatpush2.msra.mxu0 0.0
    %2714 = vmatprep.subr.mxu0 0.0
    %2715 = vmatpush2.msra.mxu0 0.0
    %2716 = vmatprep.subr.mxu0 0.0
    %2717 = vmatpush2.msra.mxu0 0.0
    %2718 = vmatprep.subr.mxu0 0.0
    %2719 = vmatpush2.msra.mxu0 0.0
    %2720 = vmatprep.subr.mxu0 0.0
    %2721 = vmatpush2.msra.mxu0 0.0
    %2722 = vmatprep.mubr.f32.mxu0 0.0
    %2723 = vmatmul.mubr.f32.gmra.mxu0 %v2650
    %v2724 = vpop.f32.mrf.mxu0
    %v2725 = vadd.f32 0.0, %v2724
    %v2726 = vpop.f32.mrf.mxu0
    %2727 = vmatprep.mubr.f32.mxu0 0.0
    %2728 = vmatmul.mubr.f32.gmra.mxu0 %v2653
    %v2729 = vpop.f32.mrf.mxu0
    %v2730 = vadd.f32 0.0, %v2729
    %v2731 = vpop.f32.mrf.mxu0
    %2732 = vmatprep.mubr.f32.mxu0 0.0
    %2733 = vmatmul.mubr.f32.gmra.mxu0 %v2656
    %v2734 = vpop.f32.mrf.mxu0
    %v2735 = vadd.f32 0.0, %v2734
    %v2736 = vpop.f32.mrf.mxu0
    %2737 = vdwg.mxu0
    %2738 = vrot.lane.b32.xlu0 %v2011, 112
    %v2739 = vpop.permute.xlu0 %2738
    %2740 = vrot.lane.b32.xlu0 %v2016, 112
    %v2741 = vpop.permute.xlu0 %2740
    %2742 = vrot.lane.b32.xlu0 %v2021, 112
    %v2743 = vpop.permute.xlu0 %2742
    %2744 = vrot.lane.b32.xlu0 %v2011, 80
    %v2745 = vpop.permute.xlu0 %2744
    %2746 = vrot.lane.b32.xlu0 %v2016, 80
    %v2747 = vpop.permute.xlu0 %2746
    %2748 = vrot.lane.b32.xlu0 %v2021, 80
    %v2749 = vpop.permute.xlu0 %2748
    %v2750 = vsel %vm298, %v2739, 0
    %v2752 = vsel %vm298, %v2741, 0
    %v2754 = vsel %vm298, %v2743, 0
    %v2756 = vsel %vm298, %v2745, 0
    %v2758 = vsel %vm298, %v2747, 0
    %v2760 = vsel %vm298, %v2749, 0
    %2762 = vmatprep.subr.mxu0 0.0
    %2763 = vmatpush1.xpose.msra.mxu0 0.0
    %2764 = vmatprep.subr.mxu0 0.0
    %2765 = vmatpush1.xpose.msra.mxu0 0.0
    %2766 = vmatprep.subr.mxu0 0.0
    %2767 = vmatpush1.xpose.msra.mxu0 0.0
    %2768 = vmatprep.subr.mxu0 0.0
    %2769 = vmatpush1.xpose.msra.mxu0 0.0
    %2770 = vmatprep.subr.mxu0 0.0
    %2771 = vmatpush1.xpose.msra.mxu0 0.0
    %2772 = vmatprep.subr.mxu0 0.0
    %2773 = vmatpush1.xpose.msra.mxu0 0.0
    %2774 = vmatprep.subr.mxu0 0.0
    %2775 = vmatpush1.xpose.msra.mxu0 0.0
    %2776 = vmatprep.subr.mxu0 0.0
    %2777 = vmatpush1.xpose.msra.mxu0 0.0
    %2778 = vmatprep.subr.mxu0 0.0
    %2779 = vmatpush1.xpose.msra.mxu0 0.0
    %2780 = vmatprep.subr.mxu0 0.0
    %2781 = vmatpush1.xpose.msra.mxu0 0.0
    %2782 = vmatprep.subr.mxu0 0.0
    %2783 = vmatpush1.xpose.msra.mxu0 0.0
    %2784 = vmatprep.subr.mxu0 0.0
    %2785 = vmatpush1.xpose.msra.mxu0 0.0
    %2786 = vmatprep.subr.mxu0 0.0
    %2787 = vmatpush1.xpose.msra.mxu0 0.0
    %2788 = vmatprep.subr.mxu0 0.0
    %2789 = vmatpush1.xpose.msra.mxu0 %v2760
    %2790 = vmatprep.subr.mxu0 0.0
    %2791 = vmatpush1.xpose.msra.mxu0 %v2758
    %2792 = vmatprep.subr.mxu0 0.0
    %2793 = vmatpush1.xpose.msra.mxu0 %v2756
    %2794 = vmatprep.subr.mxu0 0.0
    %2795 = vmatpush2.xpose.msra.mxu0 0.0
    %2796 = vmatprep.subr.mxu0 0.0
    %2797 = vmatpush2.xpose.msra.mxu0 0.0
    %2798 = vmatprep.subr.mxu0 0.0
    %2799 = vmatpush2.xpose.msra.mxu0 0.0
    %2800 = vmatprep.subr.mxu0 0.0
    %2801 = vmatpush2.xpose.msra.mxu0 0.0
    %2802 = vmatprep.subr.mxu0 0.0
    %2803 = vmatpush2.xpose.msra.mxu0 0.0
    %2804 = vmatprep.subr.mxu0 0.0
    %2805 = vmatpush2.xpose.msra.mxu0 0.0
    %2806 = vmatprep.subr.mxu0 0.0
    %2807 = vmatpush2.xpose.msra.mxu0 0.0
    %2808 = vmatprep.subr.mxu0 0.0
    %2809 = vmatpush2.xpose.msra.mxu0 0.0
    %2810 = vmatprep.subr.mxu0 0.0
    %2811 = vmatpush2.xpose.msra.mxu0 0.0
    %2812 = vmatprep.subr.mxu0 0.0
    %2813 = vmatpush2.xpose.msra.mxu0 0.0
    %2814 = vmatprep.subr.mxu0 0.0
    %2815 = vmatpush2.xpose.msra.mxu0 0.0
    %2816 = vmatprep.subr.mxu0 0.0
    %2817 = vmatpush2.xpose.msra.mxu0 0.0
    %2818 = vmatprep.subr.mxu0 0.0
    %2819 = vmatpush2.xpose.msra.mxu0 0.0
    %2820 = vmatprep.subr.mxu0 0.0
    %2821 = vmatpush2.xpose.msra.mxu0 0.0
    %2822 = vmatprep.subr.mxu0 0.0
    %2823 = vmatpush2.xpose.msra.mxu0 0.0
    %2824 = vmatprep.subr.mxu0 0.0
    %2825 = vmatpush2.xpose.msra.mxu0 0.0
    %2826 = vmatprep.mubr.f32.mxu0 0.0
    %2827 = vmatmul.mubr.f32.gmra.mxu0 %v2750
    %v2828 = vpop.f32.mrf.mxu0
    %v2829 = vadd.f32 %v63, %v2828
    %v2830 = vpop.f32.mrf.mxu0
    %2831 = vmatprep.mubr.f32.mxu0 0.0
    %2832 = vmatmul.mubr.f32.gmra.mxu0 %v2752
    %v2833 = vpop.f32.mrf.mxu0
    %v2834 = vadd.f32 %v64, %v2833
    %v2835 = vpop.f32.mrf.mxu0
    %2836 = vmatprep.mubr.f32.mxu0 0.0
    %2837 = vmatmul.mubr.f32.gmra.mxu0 %v2754
    %v2838 = vpop.f32.mrf.mxu0
    %v2839 = vadd.f32 %v65, %v2838
    %v2840 = vpop.f32.mrf.mxu0
    %2841 = vdwg.mxu0
    %v2842 = vsel %vm391, %v2829, -inf
    %2843 = vmax.xlane.f32.xlu0 %v2842
    %v2844 = vpop.xlane.xlu0 %2843
    %v2845 = vsel %vm391, %v2834, -inf
    %2846 = vmax.xlane.f32.xlu0 %v2845
    %v2847 = vpop.xlane.xlu0 %2846
    %v2848 = vsel %vm391, %v2839, -inf
    %2849 = vmax.xlane.f32.xlu0 %v2848
    %v2850 = vpop.xlane.xlu0 %2849
    %v2851 = vsub.f32 %v2829, %v2844
    %v2852 = vsub.f32 %v2834, %v2847
    %v2853 = vsub.f32 %v2839, %v2850
    %v2854 = vmul.f32 %v2851, 1.442695
    %v2855 = vpow.pop %v2854
    %v2856 = vmul.f32 %v2852, 1.442695
    %v2857 = vpow.pop %v2856
    %v2858 = vmul.f32 %v2853, 1.442695
    %v2859 = vpow.pop %v2858
    %v2860 = vsel %vm391, %v2855, 0.0
    %2861 = vadd.xlane.f32.xlu0 %v2860
    %v2862 = vpop.xlane.xlu0 %2861
    %v2863 = vsel %vm391, %v2857, 0.0
    %2864 = vadd.xlane.f32.xlu0 %v2863
    %v2865 = vpop.xlane.xlu0 %2864
    %v2866 = vsel %vm391, %v2859, 0.0
    %2867 = vadd.xlane.f32.xlu0 %v2866
    %v2868 = vpop.xlane.xlu0 %2867
    %v2869 = vrcp.pop %v2862
    %v2870 = vrcp.pop %v2865
    %v2871 = vrcp.pop %v2868
    %v2872 = vmul.f32 %v2855, %v2869
    %v2873 = vmul.f32 %v2857, %v2870
    %v2874 = vmul.f32 %v2859, %v2871
    %2875 = vrot.lane.b32.xlu0 %v2011, 48
    %v2876 = vpop.permute.xlu0 %2875
    %2877 = vrot.lane.b32.xlu0 %v2016, 48
    %v2878 = vpop.permute.xlu0 %2877
    %2879 = vrot.lane.b32.xlu0 %v2021, 48
    %v2880 = vpop.permute.xlu0 %2879
    %v2885 = vsel %vm391, %v2872, 0
    %v2888 = vsel %vm391, %v2873, 0
    %v2891 = vsel %vm391, %v2874, 0
    %2893 = vmatprep.subr.mxu0 0.0
    %2894 = vmatpush1.msra.mxu0 0.0
    %2895 = vmatprep.subr.mxu0 0.0
    %2896 = vmatpush1.msra.mxu0 0.0
    %2897 = vmatprep.subr.mxu0 0.0
    %2898 = vmatpush1.msra.mxu0 0.0
    %2899 = vmatprep.subr.mxu0 0.0
    %2900 = vmatpush1.msra.mxu0 0.0
    %2901 = vmatprep.subr.mxu0 0.0
    %2902 = vmatpush1.msra.mxu0 0.0
    %2903 = vmatprep.subr.mxu0 0.0
    %2904 = vmatpush1.msra.mxu0 0.0
    %2905 = vmatprep.subr.mxu0 0.0
    %2906 = vmatpush1.msra.mxu0 0.0
    %2907 = vmatprep.subr.mxu0 0.0
    %2908 = vmatpush1.msra.mxu0 0.0
    %2909 = vmatprep.subr.mxu0 0.0
    %2910 = vmatpush1.msra.mxu0 0.0
    %2911 = vmatprep.subr.mxu0 0.0
    %2912 = vmatpush1.msra.mxu0 0.0
    %2913 = vmatprep.subr.mxu0 0.0
    %2914 = vmatpush1.msra.mxu0 0.0
    %2915 = vmatprep.subr.mxu0 0.0
    %2916 = vmatpush1.msra.mxu0 0.0
    %2917 = vmatprep.subr.mxu0 0.0
    %2918 = vmatpush1.msra.mxu0 0.0
    %2919 = vmatprep.subr.mxu0 0.0
    %2920 = vmatpush1.msra.mxu0 %v2880
    %2921 = vmatprep.subr.mxu0 0.0
    %2922 = vmatpush1.msra.mxu0 %v2878
    %2923 = vmatprep.subr.mxu0 0.0
    %2924 = vmatpush1.msra.mxu0 %v2876
    %2925 = vmatprep.subr.mxu0 0.0
    %2926 = vmatpush2.msra.mxu0 0.0
    %2927 = vmatprep.subr.mxu0 0.0
    %2928 = vmatpush2.msra.mxu0 0.0
    %2929 = vmatprep.subr.mxu0 0.0
    %2930 = vmatpush2.msra.mxu0 0.0
    %2931 = vmatprep.subr.mxu0 0.0
    %2932 = vmatpush2.msra.mxu0 0.0
    %2933 = vmatprep.subr.mxu0 0.0
    %2934 = vmatpush2.msra.mxu0 0.0
    %2935 = vmatprep.subr.mxu0 0.0
    %2936 = vmatpush2.msra.mxu0 0.0
    %2937 = vmatprep.subr.mxu0 0.0
    %2938 = vmatpush2.msra.mxu0 0.0
    %2939 = vmatprep.subr.mxu0 0.0
    %2940 = vmatpush2.msra.mxu0 0.0
    %2941 = vmatprep.subr.mxu0 0.0
    %2942 = vmatpush2.msra.mxu0 0.0
    %2943 = vmatprep.subr.mxu0 0.0
    %2944 = vmatpush2.msra.mxu0 0.0
    %2945 = vmatprep.subr.mxu0 0.0
    %2946 = vmatpush2.msra.mxu0 0.0
    %2947 = vmatprep.subr.mxu0 0.0
    %2948 = vmatpush2.msra.mxu0 0.0
    %2949 = vmatprep.subr.mxu0 0.0
    %2950 = vmatpush2.msra.mxu0 0.0
    %2951 = vmatprep.subr.mxu0 0.0
    %2952 = vmatpush2.msra.mxu0 0.0
    %2953 = vmatprep.subr.mxu0 0.0
    %2954 = vmatpush2.msra.mxu0 0.0
    %2955 = vmatprep.subr.mxu0 0.0
    %2956 = vmatpush2.msra.mxu0 0.0
    %2957 = vmatprep.mubr.f32.mxu0 0.0
    %2958 = vmatmul.mubr.f32.gmra.mxu0 %v2885
    %v2959 = vpop.f32.mrf.mxu0
    %v2960 = vadd.f32 0.0, %v2959
    %v2961 = vpop.f32.mrf.mxu0
    %2962 = vmatprep.mubr.f32.mxu0 0.0
    %2963 = vmatmul.mubr.f32.gmra.mxu0 %v2888
    %v2964 = vpop.f32.mrf.mxu0
    %v2965 = vadd.f32 0.0, %v2964
    %v2966 = vpop.f32.mrf.mxu0
    %2967 = vmatprep.mubr.f32.mxu0 0.0
    %2968 = vmatmul.mubr.f32.gmra.mxu0 %v2891
    %v2969 = vpop.f32.mrf.mxu0
    %v2970 = vadd.f32 0.0, %v2969
    %v2971 = vpop.f32.mrf.mxu0
    %2972 = vdwg.mxu0
    %2976 = vrot.lane.b32.xlu0 %v2960, 16
    %v2977 = vpop.permute.xlu0 %2976
    %2978 = vrot.lane.b32.xlu0 %v2965, 16
    %v2979 = vpop.permute.xlu0 %2978
    %2980 = vrot.lane.b32.xlu0 %v2970, 16
    %v2981 = vpop.permute.xlu0 %2980
    %v2985 = vsel %vm298, %v2725, %v2977
    %v2986 = vsel %vm298, %v2730, %v2979
    %v2987 = vsel %vm298, %v2735, %v2981
    %s2988 = scalar_lea.vmem %s4, 32
    %v2989 = vld [vmem:[%s2988] sm:$0xff]
    %v2990 = vld [vmem:[%s2988 + $0x8] sm:$0xff]
    %v2991 = vld [vmem:[%s2988 + $0x10] sm:$0xff]
    %v2992 = vld [vmem:[%s2988 + $0x18] sm:$0xff]
    %v2994 = vsel %vm68, %v2503, 0
    %v2997 = vsel %vm68, %v2504, 0
    %v3000 = vsel %vm68, %v2505, 0
    %v3003 = vsel %vm68, %v2985, 0
    %v3006 = vsel %vm68, %v2986, 0
    %v3009 = vsel %vm68, %v2987, 0
    %3011 = vmatprep.subr.mxu0 0.0
    %3012 = vmatpush1.msra.mxu0 0.0
    %3013 = vmatprep.subr.mxu0 0.0
    %3014 = vmatpush1.msra.mxu0 0.0
    %3015 = vmatprep.subr.mxu0 0.0
    %3016 = vmatpush1.msra.mxu0 0.0
    %3017 = vmatprep.subr.mxu0 0.0
    %3018 = vmatpush1.msra.mxu0 0.0
    %3019 = vmatprep.subr.mxu0 0.0
    %3020 = vmatpush1.msra.mxu0 0.0
    %3021 = vmatprep.subr.mxu0 0.0
    %3022 = vmatpush1.msra.mxu0 0.0
    %3023 = vmatprep.subr.mxu0 0.0
    %3024 = vmatpush1.msra.mxu0 0.0
    %3025 = vmatprep.subr.mxu0 0.0
    %3026 = vmatpush1.msra.mxu0 0.0
    %3027 = vmatprep.subr.mxu0 0.0
    %3028 = vmatpush1.msra.mxu0 0.0
    %3029 = vmatprep.subr.mxu0 0.0
    %3030 = vmatpush1.msra.mxu0 0.0
    %3031 = vmatprep.subr.mxu0 0.0
    %3032 = vmatpush1.msra.mxu0 0.0
    %3033 = vmatprep.subr.mxu0 0.0
    %3034 = vmatpush1.msra.mxu0 0.0
    %3035 = vmatprep.subr.mxu0 0.0
    %3036 = vmatpush1.msra.mxu0 %v2992
    %3037 = vmatprep.subr.mxu0 0.0
    %3038 = vmatpush1.msra.mxu0 %v2991
    %3039 = vmatprep.subr.mxu0 0.0
    %3040 = vmatpush1.msra.mxu0 %v2990
    %3041 = vmatprep.subr.mxu0 0.0
    %3042 = vmatpush1.msra.mxu0 %v2989
    %3043 = vmatprep.subr.mxu0 0.0
    %3044 = vmatpush2.msra.mxu0 0.0
    %3045 = vmatprep.subr.mxu0 0.0
    %3046 = vmatpush2.msra.mxu0 0.0
    %3047 = vmatprep.subr.mxu0 0.0
    %3048 = vmatpush2.msra.mxu0 0.0
    %3049 = vmatprep.subr.mxu0 0.0
    %3050 = vmatpush2.msra.mxu0 0.0
    %3051 = vmatprep.subr.mxu0 0.0
    %3052 = vmatpush2.msra.mxu0 0.0
    %3053 = vmatprep.subr.mxu0 0.0
    %3054 = vmatpush2.msra.mxu0 0.0
    %3055 = vmatprep.subr.mxu0 0.0
    %3056 = vmatpush2.msra.mxu0 0.0
    %3057 = vmatprep.subr.mxu0 0.0
    %3058 = vmatpush2.msra.mxu0 0.0
    %3059 = vmatprep.subr.mxu0 0.0
    %3060 = vmatpush2.msra.mxu0 0.0
    %3061 = vmatprep.subr.mxu0 0.0
    %3062 = vmatpush2.msra.mxu0 0.0
    %3063 = vmatprep.subr.mxu0 0.0
    %3064 = vmatpush2.msra.mxu0 0.0
    %3065 = vmatprep.subr.mxu0 0.0
    %3066 = vmatpush2.msra.mxu0 0.0
    %3067 = vmatprep.subr.mxu0 0.0
    %3068 = vmatpush2.msra.mxu0 0.0
    %3069 = vmatprep.subr.mxu0 0.0
    %3070 = vmatpush2.msra.mxu0 0.0
    %3071 = vmatprep.subr.mxu0 0.0
    %3072 = vmatpush2.msra.mxu0 0.0
    %3073 = vmatprep.subr.mxu0 0.0
    %3074 = vmatpush2.msra.mxu0 0.0
    %3075 = vmatprep.mubr.f32.mxu0 0.0
    %3076 = vmatmul.mubr.f32.gmra.mxu0 %v2994
    %v3077 = vpop.f32.mrf.mxu0
    %v3078 = vadd.f32 0.0, %v3077
    %v3079 = vpop.f32.mrf.mxu0
    %3080 = vmatprep.mubr.f32.mxu0 0.0
    %3081 = vmatmul.mubr.f32.gmra.mxu0 %v2997
    %v3082 = vpop.f32.mrf.mxu0
    %v3083 = vadd.f32 0.0, %v3082
    %v3084 = vpop.f32.mrf.mxu0
    %3085 = vmatprep.mubr.f32.mxu0 0.0
    %3086 = vmatmul.mubr.f32.gmra.mxu0 %v3000
    %v3087 = vpop.f32.mrf.mxu0
    %v3088 = vadd.f32 0.0, %v3087
    %v3089 = vpop.f32.mrf.mxu0
    %3090 = vmatprep.mubr.f32.mxu0 0.0
    %3091 = vmatmul.mubr.f32.gmra.mxu0 %v3003
    %v3092 = vpop.f32.mrf.mxu0
    %v3093 = vadd.f32 0.0, %v3092
    %v3094 = vpop.f32.mrf.mxu0
    %3095 = vmatprep.mubr.f32.mxu0 0.0
    %3096 = vmatmul.mubr.f32.gmra.mxu0 %v3006
    %v3097 = vpop.f32.mrf.mxu0
    %v3098 = vadd.f32 0.0, %v3097
    %v3099 = vpop.f32.mrf.mxu0
    %3100 = vmatprep.mubr.f32.mxu0 0.0
    %3101 = vmatmul.mubr.f32.gmra.mxu0 %v3009
    %v3102 = vpop.f32.mrf.mxu0
    %v3103 = vadd.f32 0.0, %v3102
    %v3104 = vpop.f32.mrf.mxu0
    %3105 = vdwg.mxu0
    %v3106 = vadd.f32 %v1794, %v3078
    %v3107 = vadd.f32 %v1795, %v3083
    %v3108 = vadd.f32 %v1796, %v3088
    %v3109 = vadd.f32 %v1797, %v3093
    %v3110 = vadd.f32 %v1798, %v3098
    %v3111 = vadd.f32 %v1799, %v3103
    %s3112 = scalar_lea.vmem %s5, 1
    %v3113 = vld [vmem:[%s3112] sm:$0x1]
    %v3115 = vlaneseq
    %v3116 = vshrl.u32 %v3115, 7
    %v3117 = vsub.s32 0, %v3116
    %v3118 = vrot.slane %v3113, %v3117
    %v3120 = vadd.f32 %v3106, %v3118
    %v3121 = vadd.f32 %v3107, %v3118
    %v3122 = vadd.f32 %v3108, %v3118
    %v3123 = vadd.f32 %v3109, %v3118
    %v3124 = vadd.f32 %v3110, %v3118
    %v3125 = vadd.f32 %v3111, %v3118
    %s3126 = scalar_lea.vmem %s6, 1
    %v3127 = vld [vmem:[%s3126] sm:$0x1]
    %s3128 = scalar_lea.vmem %s7, 1
    %v3129 = vld [vmem:[%s3128] sm:$0x1]
    %v3130 = vsel %vm68, %v3120, 0.0
    %3131 = vadd.xlane.f32.xlu0 %v3130
    %v3132 = vpop.xlane.xlu0 %3131
    %v3133 = vsel %vm68, %v3121, 0.0
    %3134 = vadd.xlane.f32.xlu0 %v3133
    %v3135 = vpop.xlane.xlu0 %3134
    %v3136 = vsel %vm68, %v3122, 0.0
    %3137 = vadd.xlane.f32.xlu0 %v3136
    %v3138 = vpop.xlane.xlu0 %3137
    %v3139 = vsel %vm68, %v3123, 0.0
    %3140 = vadd.xlane.f32.xlu0 %v3139
    %v3141 = vpop.xlane.xlu0 %3140
    %v3142 = vsel %vm68, %v3124, 0.0
    %3143 = vadd.xlane.f32.xlu0 %v3142
    %v3144 = vpop.xlane.xlu0 %3143
    %v3145 = vsel %vm68, %v3125, 0.0
    %3146 = vadd.xlane.f32.xlu0 %v3145
    %v3147 = vpop.xlane.xlu0 %3146
    %v3148 = vmul.f32 %v3132, %v87
    %v3149 = vmul.f32 %v3135, %v87
    %v3150 = vmul.f32 %v3138, %v87
    %v3151 = vmul.f32 %v3141, %v87
    %v3152 = vmul.f32 %v3144, %v87
    %v3153 = vmul.f32 %v3147, %v87
    %v3154 = vsub.f32 %v3120, %v3148
    %v3155 = vsub.f32 %v3121, %v3149
    %v3156 = vsub.f32 %v3122, %v3150
    %v3157 = vsub.f32 %v3123, %v3151
    %v3158 = vsub.f32 %v3124, %v3152
    %v3159 = vsub.f32 %v3125, %v3153
    %v3160 = vmul.f32 %v3154, %v3154
    %v3161 = vmul.f32 %v3155, %v3155
    %v3162 = vmul.f32 %v3156, %v3156
    %v3163 = vmul.f32 %v3157, %v3157
    %v3164 = vmul.f32 %v3158, %v3158
    %v3165 = vmul.f32 %v3159, %v3159
    %v3166 = vsel %vm68, %v3160, 0.0
    %3167 = vadd.xlane.f32.xlu0 %v3166
    %v3168 = vpop.xlane.xlu0 %3167
    %v3169 = vsel %vm68, %v3161, 0.0
    %3170 = vadd.xlane.f32.xlu0 %v3169
    %v3171 = vpop.xlane.xlu0 %3170
    %v3172 = vsel %vm68, %v3162, 0.0
    %3173 = vadd.xlane.f32.xlu0 %v3172
    %v3174 = vpop.xlane.xlu0 %3173
    %v3175 = vsel %vm68, %v3163, 0.0
    %3176 = vadd.xlane.f32.xlu0 %v3175
    %v3177 = vpop.xlane.xlu0 %3176
    %v3178 = vsel %vm68, %v3164, 0.0
    %3179 = vadd.xlane.f32.xlu0 %v3178
    %v3180 = vpop.xlane.xlu0 %3179
    %v3181 = vsel %vm68, %v3165, 0.0
    %3182 = vadd.xlane.f32.xlu0 %v3181
    %v3183 = vpop.xlane.xlu0 %3182
    %v3184 = vmul.f32 %v3168, %v87
    %v3185 = vmul.f32 %v3171, %v87
    %v3186 = vmul.f32 %v3174, %v87
    %v3187 = vmul.f32 %v3177, %v87
    %v3188 = vmul.f32 %v3180, %v87
    %v3189 = vmul.f32 %v3183, %v87
    %v3190 = vadd.f32 %v3184, 1e-05
    %v3191 = vadd.f32 %v3185, 1e-05
    %v3192 = vadd.f32 %v3186, 1e-05
    %v3193 = vadd.f32 %v3187, 1e-05
    %v3194 = vadd.f32 %v3188, 1e-05
    %v3195 = vadd.f32 %v3189, 1e-05
    %v3196 = vrsqrt.pop %v3190
    %v3197 = vrsqrt.pop %v3191
    %v3198 = vrsqrt.pop %v3192
    %v3199 = vrsqrt.pop %v3193
    %v3200 = vrsqrt.pop %v3194
    %v3201 = vrsqrt.pop %v3195
    %v3202 = vmul.f32 %v3154, %v3196
    %v3203 = vmul.f32 %v3155, %v3197
    %v3204 = vmul.f32 %v3156, %v3198
    %v3205 = vmul.f32 %v3157, %v3199
    %v3206 = vmul.f32 %v3158, %v3200
    %v3207 = vmul.f32 %v3159, %v3201
    %v3209 = vlaneseq
    %v3210 = vshrl.u32 %v3209, 7
    %v3211 = vsub.s32 0, %v3210
    %v3212 = vrot.slane %v3127, %v3211
    %v3214 = vmul.f32 %v3202, %v3212
    %v3215 = vmul.f32 %v3203, %v3212
    %v3216 = vmul.f32 %v3204, %v3212
    %v3217 = vmul.f32 %v3205, %v3212
    %v3218 = vmul.f32 %v3206, %v3212
    %v3219 = vmul.f32 %v3207, %v3212
    %v3221 = vlaneseq
    %v3222 = vshrl.u32 %v3221, 7
    %v3223 = vsub.s32 0, %v3222
    %v3224 = vrot.slane %v3129, %v3223
    %v3226 = vadd.f32 %v3214, %v3224
    %v3227 = vadd.f32 %v3215, %v3224
    %v3228 = vadd.f32 %v3216, %v3224
    %v3229 = vadd.f32 %v3217, %v3224
    %v3230 = vadd.f32 %v3218, %v3224
    %v3231 = vadd.f32 %v3219, %v3224
    %s3232 = scalar_lea.vmem %s8, 64
    %v3233 = vld [vmem:[%s3232] sm:$0xff]
    %v3234 = vld [vmem:[%s3232 + $0x8] sm:$0xff]
    %v3235 = vld [vmem:[%s3232 + $0x10] sm:$0xff]
    %v3236 = vld [vmem:[%s3232 + $0x18] sm:$0xff]
    %v3237 = vld [vmem:[%s3232 + $0x20] sm:$0xff]
    %v3238 = vld [vmem:[%s3232 + $0x28] sm:$0xff]
    %v3239 = vld [vmem:[%s3232 + $0x30] sm:$0xff]
    %v3240 = vld [vmem:[%s3232 + $0x38] sm:$0xff]
    %s3241 = scalar_lea.vmem %s9, 2
    %v3242 = vld [vmem:[%s3241] sm:$0x3]
    %v3244 = vlaneseq
    %v3245 = vshrl.u32 %v3244, 7
    %v3246 = vsub.s32 0, %v3245
    %v3247 = vrot.slane %v3242, %v3246
    %v3248 = vlaneseq
    %v3249 = vshrl.u32 %v3248, 7
    %v3250 = vsub.s32 1, %v3249
    %v3251 = vrot.slane %v3242, %v3250
    %v3255 = vsel %vm68, %v3226, 0
    %v3258 = vsel %vm68, %v3227, 0
    %v3261 = vsel %vm68, %v3228, 0
    %v3264 = vsel %vm68, %v3229, 0
    %v3267 = vsel %vm68, %v3230, 0
    %v3270 = vsel %vm68, %v3231, 0
    %3272 = vmatprep.subr.mxu0 0.0
    %3273 = vmatpush1.msra.mxu0 0.0
    %3274 = vmatprep.subr.mxu0 0.0
    %3275 = vmatpush1.msra.mxu0 0.0
    %3276 = vmatprep.subr.mxu0 0.0
    %3277 = vmatpush1.msra.mxu0 0.0
    %3278 = vmatprep.subr.mxu0 0.0
    %3279 = vmatpush1.msra.mxu0 0.0
    %3280 = vmatprep.subr.mxu0 0.0
    %3281 = vmatpush1.msra.mxu0 0.0
    %3282 = vmatprep.subr.mxu0 0.0
    %3283 = vmatpush1.msra.mxu0 0.0
    %3284 = vmatprep.subr.mxu0 0.0
    %3285 = vmatpush1.msra.mxu0 0.0
    %3286 = vmatprep.subr.mxu0 0.0
    %3287 = vmatpush1.msra.mxu0 0.0
    %3288 = vmatprep.subr.mxu0 0.0
    %3289 = vmatpush1.msra.mxu0 0.0
    %3290 = vmatprep.subr.mxu0 0.0
    %3291 = vmatpush1.msra.mxu0 0.0
    %3292 = vmatprep.subr.mxu0 0.0
    %3293 = vmatpush1.msra.mxu0 0.0
    %3294 = vmatprep.subr.mxu0 0.0
    %3295 = vmatpush1.msra.mxu0 0.0
    %3296 = vmatprep.subr.mxu0 %v3240
    %3297 = vmatpush1.msra.mxu0 %v3239
    %3298 = vmatprep.subr.mxu0 %v3238
    %3299 = vmatpush1.msra.mxu0 %v3237
    %3300 = vmatprep.subr.mxu0 %v3236
    %3301 = vmatpush1.msra.mxu0 %v3235
    %3302 = vmatprep.subr.mxu0 %v3234
    %3303 = vmatpush1.msra.mxu0 %v3233
    %3304 = vmatprep.subr.mxu0 0.0
    %3305 = vmatpush2.msra.mxu0 0.0
    %3306 = vmatprep.subr.mxu0 0.0
    %3307 = vmatpush2.msra.mxu0 0.0
    %3308 = vmatprep.subr.mxu0 0.0
    %3309 = vmatpush2.msra.mxu0 0.0
    %3310 = vmatprep.subr.mxu0 0.0
    %3311 = vmatpush2.msra.mxu0 0.0
    %3312 = vmatprep.subr.mxu0 0.0
    %3313 = vmatpush2.msra.mxu0 0.0
    %3314 = vmatprep.subr.mxu0 0.0
    %3315 = vmatpush2.msra.mxu0 0.0
    %3316 = vmatprep.subr.mxu0 0.0
    %3317 = vmatpush2.msra.mxu0 0.0
    %3318 = vmatprep.subr.mxu0 0.0
    %3319 = vmatpush2.msra.mxu0 0.0
    %3320 = vmatprep.subr.mxu0 0.0
    %3321 = vmatpush2.msra.mxu0 0.0
    %3322 = vmatprep.subr.mxu0 0.0
    %3323 = vmatpush2.msra.mxu0 0.0
    %3324 = vmatprep.subr.mxu0 0.0
    %3325 = vmatpush2.msra.mxu0 0.0
    %3326 = vmatprep.subr.mxu0 0.0
    %3327 = vmatpush2.msra.mxu0 0.0
    %3328 = vmatprep.subr.mxu0 0.0
    %3329 = vmatpush2.msra.mxu0 0.0
    %3330 = vmatprep.subr.mxu0 0.0
    %3331 = vmatpush2.msra.mxu0 0.0
    %3332 = vmatprep.subr.mxu0 0.0
    %3333 = vmatpush2.msra.mxu0 0.0
    %3334 = vmatprep.subr.mxu0 0.0
    %3335 = vmatpush2.msra.mxu0 0.0
    %3336 = vmatprep.mubr.f32.mxu0 0.0
    %3337 = vmatmul.mubr.f32.gmra.mxu0 %v3255
    %v3338 = vpop.f32.mrf.mxu0
    %v3339 = vadd.f32 %v3247, %v3338
    %v3340 = vpop.f32.mrf.mxu0
    %v3341 = vadd.f32 %v3251, %v3340
    %3342 = vmatprep.mubr.f32.mxu0 0.0
    %3343 = vmatmul.mubr.f32.gmra.mxu0 %v3258
    %v3344 = vpop.f32.mrf.mxu0
    %v3345 = vadd.f32 %v3247, %v3344
    %v3346 = vpop.f32.mrf.mxu0
    %v3347 = vadd.f32 %v3251, %v3346
    %3348 = vmatprep.mubr.f32.mxu0 0.0
    %3349 = vmatmul.mubr.f32.gmra.mxu0 %v3261
    %v3350 = vpop.f32.mrf.mxu0
    %v3351 = vadd.f32 %v3247, %v3350
    %v3352 = vpop.f32.mrf.mxu0
    %v3353 = vadd.f32 %v3251, %v3352
    %3354 = vmatprep.mubr.f32.mxu0 0.0
    %3355 = vmatmul.mubr.f32.gmra.mxu0 %v3264
    %v3356 = vpop.f32.mrf.mxu0
    %v3357 = vadd.f32 %v3247, %v3356
    %v3358 = vpop.f32.mrf.mxu0
    %v3359 = vadd.f32 %v3251, %v3358
    %3360 = vmatprep.mubr.f32.mxu0 0.0
    %3361 = vmatmul.mubr.f32.gmra.mxu0 %v3267
    %v3362 = vpop.f32.mrf.mxu0
    %v3363 = vadd.f32 %v3247, %v3362
    %v3364 = vpop.f32.mrf.mxu0
    %v3365 = vadd.f32 %v3251, %v3364
    %3366 = vmatprep.mubr.f32.mxu0 0.0
    %3367 = vmatmul.mubr.f32.gmra.mxu0 %v3270
    %v3368 = vpop.f32.mrf.mxu0
    %v3369 = vadd.f32 %v3247, %v3368
    %v3370 = vpop.f32.mrf.mxu0
    %v3371 = vadd.f32 %v3251, %v3370
    %3372 = vdwg.mxu0
    %v3373 = vmul.f32 %v3341, 0.5
    %v3374 = vmul.f32 %v3347, 0.5
    %v3375 = vmul.f32 %v3353, 0.5
    %v3376 = vmul.f32 %v3359, 0.5
    %v3377 = vmul.f32 %v3365, 0.5
    %v3378 = vmul.f32 %v3371, 0.5
    %v3379 = vmul.f32 %v3341, 0.70710677
    %v3380 = vmul.f32 %v3347, 0.70710677
    %v3381 = vmul.f32 %v3353, 0.70710677
    %v3382 = vmul.f32 %v3359, 0.70710677
    %v3383 = vmul.f32 %v3365, 0.70710677
    %v3384 = vmul.f32 %v3371, 0.70710677
    %v3385 = verf.f32.pop %v3379
    %v3386 = verf.f32.pop %v3380
    %v3387 = verf.f32.pop %v3381
    %v3388 = verf.f32.pop %v3382
    %v3389 = verf.f32.pop %v3383
    %v3390 = verf.f32.pop %v3384
    %v3391 = vadd.f32 %v3385, 1.0
    %v3392 = vadd.f32 %v3386, 1.0
    %v3393 = vadd.f32 %v3387, 1.0
    %v3394 = vadd.f32 %v3388, 1.0
    %v3395 = vadd.f32 %v3389, 1.0
    %v3396 = vadd.f32 %v3390, 1.0
    %v3397 = vmul.f32 %v3373, %v3391
    %v3398 = vmul.f32 %v3374, %v3392
    %v3399 = vmul.f32 %v3375, %v3393
    %v3400 = vmul.f32 %v3376, %v3394
    %v3401 = vmul.f32 %v3377, %v3395
    %v3402 = vmul.f32 %v3378, %v3396
    %v3403 = vmul.f32 %v3339, %v3397
    %v3404 = vmul.f32 %v3345, %v3398
    %v3405 = vmul.f32 %v3351, %v3399
    %v3406 = vmul.f32 %v3357, %v3400
    %v3407 = vmul.f32 %v3363, %v3401
    %v3408 = vmul.f32 %v3369, %v3402
    %s3409 = scalar_lea.vmem %s10, 128
    %v3410 = vld [vmem:[%s3409] sm:$0xff]
    %v3411 = vld [vmem:[%s3409 + $0x8] sm:$0xff]
    %v3412 = vld [vmem:[%s3409 + $0x10] sm:$0xff]
    %v3413 = vld [vmem:[%s3409 + $0x18] sm:$0xff]
    %v3414 = vld [vmem:[%s3409 + $0x20] sm:$0xff]
    %v3415 = vld [vmem:[%s3409 + $0x28] sm:$0xff]
    %v3416 = vld [vmem:[%s3409 + $0x30] sm:$0xff]
    %v3417 = vld [vmem:[%s3409 + $0x38] sm:$0xff]
    %v3418 = vld [vmem:[%s3409 + $0x40] sm:$0xff]
    %v3419 = vld [vmem:[%s3409 + $0x48] sm:$0xff]
    %v3420 = vld [vmem:[%s3409 + $0x50] sm:$0xff]
    %v3421 = vld [vmem:[%s3409 + $0x58] sm:$0xff]
    %v3422 = vld [vmem:[%s3409 + $0x60] sm:$0xff]
    %v3423 = vld [vmem:[%s3409 + $0x68] sm:$0xff]
    %v3424 = vld [vmem:[%s3409 + $0x70] sm:$0xff]
    %v3425 = vld [vmem:[%s3409 + $0x78] sm:$0xff]
    %3426 = vmatprep.subr.mxu0 0.0
    %3427 = vmatpush1.msra.mxu0 %v3425
    %3428 = vmatprep.subr.mxu0 0.0
    %3429 = vmatpush1.msra.mxu0 %v3424
    %3430 = vmatprep.subr.mxu0 0.0
    %3431 = vmatpush1.msra.mxu0 %v3423
    %3432 = vmatprep.subr.mxu0 0.0
    %3433 = vmatpush1.msra.mxu0 %v3422
    %3434 = vmatprep.subr.mxu0 0.0
    %3435 = vmatpush1.msra.mxu0 %v3421
    %3436 = vmatprep.subr.mxu0 0.0
    %3437 = vmatpush1.msra.mxu0 %v3420
    %3438 = vmatprep.subr.mxu0 0.0
    %3439 = vmatpush1.msra.mxu0 %v3419
    %3440 = vmatprep.subr.mxu0 0.0
    %3441 = vmatpush1.msra.mxu0 %v3418
    %3442 = vmatprep.subr.mxu0 0.0
    %3443 = vmatpush1.msra.mxu0 %v3417
    %3444 = vmatprep.subr.mxu0 0.0
    %3445 = vmatpush1.msra.mxu0 %v3416
    %3446 = vmatprep.subr.mxu0 0.0
    %3447 = vmatpush1.msra.mxu0 %v3415
    %3448 = vmatprep.subr.mxu0 0.0
    %3449 = vmatpush1.msra.mxu0 %v3414
    %3450 = vmatprep.subr.mxu0 0.0
    %3451 = vmatpush1.msra.mxu0 %v3413
    %3452 = vmatprep.subr.mxu0 0.0
    %3453 = vmatpush1.msra.mxu0 %v3412
    %3454 = vmatprep.subr.mxu0 0.0
    %3455 = vmatpush1.msra.mxu0 %v3411
    %3456 = vmatprep.subr.mxu0 0.0
    %3457 = vmatpush1.msra.mxu0 %v3410
    %3458 = vmatprep.subr.mxu0 0.0
    %3459 = vmatpush2.msra.mxu0 0.0
    %3460 = vmatprep.subr.mxu0 0.0
    %3461 = vmatpush2.msra.mxu0 0.0
    %3462 = vmatprep.subr.mxu0 0.0
    %3463 = vmatpush2.msra.mxu0 0.0
    %3464 = vmatprep.subr.mxu0 0.0
    %3465 = vmatpush2.msra.mxu0 0.0
    %3466 = vmatprep.subr.mxu0 0.0
    %3467 = vmatpush2.msra.mxu0 0.0
    %3468 = vmatprep.subr.mxu0 0.0
    %3469 = vmatpush2.msra.mxu0 0.0
    %3470 = vmatprep.subr.mxu0 0.0
    %3471 = vmatpush2.msra.mxu0 0.0
    %3472 = vmatprep.subr.mxu0 0.0
    %3473 = vmatpush2.msra.mxu0 0.0
    %3474 = vmatprep.subr.mxu0 0.0
    %3475 = vmatpush2.msra.mxu0 0.0
    %3476 = vmatprep.subr.mxu0 0.0
    %3477 = vmatpush2.msra.mxu0 0.0
    %3478 = vmatprep.subr.mxu0 0.0
    %3479 = vmatpush2.msra.mxu0 0.0
    %3480 = vmatprep.subr.mxu0 0.0
    %3481 = vmatpush2.msra.mxu0 0.0
    %3482 = vmatprep.subr.mxu0 0.0
    %3483 = vmatpush2.msra.mxu0 0.0
    %3484 = vmatprep.subr.mxu0 0.0
    %3485 = vmatpush2.msra.mxu0 0.0
    %3486 = vmatprep.subr.mxu0 0.0
    %3487 = vmatpush2.msra.mxu0 0.0
    %3488 = vmatprep.subr.mxu0 0.0
    %3489 = vmatpush2.msra.mxu0 0.0
    %3490 = vmatprep.mubr.f32.mxu0 0.0
    %3491 = vmatmul.mubr.f32.gmra.mxu0 %v3403
    %v3492 = vpop.f32.mrf.mxu0
    %v3493 = vadd.f32 0.0, %v3492
    %v3494 = vpop.f32.mrf.mxu0
    %3495 = vmatprep.mubr.f32.mxu0 0.0
    %3496 = vmatmul.mubr.f32.gmra.mxu0 %v3404
    %v3497 = vpop.f32.mrf.mxu0
    %v3498 = vadd.f32 0.0, %v3497
    %v3499 = vpop.f32.mrf.mxu0
    %3500 = vmatprep.mubr.f32.mxu0 0.0
    %3501 = vmatmul.mubr.f32.gmra.mxu0 %v3405
    %v3502 = vpop.f32.mrf.mxu0
    %v3503 = vadd.f32 0.0, %v3502
    %v3504 = vpop.f32.mrf.mxu0
    %3505 = vmatprep.mubr.f32.mxu0 0.0
    %3506 = vmatmul.mubr.f32.gmra.mxu0 %v3406
    %v3507 = vpop.f32.mrf.mxu0
    %v3508 = vadd.f32 0.0, %v3507
    %v3509 = vpop.f32.mrf.mxu0
    %3510 = vmatprep.mubr.f32.mxu0 0.0
    %3511 = vmatmul.mubr.f32.gmra.mxu0 %v3407
    %v3512 = vpop.f32.mrf.mxu0
    %v3513 = vadd.f32 0.0, %v3512
    %v3514 = vpop.f32.mrf.mxu0
    %3515 = vmatprep.mubr.f32.mxu0 0.0
    %3516 = vmatmul.mubr.f32.gmra.mxu0 %v3408
    %v3517 = vpop.f32.mrf.mxu0
    %v3518 = vadd.f32 0.0, %v3517
    %v3519 = vpop.f32.mrf.mxu0
    %3520 = vdwg.mxu0
    %v3521 = vadd.f32 %v3120, %v3493
    %v3522 = vadd.f32 %v3121, %v3498
    %v3523 = vadd.f32 %v3122, %v3503
    %v3524 = vadd.f32 %v3123, %v3508
    %v3525 = vadd.f32 %v3124, %v3513
    %v3526 = vadd.f32 %v3125, %v3518
    %s3527 = scalar_lea.vmem %s11, 1
    %v3528 = vld [vmem:[%s3527] sm:$0x1]
    %v3530 = vlaneseq
    %v3531 = vshrl.u32 %v3530, 7
    %v3532 = vsub.s32 0, %v3531
    %v3533 = vrot.slane %v3528, %v3532
    %v3535 = vadd.f32 %v3521, %v3533
    %v3536 = vadd.f32 %v3522, %v3533
    %v3537 = vadd.f32 %v3523, %v3533
    %v3538 = vadd.f32 %v3524, %v3533
    %v3539 = vadd.f32 %v3525, %v3533
    %v3540 = vadd.f32 %v3526, %v3533
    %v3541 = vsel %vm68, %v3535, 0.0
    %3542 = vadd.xlane.f32.xlu0 %v3541
    %v3543 = vpop.xlane.xlu0 %3542
    %v3544 = vsel %vm68, %v3536, 0.0
    %3545 = vadd.xlane.f32.xlu0 %v3544
    %v3546 = vpop.xlane.xlu0 %3545
    %v3547 = vsel %vm68, %v3537, 0.0
    %3548 = vadd.xlane.f32.xlu0 %v3547
    %v3549 = vpop.xlane.xlu0 %3548
    %v3550 = vsel %vm68, %v3538, 0.0
    %3551 = vadd.xlane.f32.xlu0 %v3550
    %v3552 = vpop.xlane.xlu0 %3551
    %v3553 = vsel %vm68, %v3539, 0.0
    %3554 = vadd.xlane.f32.xlu0 %v3553
    %v3555 = vpop.xlane.xlu0 %3554
    %v3556 = vsel %vm68, %v3540, 0.0
    %3557 = vadd.xlane.f32.xlu0 %v3556
    %v3558 = vpop.xlane.xlu0 %3557
    %v3559 = vmul.f32 %v3543, %v87
    %v3560 = vmul.f32 %v3546, %v87
    %v3561 = vmul.f32 %v3549, %v87
    %v3562 = vmul.f32 %v3552, %v87
    %v3563 = vmul.f32 %v3555, %v87
    %v3564 = vmul.f32 %v3558, %v87
    %v3565 = vsub.f32 %v3535, %v3559
    %v3566 = vsub.f32 %v3536, %v3560
    %v3567 = vsub.f32 %v3537, %v3561
    %v3568 = vsub.f32 %v3538, %v3562
    %v3569 = vsub.f32 %v3539, %v3563
    %v3570 = vsub.f32 %v3540, %v3564
    %v3571 = vmul.f32 %v3565, %v3565
    %v3572 = vmul.f32 %v3566, %v3566
    %v3573 = vmul.f32 %v3567, %v3567
    %v3574 = vmul.f32 %v3568, %v3568
    %v3575 = vmul.f32 %v3569, %v3569
    %v3576 = vmul.f32 %v3570, %v3570
    %v3577 = vsel %vm68, %v3571, 0.0
    %3578 = vadd.xlane.f32.xlu0 %v3577
    %v3579 = vpop.xlane.xlu0 %3578
    %v3580 = vsel %vm68, %v3572, 0.0
    %3581 = vadd.xlane.f32.xlu0 %v3580
    %v3582 = vpop.xlane.xlu0 %3581
    %v3583 = vsel %vm68, %v3573, 0.0
    %3584 = vadd.xlane.f32.xlu0 %v3583
    %v3585 = vpop.xlane.xlu0 %3584
    %v3586 = vsel %vm68, %v3574, 0.0
    %3587 = vadd.xlane.f32.xlu0 %v3586
    %v3588 = vpop.xlane.xlu0 %3587
    %v3589 = vsel %vm68, %v3575, 0.0
    %3590 = vadd.xlane.f32.xlu0 %v3589
    %v3591 = vpop.xlane.xlu0 %3590
    %v3592 = vsel %vm68, %v3576, 0.0
    %3593 = vadd.xlane.f32.xlu0 %v3592
    %v3594 = vpop.xlane.xlu0 %3593
    %v3595 = vmul.f32 %v3579, %v87
    %v3596 = vmul.f32 %v3582, %v87
    %v3597 = vmul.f32 %v3585, %v87
    %v3598 = vmul.f32 %v3588, %v87
    %v3599 = vmul.f32 %v3591, %v87
    %v3600 = vmul.f32 %v3594, %v87
    %v3601 = vadd.f32 %v3595, 1e-05
    %v3602 = vadd.f32 %v3596, 1e-05
    %v3603 = vadd.f32 %v3597, 1e-05
    %v3604 = vadd.f32 %v3598, 1e-05
    %v3605 = vadd.f32 %v3599, 1e-05
    %v3606 = vadd.f32 %v3600, 1e-05
    %v3607 = vrsqrt.pop %v3601
    %v3608 = vrsqrt.pop %v3602
    %v3609 = vrsqrt.pop %v3603
    %v3610 = vrsqrt.pop %v3604
    %v3611 = vrsqrt.pop %v3605
    %v3612 = vrsqrt.pop %v3606
    %v3613 = vmul.f32 %v3565, %v3607
    %v3614 = vmul.f32 %v3566, %v3608
    %v3615 = vmul.f32 %v3567, %v3609
    %v3616 = vmul.f32 %v3568, %v3610
    %v3617 = vmul.f32 %v3569, %v3611
    %v3618 = vmul.f32 %v3570, %v3612
    %v3619 = vld [vmem:[%s12] sm:$0xff]
    %v3620 = vld [vmem:[%s12 + $0x8] sm:$0xff]
    %v3621 = vld [vmem:[%s12 + $0x10] sm:$0xff]
    %v3622 = vld [vmem:[%s12 + $0x18] sm:$0xff]
    %v3623 = vld [vmem:[%s13] sm:$0x1]
    %v3625 = vlaneseq
    %v3626 = vshrl.u32 %v3625, 7
    %v3627 = vsub.s32 0, %v3626
    %v3628 = vrot.slane %v3623, %v3627
    %v3631 = vsel %vm68, %v3613, 0
    %v3634 = vsel %vm68, %v3614, 0
    %v3637 = vsel %vm68, %v3615, 0
    %v3640 = vsel %vm68, %v3616, 0
    %v3643 = vsel %vm68, %v3617, 0
    %v3646 = vsel %vm68, %v3618, 0
    %3648 = vmatprep.subr.mxu0 0.0
    %3649 = vmatpush1.msra.mxu0 0.0
    %3650 = vmatprep.subr.mxu0 0.0
    %3651 = vmatpush1.msra.mxu0 0.0
    %3652 = vmatprep.subr.mxu0 0.0
    %3653 = vmatpush1.msra.mxu0 0.0
    %3654 = vmatprep.subr.mxu0 0.0
    %3655 = vmatpush1.msra.mxu0 0.0
    %3656 = vmatprep.subr.mxu0 0.0
    %3657 = vmatpush1.msra.mxu0 0.0
    %3658 = vmatprep.subr.mxu0 0.0
    %3659 = vmatpush1.msra.mxu0 0.0
    %3660 = vmatprep.subr.mxu0 0.0
    %3661 = vmatpush1.msra.mxu0 0.0
    %3662 = vmatprep.subr.mxu0 0.0
    %3663 = vmatpush1.msra.mxu0 0.0
    %3664 = vmatprep.subr.mxu0 0.0
    %3665 = vmatpush1.msra.mxu0 0.0
    %3666 = vmatprep.subr.mxu0 0.0
    %3667 = vmatpush1.msra.mxu0 0.0
    %3668 = vmatprep.subr.mxu0 0.0
    %3669 = vmatpush1.msra.mxu0 0.0
    %3670 = vmatprep.subr.mxu0 0.0
    %3671 = vmatpush1.msra.mxu0 0.0
    %3672 = vmatprep.subr.mxu0 0.0
    %3673 = vmatpush1.msra.mxu0 %v3622
    %3674 = vmatprep.subr.mxu0 0.0
    %3675 = vmatpush1.msra.mxu0 %v3621
    %3676 = vmatprep.subr.mxu0 0.0
    %3677 = vmatpush1.msra.mxu0 %v3620
    %3678 = vmatprep.subr.mxu0 0.0
    %3679 = vmatpush1.msra.mxu0 %v3619
    %3680 = vmatprep.subr.mxu0 0.0
    %3681 = vmatpush2.msra.mxu0 0.0
    %3682 = vmatprep.subr.mxu0 0.0
    %3683 = vmatpush2.msra.mxu0 0.0
    %3684 = vmatprep.subr.mxu0 0.0
    %3685 = vmatpush2.msra.mxu0 0.0
    %3686 = vmatprep.subr.mxu0 0.0
    %3687 = vmatpush2.msra.mxu0 0.0
    %3688 = vmatprep.subr.mxu0 0.0
    %3689 = vmatpush2.msra.mxu0 0.0
    %3690 = vmatprep.subr.mxu0 0.0
    %3691 = vmatpush2.msra.mxu0 0.0
    %3692 = vmatprep.subr.mxu0 0.0
    %3693 = vmatpush2.msra.mxu0 0.0
    %3694 = vmatprep.subr.mxu0 0.0
    %3695 = vmatpush2.msra.mxu0 0.0
    %3696 = vmatprep.subr.mxu0 0.0
    %3697 = vmatpush2.msra.mxu0 0.0
    %3698 = vmatprep.subr.mxu0 0.0
    %3699 = vmatpush2.msra.mxu0 0.0
    %3700 = vmatprep.subr.mxu0 0.0
    %3701 = vmatpush2.msra.mxu0 0.0
    %3702 = vmatprep.subr.mxu0 0.0
    %3703 = vmatpush2.msra.mxu0 0.0
    %3704 = vmatprep.subr.mxu0 0.0
    %3705 = vmatpush2.msra.mxu0 0.0
    %3706 = vmatprep.subr.mxu0 0.0
    %3707 = vmatpush2.msra.mxu0 0.0
    %3708 = vmatprep.subr.mxu0 0.0
    %3709 = vmatpush2.msra.mxu0 0.0
    %3710 = vmatprep.subr.mxu0 0.0
    %3711 = vmatpush2.msra.mxu0 0.0
    %3712 = vmatprep.mubr.f32.mxu0 0.0
    %3713 = vmatmul.mubr.f32.gmra.mxu0 %v3631
    %v3714 = vpop.f32.mrf.mxu0
    %v3715 = vadd.f32 %v3628, %v3714
    %v3716 = vpop.f32.mrf.mxu0
    %3717 = vmatprep.mubr.f32.mxu0 0.0
    %3718 = vmatmul.mubr.f32.gmra.mxu0 %v3634
    %v3719 = vpop.f32.mrf.mxu0
    %v3720 = vadd.f32 %v3628, %v3719
    %v3721 = vpop.f32.mrf.mxu0
    %3722 = vmatprep.mubr.f32.mxu0 0.0
    %3723 = vmatmul.mubr.f32.gmra.mxu0 %v3637
    %v3724 = vpop.f32.mrf.mxu0
    %v3725 = vadd.f32 %v3628, %v3724
    %v3726 = vpop.f32.mrf.mxu0
    %3727 = vmatprep.mubr.f32.mxu0 0.0
    %3728 = vmatmul.mubr.f32.gmra.mxu0 %v3640
    %v3729 = vpop.f32.mrf.mxu0
    %v3730 = vadd.f32 %v3628, %v3729
    %v3731 = vpop.f32.mrf.mxu0
    %3732 = vmatprep.mubr.f32.mxu0 0.0
    %3733 = vmatmul.mubr.f32.gmra.mxu0 %v3643
    %v3734 = vpop.f32.mrf.mxu0
    %v3735 = vadd.f32 %v3628, %v3734
    %v3736 = vpop.f32.mrf.mxu0
    %3737 = vmatprep.mubr.f32.mxu0 0.0
    %3738 = vmatmul.mubr.f32.gmra.mxu0 %v3646
    %v3739 = vpop.f32.mrf.mxu0
    %v3740 = vadd.f32 %v3628, %v3739
    %v3741 = vpop.f32.mrf.mxu0
    %3742 = vdwg.mxu0
    %vm3743 = vcmp.ge.s32.totalorder %v55, 7
    %vm3744 = vcmp.ge.s32.totalorder %v56, 7
    %vm3745 = vcmp.ge.s32.totalorder %v57, 7
    %vm3746 = vcmp.lt.s32.totalorder %v59, 24
    %vm3747 = vmand %vm3743, %vm3746
    %vm3748 = vmand %vm3744, %vm3746
    %vm3749 = vmand %vm3745, %vm3746
    %vm3750 = vcmp.lt.s32.totalorder %v55, 7
    %vm3751 = vcmp.lt.s32.totalorder %v56, 7
    %vm3752 = vcmp.lt.s32.totalorder %v57, 7
    %vm3753 = vcmp.ge.s32.totalorder %v59, 24
    %vm3754 = vmand %vm3750, %vm3753
    %vm3755 = vmand %vm3751, %vm3753
    %vm3756 = vmand %vm3752, %vm3753
    %vm3757 = vmor %vm3747, %vm3754
    %vm3758 = vmor %vm3748, %vm3755
    %vm3759 = vmor %vm3749, %vm3756
    %vm3760 = vcmp.ne.s32.totalorder %v55, 23
    %vm3761 = vcmp.ne.s32.totalorder %v56, 23
    %vm3762 = vcmp.ne.s32.totalorder %v57, 23
    %vm3763 = vcmp.ge.s32.totalorder %v59, 40
    %vm3764 = vmand %vm3760, %vm3763
    %vm3765 = vmand %vm3761, %vm3763
    %vm3766 = vmand %vm3762, %vm3763
    %vm3767 = vmor %vm3757, %vm3764
    %vm3768 = vmor %vm3758, %vm3765
    %vm3769 = vmor %vm3759, %vm3766
    %vm3770 = vcmp.ge.s32.totalorder %v59, 41
    %vm3771 = vmor %vm3767, %vm3770
    %vm3772 = vmor %vm3768, %vm3770
    %vm3773 = vmor %vm3769, %vm3770
    %v3774 = vsel %vm3771, -3.4028235e+38, %v3715
    %v3775 = vsel %vm3772, -3.4028235e+38, %v3720
    %v3776 = vsel %vm3773, -3.4028235e+38, %v3725
    %v3777 = vsel %vm3771, -3.4028235e+38, %v3730
    %v3778 = vsel %vm3772, -3.4028235e+38, %v3735
    %v3779 = vsel %vm3773, -3.4028235e+38, %v3740
    %3780 = vst [vmem:[#allocation2] sm:$0xff] %v3774
    %3781 = vst [vmem:[#allocation2 + $0x8] sm:$0xff] %v3775
    %3782 = vst [vmem:[#allocation2 + $0x10] sm:$0xff] %v3776
    %3783 = vst [vmem:[#allocation2 + $0x18] sm:$0xff] %v3777
    %3784 = vst [vmem:[#allocation2 + $0x20] sm:$0xff] %v3778
    %3785 = vst [vmem:[#allocation2 + $0x28] sm:$0xff] %v3779
    // Predicated region
    $region58: #{_dalle_forward.1} parent=1 // pred_check
      _
    $region59: #{_dalle_forward.1} parent=1 // pred_check_branch
      %3787 = sbr.rel (0) target = $region61
    $region60: #{_dalle_forward.1} parent=1 // pred_region
      %s3789 = ssub.s32 768, 768
      %3790 = vsyncadd [#allocation3], %s3789
      %s3791 = sshll.u32 [#allocation2], 4
      %s3792 = int_to_ptr.vmem [resolvable:$true] %s3791
      %3797 = dma.vmem_to_hbm [thread:$0]  %s3792, 768, %s14, [#allocation3], 128, 128, 8
    $region61: #{_dalle_forward.1} parent=1 // pred_fallthru
      _
    // Predicated region
    $region62: #{_dalle_forward.1} parent=1 // pred_check
      _
    $region63: #{_dalle_forward.1} parent=1 // pred_check_branch
      %3799 = sbr.rel (0) target = $region65
    $region64: #{_dalle_forward.1} parent=1 // pred_region
      %3800 = dma.done [#allocation3], 768
    $region65: #{_dalle_forward.1} parent=1 // pred_fallthru
      _
    %3801 = vsyncpa [#allocation3], 1

</llo_original>
